<compile_context>
chip_gen: v7x
topology: tpu7x:2x2x1
jax: 0.10.0
libtpu: 0.0.40
codegen_flags: <defaults>
</compile_context>

<pallas_src>
import math

import jax
import jax.numpy as jnp
import numpy as np
from jax import lax
from jax.experimental import pallas as pl
from jax.experimental.pallas import tpu as pltpu

PAD = 11  # 2 (5x5) + 9 (dilated 7x7) of zero padding on every side


def _round_up(n, m):
    return ((n + m - 1) // m) * m


def _make_kernel(T, Wp, L1t, Lx_t):
    """Kernel with the static flat-layout constants closed over."""
    L2t = T * Wp          # flat length of one output row-tile
    base = 9 * Wp + 9     # offset of the valid attn1 region inside the scratch

    def kernel(x_hbm, mask_ref, w0_ref, b0_ref, ws_ref, bs_ref,
               w1_ref, b1_ref, w2_ref, b2_ref,
               out1_ref, out2_ref, xbuf, a1m_ref, sem):
        # x_hbm    : (B, C, LxFull)  zero-padded input, flat, row stride Wp (HBM)
        # mask_ref : (1, 1, L1t)     per-tile 0/1 validity mask for attn1
        # xbuf     : (2, C, Lx_t)    double-buffered input slab (VMEM scratch)
        # a1m_ref  : (C, L1t)        masked attn1 for this tile (+/-9 row halo)
        # out*_ref : (1, Co, L2t)    lane-dense flat output tiles
        b = pl.program_id(0)
        t = pl.program_id(1)
        nT = pl.num_programs(1)

        # ---- manually double-buffered input DMA (halo windows overlap) -----
        def issue(row0, slot):
            pltpu.make_async_copy(
                x_hbm.at[b, :, pl.ds(row0, Lx_t)],
                xbuf.at[slot], sem.at[slot]).start()

        @pl.when(t == 0)                 # prime at the start of each image
        def _():
            issue(0, 0)

        slot = t % 2
        pltpu.make_async_copy(           # wait for this tile's slab
            x_hbm.at[b, :, pl.ds(0, Lx_t)], xbuf.at[slot], sem.at[slot]).wait()

        @pl.when(t + 1 < nT)             # prefetch next tile while computing
        def _():
            issue((t + 1) * L2t, 1 - slot)

        x_t = xbuf.at[slot]              # (C, Lx_t) view of the live buffer

        # ---- hoisted weights / biases / mask --------------------------------
        w0 = w0_ref[...]                 # (C, 25)
        ws = ws_ref[...]                 # (C, 49)
        b0 = b0_ref[...]                 # (C, 1)
        bs = bs_ref[...]                 # (C, 1)
        valid = mask_ref[0]              # (1, L1t)

        # ---- depthwise 5x5 (pad 2) over the tile + halo grid ----------------
        acc1 = None
        for ky in range(5):
            for kx in range(5):
                off = ky * Wp + kx
                tap = x_t[:, off:off + L1t] * w0[:, ky * 5 + kx:ky * 5 + kx + 1]
                acc1 = tap if acc1 is None else acc1 + tap
        # One full, aligned store; mask zeroes the halo / padding positions.
        a1m_ref[...] = (acc1 + b0) * valid

        # ---- depthwise 7x7, dilation 3 (pad 9), on masked attn1 -------------
        acc2 = None
        for dy in range(7):
            for dx in range(7):
                off = 3 * dy * Wp + 3 * dx
                tap = a1m_ref[:, off:off + L2t] * ws[:, dy * 7 + dx:dy * 7 + dx + 1]
                acc2 = tap if acc2 is None else acc2 + tap
        attn2 = acc2 + bs                                    # (C, L2t)

        # ---- 1x1 convs: two bf16 MXU dots with f32 accumulation -------------
        a1v = a1m_ref[:, base:base + L2t]                    # valid attn1, flat
        out1 = jnp.dot(w1_ref[...], a1v.astype(jnp.bfloat16),
                       preferred_element_type=jnp.float32) + b1_ref[...]
        out2 = jnp.dot(w2_ref[...], attn2.astype(jnp.bfloat16),
                       preferred_element_type=jnp.float32) + b2_ref[...]
        out1_ref[0] = out1
        out2_ref[0] = out2

    return kernel


def sc_module_pallas(x_nchw, params, tile_rows=None):
    """x_nchw: (B, C, H, W) float32.  Returns (attn1, attn2), each (B, C//2, H, W)."""
    w0, b0, ws, bs, w1, b1, w2, b2 = params
    B, C, H, W = x_nchw.shape
    Co = C // 2

    # ---- row-tile size ------------------------------------------------------
    if tile_rows is None:
        cands = [r for r in (16, 8, 32, 24) if H % r == 0]
        T = cands[0] if cands else H
    else:
        T = int(tile_rows)
        if H % T != 0:
            raise ValueError(f"tile_rows={T} must divide H={H}")
    nT = H // T

    # ---- flat layout constants ----------------------------------------------
    Wp = W + 2 * PAD
    if nT > 1:                      # make T*Wp a multiple of 128 (unmasked vst)
        Wp = _round_up(Wp, 128 // math.gcd(T, 128))
    L2t = T * Wp                                  # flat output tile length
    L1t = _round_up((T + 19) * Wp, 128)           # attn1 scratch (halo + guard)
    Lx_t = _round_up(L1t + 4 * Wp + 4, 128)       # input slab (5x5 reach)
    LxFull = (nT - 1) * L2t + Lx_t                # flat padded input length

    # ---- input: NCHW -> zero-pad by 11 -> flatten spatial onto lanes --------
    xpf = jnp.pad(x_nchw.astype(jnp.float32),
                  ((0, 0), (0, 0), (PAD, PAD), (PAD, Wp - W - PAD)))
    xpf = xpf.reshape(B, C, (H + 2 * PAD) * Wp)
    xpf = jnp.pad(xpf, ((0, 0), (0, 0), (0, LxFull - (H + 2 * PAD) * Wp)))

    # ---- weights: depthwise (C, taps) f32; 1x1 weights bf16 for the MXU -----
    w0_k = w0.reshape(C, 25).astype(jnp.float32)
    ws_k = ws.reshape(C, 49).astype(jnp.float32)
    b0_k = b0.reshape(C, 1).astype(jnp.float32)
    bs_k = bs.reshape(C, 1).astype(jnp.float32)
    w1_k = w1[:, :, 0, 0].astype(jnp.bfloat16)    # (Co, C)
    w2_k = w2[:, :, 0, 0].astype(jnp.bfloat16)    # (Co, C)
    b1_k = b1.reshape(Co, 1).astype(jnp.float32)
    b2_k = b2.reshape(Co, 1).astype(jnp.float32)

    # ---- per-tile 0/1 validity mask of attn1 (tiny; built once, host-side) --
    lr = np.arange(T + 19)
    cc = np.arange(Wp)
    colm = ((cc >= 9) & (cc <= W + 8)).astype(np.float32)
    tiles = []
    for t in range(nT):
        e = t * T + lr                           # extended attn1 row index
        rowm = ((e >= 9) & (e <= H + 8)).astype(np.float32)
        m = (rowm[:, None] * colm[None, :]).reshape(-1)
        tiles.append(np.pad(m, (0, L1t - m.size)))
    mask = jnp.asarray(np.stack(tiles)[:, None, :])          # (nT, 1, L1t)

    const = lambda shape: pl.BlockSpec(shape, lambda b, t: (0,) * len(shape))

    grid_spec = pltpu.PrefetchScalarGridSpec(
        num_scalar_prefetch=0,
        grid=(B, nT),
        in_specs=[
            pl.BlockSpec(memory_space=pl.ANY),                    # x (HBM)
            pl.BlockSpec((1, 1, L1t), lambda b, t: (t, 0, 0)),    # per-tile mask
            const((C, 25)), const((C, 1)),
            const((C, 49)), const((C, 1)),
            const((Co, C)), const((Co, 1)),
            const((Co, C)), const((Co, 1)),
        ],
        out_specs=[
            pl.BlockSpec((1, Co, L2t), lambda b, t: (b, 0, t)),
            pl.BlockSpec((1, Co, L2t), lambda b, t: (b, 0, t)),
        ],
        scratch_shapes=[
            pltpu.VMEM((2, C, Lx_t), jnp.float32),   # double-buffered input slab
            pltpu.VMEM((C, L1t), jnp.float32),       # masked attn1 (+halo)
            pltpu.SemaphoreType.DMA((2,)),
        ],
    )

    # VMEM budget from actual post-tiling buffer sizes (x2 for double-buffered
    # pipeline blocks) plus headroom for the acc1/acc2 live temporaries.
    vmem_bytes = (2 * C * Lx_t * 4 + C * L1t * 4 + 2 * L1t * 4
                  + 2 * 2 * Co * L2t * 4
                  + 2 * C * L1t * 4                        # accumulator temps
                  + 2 * (C * 78 + 2 * Co) * 4 + 2 * 2 * Co * C * 2)
    vmem_limit = int(min(100 << 20, max(24 << 20, 2 * vmem_bytes)))

    kernel = _make_kernel(T, Wp, L1t, Lx_t)
    out1, out2 = pl.pallas_call(
        kernel,
        out_shape=(jax.ShapeDtypeStruct((B, Co, H * Wp), jnp.float32),
                   jax.ShapeDtypeStruct((B, Co, H * Wp), jnp.float32)),
        grid_spec=grid_spec,
        compiler_params=pltpu.CompilerParams(
            dimension_semantics=("parallel", "arbitrary"),
            vmem_limit_bytes=vmem_limit,
        ),
    )(xpf, mask, w0_k, b0_k, ws_k, bs_k, w1_k, b1_k, w2_k, b2_k)

    # TODO(synk): emit a compact (Co, H*W) output in-kernel to drop this strip.
    out1 = out1.reshape(B, Co, H, Wp)[:, :, :, :W]
    out2 = out2.reshape(B, Co, H, Wp)[:, :, :, :W]
    return out1, out2


def _reference(x, params):
    """Pure-JAX reference mirroring the PyTorch convs (for verification)."""
    w0, b0, ws, bs, w1, b1, w2, b2 = params
    C = x.shape[1]
    dn = ('NCHW', 'OIHW', 'NCHW')
    p = lax.Precision.HIGHEST
    a1 = lax.conv_general_dilated(x, w0, (1, 1), [(2, 2), (2, 2)],
                                  dimension_numbers=dn, feature_group_count=C,
                                  precision=p) + b0[None, :, None, None]
    a2 = lax.conv_general_dilated(a1, ws, (1, 1), [(9, 9), (9, 9)],
                                  rhs_dilation=(3, 3), dimension_numbers=dn,
                                  feature_group_count=C,
                                  precision=p) + bs[None, :, None, None]
    o1 = lax.conv_general_dilated(a1, w1, (1, 1), [(0, 0), (0, 0)],
                                  dimension_numbers=dn,
                                  precision=p) + b1[None, :, None, None]
    o2 = lax.conv_general_dilated(a2, w2, (1, 1), [(0, 0), (0, 0)],
                                  dimension_numbers=dn,
                                  precision=p) + b2[None, :, None, None]
    return o1, o2


if __name__ == "__main__":
    B, C, H, W = 2, 8, 16, 16   # dim = 8 (even, so dim//2 = 4)
    key = jax.random.PRNGKey(0)
    kx, k0, kb0, ks, kbs, k1, kb1, k2, kb2 = jax.random.split(key, 9)

    x = jax.random.normal(kx, (B, C, H, W), jnp.float32)

    # Deterministic parameter init (torch-layout shapes from the module __init__).
    params = (
        0.1 * jax.random.normal(k0, (C, 1, 5, 5), jnp.float32),      # conv0.weight
        0.1 * jax.random.normal(kb0, (C,), jnp.float32),             # conv0.bias
        0.1 * jax.random.normal(ks, (C, 1, 7, 7), jnp.float32),      # conv_spatial.weight
        0.1 * jax.random.normal(kbs, (C,), jnp.float32),             # conv_spatial.bias
        0.1 * jax.random.normal(k1, (C // 2, C, 1, 1), jnp.float32), # conv1.weight
        0.1 * jax.random.normal(kb1, (C // 2,), jnp.float32),        # conv1.bias
        0.1 * jax.random.normal(k2, (C // 2, C, 1, 1), jnp.float32), # conv2.weight
        0.1 * jax.random.normal(kb2, (C // 2,), jnp.float32),        # conv2.bias
    )

    # tile_rows=8 -> two row tiles at H=16, exercising the tiled / manual-DMA path.
    fn = jax.jit(lambda xx: sc_module_pallas(xx, params, tile_rows=8))
    out1, out2 = fn(x)
    jax.block_until_ready((out1, out2))

    ref1, ref2 = _reference(x, params)
    # Depthwise path is exact f32; the 1x1 convs use bf16 MXU operands with f32
    # accumulation, hence the relaxed tolerance vs. the pure-f32 reference.
    np.testing.assert_allclose(np.asarray(out1), np.asarray(ref1), rtol=2e-2, atol=2e-2)
    np.testing.assert_allclose(np.asarray(out2), np.asarray(ref2), rtol=2e-2, atol=2e-2)

    print("KERNEL_OK")
</pallas_src>

<mosaic_0001>
module attributes {stable_mosaic.version = 11 : i64} {
  func.func @kernel(%arg0: i32, %arg1: i32, %arg2: memref<2x8x2048xf32, #tpu.memory_space<any>>, %arg3: memref<1x1x1408xf32, #tpu.memory_space<vmem>>, %arg4: memref<8x25xf32, #tpu.memory_space<vmem>>, %arg5: memref<8x1xf32, #tpu.memory_space<vmem>>, %arg6: memref<8x49xf32, #tpu.memory_space<vmem>>, %arg7: memref<8x1xf32, #tpu.memory_space<vmem>>, %arg8: memref<4x8xbf16, #tpu.memory_space<vmem>>, %arg9: memref<4x1xf32, #tpu.memory_space<vmem>>, %arg10: memref<4x8xbf16, #tpu.memory_space<vmem>>, %arg11: memref<4x1xf32, #tpu.memory_space<vmem>>, %arg12: memref<1x4x384xf32, #tpu.memory_space<vmem>>, %arg13: memref<1x4x384xf32, #tpu.memory_space<vmem>>, %arg14: memref<2x8x1664xf32, #tpu.memory_space<vmem>>, %arg15: memref<8x1408xf32, #tpu.memory_space<vmem>>, %arg16: memref<2x!tpu.dma_semaphore, #tpu.memory_space<semaphore_mem>>) attributes {dimension_semantics = [#tpu.dimension_semantics<parallel>, #tpu.dimension_semantics<arbitrary>], iteration_bounds = array<i64: 2, 2>, scalar_prefetch = 0 : i64, scratch_operands = 3 : i64, tpu.core_type = #tpu.core_type<tc>, window_params = [{}, {transform_indices = @transform_1, window_bounds = array<i64: 1, 1, 1408>}, {pipeline_mode = #tpu.pipeline_mode<synchronous>, transform_indices = @transform_2, window_bounds = array<i64: 8, 25>}, {pipeline_mode = #tpu.pipeline_mode<synchronous>, transform_indices = @transform_3, window_bounds = array<i64: 8, 1>}, {pipeline_mode = #tpu.pipeline_mode<synchronous>, transform_indices = @transform_4, window_bounds = array<i64: 8, 49>}, {pipeline_mode = #tpu.pipeline_mode<synchronous>, transform_indices = @transform_5, window_bounds = array<i64: 8, 1>}, {pipeline_mode = #tpu.pipeline_mode<synchronous>, transform_indices = @transform_6, window_bounds = array<i64: 4, 8>}, {pipeline_mode = #tpu.pipeline_mode<synchronous>, transform_indices = @transform_7, window_bounds = array<i64: 4, 1>}, {pipeline_mode = #tpu.pipeline_mode<synchronous>, transform_indices = @transform_8, window_bounds = array<i64: 4, 8>}, {pipeline_mode = #tpu.pipeline_mode<synchronous>, transform_indices = @transform_9, window_bounds = array<i64: 4, 1>}, {transform_indices = @transform_10, window_bounds = array<i64: 1, 4, 384>}, {transform_indices = @transform_11, window_bounds = array<i64: 1, 4, 384>}]} {
    %c0_i32 = arith.constant 0 : i32
    %0 = arith.cmpi eq, %arg1, %c0_i32 : i32
    %1 = arith.extui %0 : i1 to i32
    %c0_i32_0 = arith.constant 0 : i32
    %2 = arith.cmpi ne, %1, %c0_i32_0 : i32
    scf.if %2 {
      %c0_i32_170 = arith.constant 0 : i32
      %c0_i32_171 = arith.constant 0 : i32
      %c0_i32_172 = arith.constant 0 : i32
      %c0_i32_173 = arith.constant 0 : i32
      %473 = tpu.memref_slice %arg2[%arg0, %c0_i32_172, %c0_i32_173] : memref<2x8x2048xf32, #tpu.memory_space<any>> -> memref<1x8x1664xf32, #tpu.memory_space<any>>
      %474 = tpu.memref_squeeze %473 : memref<1x8x1664xf32, #tpu.memory_space<any>> -> memref<8x1664xf32, #tpu.memory_space<any>>
      %c0_i32_174 = arith.constant 0 : i32
      %c0_i32_175 = arith.constant 0 : i32
      %475 = tpu.memref_slice %arg14[%c0_i32_170, %c0_i32_174, %c0_i32_175] : memref<2x8x1664xf32, #tpu.memory_space<vmem>> -> memref<1x8x1664xf32, #tpu.memory_space<vmem>>
      %476 = tpu.memref_squeeze %475 : memref<1x8x1664xf32, #tpu.memory_space<vmem>> -> memref<8x1664xf32, #tpu.memory_space<vmem>>
      %477 = tpu.memref_slice %arg16[%c0_i32_171] : memref<2x!tpu.dma_semaphore, #tpu.memory_space<semaphore_mem>> -> memref<1x!tpu.dma_semaphore, #tpu.memory_space<semaphore_mem>>
      %478 = tpu.memref_squeeze %477 : memref<1x!tpu.dma_semaphore, #tpu.memory_space<semaphore_mem>> -> memref<!tpu.dma_semaphore, #tpu.memory_space<semaphore_mem>>
      tpu.enqueue_dma source(%474 : memref<8x1664xf32, #tpu.memory_space<any>>) target(%476 : memref<8x1664xf32, #tpu.memory_space<vmem>>) target_semaphore(%478 : memref<!tpu.dma_semaphore, #tpu.memory_space<semaphore_mem>>)
    } else {
    }
    %c2_i32 = arith.constant 2 : i32
    %c0_i32_1 = arith.constant 0 : i32
    %3 = arith.cmpi eq, %c2_i32, %c0_i32_1 : i32
    %c1_i32 = arith.constant 1 : i32
    %4 = arith.select %3, %c1_i32, %c2_i32 : i32
    %5 = arith.remsi %arg1, %4 : i32
    %c0_i32_2 = arith.constant 0 : i32
    %6 = arith.cmpi ne, %5, %c0_i32_2 : i32
    %c0_i32_3 = arith.constant 0 : i32
    %7 = arith.cmpi slt, %5, %c0_i32_3 : i32
    %c0_i32_4 = arith.constant 0 : i32
    %8 = arith.cmpi slt, %4, %c0_i32_4 : i32
    %9 = arith.xori %7, %8 : i1
    %10 = arith.andi %9, %6 : i1
    %11 = arith.addi %5, %4 : i32
    %12 = arith.select %10, %11, %5 : i32
    %c0_i32_5 = arith.constant 0 : i32
    %c0_i32_6 = arith.constant 0 : i32
    %13 = tpu.memref_slice %arg2[%arg0, %c0_i32_5, %c0_i32_6] : memref<2x8x2048xf32, #tpu.memory_space<any>> -> memref<1x8x1664xf32, #tpu.memory_space<any>>
    %14 = tpu.memref_squeeze %13 : memref<1x8x1664xf32, #tpu.memory_space<any>> -> memref<8x1664xf32, #tpu.memory_space<any>>
    %c0_i32_7 = arith.constant 0 : i32
    %c0_i32_8 = arith.constant 0 : i32
    %15 = tpu.memref_slice %arg14[%12, %c0_i32_7, %c0_i32_8] : memref<2x8x1664xf32, #tpu.memory_space<vmem>> -> memref<1x8x1664xf32, #tpu.memory_space<vmem>>
    %16 = tpu.memref_squeeze %15 : memref<1x8x1664xf32, #tpu.memory_space<vmem>> -> memref<8x1664xf32, #tpu.memory_space<vmem>>
    %17 = tpu.memref_slice %arg16[%12] : memref<2x!tpu.dma_semaphore, #tpu.memory_space<semaphore_mem>> -> memref<1x!tpu.dma_semaphore, #tpu.memory_space<semaphore_mem>>
    %18 = tpu.memref_squeeze %17 : memref<1x!tpu.dma_semaphore, #tpu.memory_space<semaphore_mem>> -> memref<!tpu.dma_semaphore, #tpu.memory_space<semaphore_mem>>
    tpu.wait_dma2 semaphore(%18 : memref<!tpu.dma_semaphore, #tpu.memory_space<semaphore_mem>>) src(%14 : memref<8x1664xf32, #tpu.memory_space<any>>) dst(%16 : memref<8x1664xf32, #tpu.memory_space<vmem>>)
    %c1_i32_9 = arith.constant 1 : i32
    %19 = arith.addi %arg1, %c1_i32_9 : i32
    %c2_i32_10 = arith.constant 2 : i32
    %20 = arith.cmpi slt, %19, %c2_i32_10 : i32
    %21 = arith.extui %20 : i1 to i32
    %c0_i32_11 = arith.constant 0 : i32
    %22 = arith.cmpi ne, %21, %c0_i32_11 : i32
    scf.if %22 {
      %c1_i32_170 = arith.constant 1 : i32
      %473 = arith.addi %arg1, %c1_i32_170 : i32
      %c384_i32 = arith.constant 384 : i32
      %474 = arith.muli %473, %c384_i32 : i32
      %c1_i32_171 = arith.constant 1 : i32
      %475 = arith.subi %c1_i32_171, %12 : i32
      %c0_i32_172 = arith.constant 0 : i32
      %476 = tpu.memref_slice %arg2[%arg0, %c0_i32_172, %474] : memref<2x8x2048xf32, #tpu.memory_space<any>> -> memref<1x8x1664xf32, #tpu.memory_space<any>>
      %477 = tpu.memref_squeeze %476 : memref<1x8x1664xf32, #tpu.memory_space<any>> -> memref<8x1664xf32, #tpu.memory_space<any>>
      %c0_i32_173 = arith.constant 0 : i32
      %c0_i32_174 = arith.constant 0 : i32
      %478 = tpu.memref_slice %arg14[%475, %c0_i32_173, %c0_i32_174] : memref<2x8x1664xf32, #tpu.memory_space<vmem>> -> memref<1x8x1664xf32, #tpu.memory_space<vmem>>
      %479 = tpu.memref_squeeze %478 : memref<1x8x1664xf32, #tpu.memory_space<vmem>> -> memref<8x1664xf32, #tpu.memory_space<vmem>>
      %480 = tpu.memref_slice %arg16[%475] : memref<2x!tpu.dma_semaphore, #tpu.memory_space<semaphore_mem>> -> memref<1x!tpu.dma_semaphore, #tpu.memory_space<semaphore_mem>>
      %481 = tpu.memref_squeeze %480 : memref<1x!tpu.dma_semaphore, #tpu.memory_space<semaphore_mem>> -> memref<!tpu.dma_semaphore, #tpu.memory_space<semaphore_mem>>
      tpu.enqueue_dma source(%477 : memref<8x1664xf32, #tpu.memory_space<any>>) target(%479 : memref<8x1664xf32, #tpu.memory_space<vmem>>) target_semaphore(%481 : memref<!tpu.dma_semaphore, #tpu.memory_space<semaphore_mem>>)
    } else {
    }
    %c0 = arith.constant 0 : index
    %c0_12 = arith.constant 0 : index
    %23 = vector.load %arg4[%c0, %c0_12] : memref<8x25xf32, #tpu.memory_space<vmem>>, vector<8x25xf32>
    %c0_13 = arith.constant 0 : index
    %c0_14 = arith.constant 0 : index
    %24 = vector.load %arg6[%c0_13, %c0_14] : memref<8x49xf32, #tpu.memory_space<vmem>>, vector<8x49xf32>
    %c0_15 = arith.constant 0 : index
    %c0_16 = arith.constant 0 : index
    %25 = vector.load %arg5[%c0_15, %c0_16] : memref<8x1xf32, #tpu.memory_space<vmem>>, vector<8x1xf32>
    %c0_17 = arith.constant 0 : index
    %c0_18 = arith.constant 0 : index
    %26 = vector.load %arg7[%c0_17, %c0_18] : memref<8x1xf32, #tpu.memory_space<vmem>>, vector<8x1xf32>
    %c0_19 = arith.constant 0 : index
    %c0_20 = arith.constant 0 : index
    %c0_21 = arith.constant 0 : index
    %27 = vector.load %arg3[%c0_19, %c0_20, %c0_21] : memref<1x1x1408xf32, #tpu.memory_space<vmem>>, vector<1x1x1408xf32>
    %28 = vector.shape_cast %27 : vector<1x1x1408xf32> to vector<1x1408xf32>
    %c0_i32_22 = arith.constant 0 : i32
    %c0_i32_23 = arith.constant 0 : i32
    %29 = tpu.memref_slice %arg14[%12, %c0_i32_22, %c0_i32_23] : memref<2x8x1664xf32, #tpu.memory_space<vmem>> -> memref<1x8x1664xf32, #tpu.memory_space<vmem>>
    %30 = tpu.memref_squeeze %29 : memref<1x8x1664xf32, #tpu.memory_space<vmem>> -> memref<8x1664xf32, #tpu.memory_space<vmem>>
    %c0_24 = arith.constant 0 : index
    %c0_25 = arith.constant 0 : index
    %31 = vector.load %30[%c0_24, %c0_25] : memref<8x1664xf32, #tpu.memory_space<vmem>>, vector<8x1408xf32>
    %32 = vector.extract_strided_slice %23 {offsets = [0, 0], sizes = [8, 1], strides = [1, 1]} : vector<8x25xf32> to vector<8x1xf32>
    %33 = vector.broadcast %32 : vector<8x1xf32> to vector<8x1408xf32>
    %34 = arith.mulf %31, %33 : vector<8x1408xf32>
    %c0_i32_26 = arith.constant 0 : i32
    %c0_i32_27 = arith.constant 0 : i32
    %35 = tpu.memref_slice %arg14[%12, %c0_i32_26, %c0_i32_27] : memref<2x8x1664xf32, #tpu.memory_space<vmem>> -> memref<1x8x1664xf32, #tpu.memory_space<vmem>>
    %36 = tpu.memref_squeeze %35 : memref<1x8x1664xf32, #tpu.memory_space<vmem>> -> memref<8x1664xf32, #tpu.memory_space<vmem>>
    %c0_28 = arith.constant 0 : index
    %c1 = arith.constant 1 : index
    %37 = vector.load %36[%c0_28, %c1] : memref<8x1664xf32, #tpu.memory_space<vmem>>, vector<8x1408xf32>
    %38 = vector.extract_strided_slice %23 {offsets = [0, 1], sizes = [8, 1], strides = [1, 1]} : vector<8x25xf32> to vector<8x1xf32>
    %39 = vector.broadcast %38 : vector<8x1xf32> to vector<8x1408xf32>
    %40 = arith.mulf %37, %39 : vector<8x1408xf32>
    %41 = arith.addf %34, %40 : vector<8x1408xf32>
    %c0_i32_29 = arith.constant 0 : i32
    %c0_i32_30 = arith.constant 0 : i32
    %42 = tpu.memref_slice %arg14[%12, %c0_i32_29, %c0_i32_30] : memref<2x8x1664xf32, #tpu.memory_space<vmem>> -> memref<1x8x1664xf32, #tpu.memory_space<vmem>>
    %43 = tpu.memref_squeeze %42 : memref<1x8x1664xf32, #tpu.memory_space<vmem>> -> memref<8x1664xf32, #tpu.memory_space<vmem>>
    %c0_31 = arith.constant 0 : index
    %c2 = arith.constant 2 : index
    %44 = vector.load %43[%c0_31, %c2] : memref<8x1664xf32, #tpu.memory_space<vmem>>, vector<8x1408xf32>
    %45 = vector.extract_strided_slice %23 {offsets = [0, 2], sizes = [8, 1], strides = [1, 1]} : vector<8x25xf32> to vector<8x1xf32>
    %46 = vector.broadcast %45 : vector<8x1xf32> to vector<8x1408xf32>
    %47 = arith.mulf %44, %46 : vector<8x1408xf32>
    %48 = arith.addf %41, %47 : vector<8x1408xf32>
    %c0_i32_32 = arith.constant 0 : i32
    %c0_i32_33 = arith.constant 0 : i32
    %49 = tpu.memref_slice %arg14[%12, %c0_i32_32, %c0_i32_33] : memref<2x8x1664xf32, #tpu.memory_space<vmem>> -> memref<1x8x1664xf32, #tpu.memory_space<vmem>>
    %50 = tpu.memref_squeeze %49 : memref<1x8x1664xf32, #tpu.memory_space<vmem>> -> memref<8x1664xf32, #tpu.memory_space<vmem>>
    %c0_34 = arith.constant 0 : index
    %c3 = arith.constant 3 : index
    %51 = vector.load %50[%c0_34, %c3] : memref<8x1664xf32, #tpu.memory_space<vmem>>, vector<8x1408xf32>
    %52 = vector.extract_strided_slice %23 {offsets = [0, 3], sizes = [8, 1], strides = [1, 1]} : vector<8x25xf32> to vector<8x1xf32>
    %53 = vector.broadcast %52 : vector<8x1xf32> to vector<8x1408xf32>
    %54 = arith.mulf %51, %53 : vector<8x1408xf32>
    %55 = arith.addf %48, %54 : vector<8x1408xf32>
    %c0_i32_35 = arith.constant 0 : i32
    %c0_i32_36 = arith.constant 0 : i32
    %56 = tpu.memref_slice %arg14[%12, %c0_i32_35, %c0_i32_36] : memref<2x8x1664xf32, #tpu.memory_space<vmem>> -> memref<1x8x1664xf32, #tpu.memory_space<vmem>>
    %57 = tpu.memref_squeeze %56 : memref<1x8x1664xf32, #tpu.memory_space<vmem>> -> memref<8x1664xf32, #tpu.memory_space<vmem>>
    %c0_37 = arith.constant 0 : index
    %c4 = arith.constant 4 : index
    %58 = vector.load %57[%c0_37, %c4] : memref<8x1664xf32, #tpu.memory_space<vmem>>, vector<8x1408xf32>
    %59 = vector.extract_strided_slice %23 {offsets = [0, 4], sizes = [8, 1], strides = [1, 1]} : vector<8x25xf32> to vector<8x1xf32>
    %60 = vector.broadcast %59 : vector<8x1xf32> to vector<8x1408xf32>
    %61 = arith.mulf %58, %60 : vector<8x1408xf32>
    %62 = arith.addf %55, %61 : vector<8x1408xf32>
    %c0_i32_38 = arith.constant 0 : i32
    %c0_i32_39 = arith.constant 0 : i32
    %63 = tpu.memref_slice %arg14[%12, %c0_i32_38, %c0_i32_39] : memref<2x8x1664xf32, #tpu.memory_space<vmem>> -> memref<1x8x1664xf32, #tpu.memory_space<vmem>>
    %64 = tpu.memref_squeeze %63 : memref<1x8x1664xf32, #tpu.memory_space<vmem>> -> memref<8x1664xf32, #tpu.memory_space<vmem>>
    %c0_40 = arith.constant 0 : index
    %c48 = arith.constant 48 : index
    %65 = vector.load %64[%c0_40, %c48] : memref<8x1664xf32, #tpu.memory_space<vmem>>, vector<8x1408xf32>
    %66 = vector.extract_strided_slice %23 {offsets = [0, 5], sizes = [8, 1], strides = [1, 1]} : vector<8x25xf32> to vector<8x1xf32>
    %67 = vector.broadcast %66 : vector<8x1xf32> to vector<8x1408xf32>
    %68 = arith.mulf %65, %67 : vector<8x1408xf32>
    %69 = arith.addf %62, %68 : vector<8x1408xf32>
    %c0_i32_41 = arith.constant 0 : i32
    %c0_i32_42 = arith.constant 0 : i32
    %70 = tpu.memref_slice %arg14[%12, %c0_i32_41, %c0_i32_42] : memref<2x8x1664xf32, #tpu.memory_space<vmem>> -> memref<1x8x1664xf32, #tpu.memory_space<vmem>>
    %71 = tpu.memref_squeeze %70 : memref<1x8x1664xf32, #tpu.memory_space<vmem>> -> memref<8x1664xf32, #tpu.memory_space<vmem>>
    %c0_43 = arith.constant 0 : index
    %c49 = arith.constant 49 : index
    %72 = vector.load %71[%c0_43, %c49] : memref<8x1664xf32, #tpu.memory_space<vmem>>, vector<8x1408xf32>
    %73 = vector.extract_strided_slice %23 {offsets = [0, 6], sizes = [8, 1], strides = [1, 1]} : vector<8x25xf32> to vector<8x1xf32>
    %74 = vector.broadcast %73 : vector<8x1xf32> to vector<8x1408xf32>
    %75 = arith.mulf %72, %74 : vector<8x1408xf32>
    %76 = arith.addf %69, %75 : vector<8x1408xf32>
    %c0_i32_44 = arith.constant 0 : i32
    %c0_i32_45 = arith.constant 0 : i32
    %77 = tpu.memref_slice %arg14[%12, %c0_i32_44, %c0_i32_45] : memref<2x8x1664xf32, #tpu.memory_space<vmem>> -> memref<1x8x1664xf32, #tpu.memory_space<vmem>>
    %78 = tpu.memref_squeeze %77 : memref<1x8x1664xf32, #tpu.memory_space<vmem>> -> memref<8x1664xf32, #tpu.memory_space<vmem>>
    %c0_46 = arith.constant 0 : index
    %c50 = arith.constant 50 : index
    %79 = vector.load %78[%c0_46, %c50] : memref<8x1664xf32, #tpu.memory_space<vmem>>, vector<8x1408xf32>
    %80 = vector.extract_strided_slice %23 {offsets = [0, 7], sizes = [8, 1], strides = [1, 1]} : vector<8x25xf32> to vector<8x1xf32>
    %81 = vector.broadcast %80 : vector<8x1xf32> to vector<8x1408xf32>
    %82 = arith.mulf %79, %81 : vector<8x1408xf32>
    %83 = arith.addf %76, %82 : vector<8x1408xf32>
    %c0_i32_47 = arith.constant 0 : i32
    %c0_i32_48 = arith.constant 0 : i32
    %84 = tpu.memref_slice %arg14[%12, %c0_i32_47, %c0_i32_48] : memref<2x8x1664xf32, #tpu.memory_space<vmem>> -> memref<1x8x1664xf32, #tpu.memory_space<vmem>>
    %85 = tpu.memref_squeeze %84 : memref<1x8x1664xf32, #tpu.memory_space<vmem>> -> memref<8x1664xf32, #tpu.memory_space<vmem>>
    %c0_49 = arith.constant 0 : index
    %c51 = arith.constant 51 : index
    %86 = vector.load %85[%c0_49, %c51] : memref<8x1664xf32, #tpu.memory_space<vmem>>, vector<8x1408xf32>
    %87 = vector.extract_strided_slice %23 {offsets = [0, 8], sizes = [8, 1], strides = [1, 1]} : vector<8x25xf32> to vector<8x1xf32>
    %88 = vector.broadcast %87 : vector<8x1xf32> to vector<8x1408xf32>
    %89 = arith.mulf %86, %88 : vector<8x1408xf32>
    %90 = arith.addf %83, %89 : vector<8x1408xf32>
    %c0_i32_50 = arith.constant 0 : i32
    %c0_i32_51 = arith.constant 0 : i32
    %91 = tpu.memref_slice %arg14[%12, %c0_i32_50, %c0_i32_51] : memref<2x8x1664xf32, #tpu.memory_space<vmem>> -> memref<1x8x1664xf32, #tpu.memory_space<vmem>>
    %92 = tpu.memref_squeeze %91 : memref<1x8x1664xf32, #tpu.memory_space<vmem>> -> memref<8x1664xf32, #tpu.memory_space<vmem>>
    %c0_52 = arith.constant 0 : index
    %c52 = arith.constant 52 : index
    %93 = vector.load %92[%c0_52, %c52] : memref<8x1664xf32, #tpu.memory_space<vmem>>, vector<8x1408xf32>
    %94 = vector.extract_strided_slice %23 {offsets = [0, 9], sizes = [8, 1], strides = [1, 1]} : vector<8x25xf32> to vector<8x1xf32>
    %95 = vector.broadcast %94 : vector<8x1xf32> to vector<8x1408xf32>
    %96 = arith.mulf %93, %95 : vector<8x1408xf32>
    %97 = arith.addf %90, %96 : vector<8x1408xf32>
    %c0_i32_53 = arith.constant 0 : i32
    %c0_i32_54 = arith.constant 0 : i32
    %98 = tpu.memref_slice %arg14[%12, %c0_i32_53, %c0_i32_54] : memref<2x8x1664xf32, #tpu.memory_space<vmem>> -> memref<1x8x1664xf32, #tpu.memory_space<vmem>>
    %99 = tpu.memref_squeeze %98 : memref<1x8x1664xf32, #tpu.memory_space<vmem>> -> memref<8x1664xf32, #tpu.memory_space<vmem>>
    %c0_55 = arith.constant 0 : index
    %c96 = arith.constant 96 : index
    %100 = vector.load %99[%c0_55, %c96] : memref<8x1664xf32, #tpu.memory_space<vmem>>, vector<8x1408xf32>
    %101 = vector.extract_strided_slice %23 {offsets = [0, 10], sizes = [8, 1], strides = [1, 1]} : vector<8x25xf32> to vector<8x1xf32>
    %102 = vector.broadcast %101 : vector<8x1xf32> to vector<8x1408xf32>
    %103 = arith.mulf %100, %102 : vector<8x1408xf32>
    %104 = arith.addf %97, %103 : vector<8x1408xf32>
    %c0_i32_56 = arith.constant 0 : i32
    %c0_i32_57 = arith.constant 0 : i32
    %105 = tpu.memref_slice %arg14[%12, %c0_i32_56, %c0_i32_57] : memref<2x8x1664xf32, #tpu.memory_space<vmem>> -> memref<1x8x1664xf32, #tpu.memory_space<vmem>>
    %106 = tpu.memref_squeeze %105 : memref<1x8x1664xf32, #tpu.memory_space<vmem>> -> memref<8x1664xf32, #tpu.memory_space<vmem>>
    %c0_58 = arith.constant 0 : index
    %c97 = arith.constant 97 : index
    %107 = vector.load %106[%c0_58, %c97] : memref<8x1664xf32, #tpu.memory_space<vmem>>, vector<8x1408xf32>
    %108 = vector.extract_strided_slice %23 {offsets = [0, 11], sizes = [8, 1], strides = [1, 1]} : vector<8x25xf32> to vector<8x1xf32>
    %109 = vector.broadcast %108 : vector<8x1xf32> to vector<8x1408xf32>
    %110 = arith.mulf %107, %109 : vector<8x1408xf32>
    %111 = arith.addf %104, %110 : vector<8x1408xf32>
    %c0_i32_59 = arith.constant 0 : i32
    %c0_i32_60 = arith.constant 0 : i32
    %112 = tpu.memref_slice %arg14[%12, %c0_i32_59, %c0_i32_60] : memref<2x8x1664xf32, #tpu.memory_space<vmem>> -> memref<1x8x1664xf32, #tpu.memory_space<vmem>>
    %113 = tpu.memref_squeeze %112 : memref<1x8x1664xf32, #tpu.memory_space<vmem>> -> memref<8x1664xf32, #tpu.memory_space<vmem>>
    %c0_61 = arith.constant 0 : index
    %c98 = arith.constant 98 : index
    %114 = vector.load %113[%c0_61, %c98] : memref<8x1664xf32, #tpu.memory_space<vmem>>, vector<8x1408xf32>
    %115 = vector.extract_strided_slice %23 {offsets = [0, 12], sizes = [8, 1], strides = [1, 1]} : vector<8x25xf32> to vector<8x1xf32>
    %116 = vector.broadcast %115 : vector<8x1xf32> to vector<8x1408xf32>
    %117 = arith.mulf %114, %116 : vector<8x1408xf32>
    %118 = arith.addf %111, %117 : vector<8x1408xf32>
    %c0_i32_62 = arith.constant 0 : i32
    %c0_i32_63 = arith.constant 0 : i32
    %119 = tpu.memref_slice %arg14[%12, %c0_i32_62, %c0_i32_63] : memref<2x8x1664xf32, #tpu.memory_space<vmem>> -> memref<1x8x1664xf32, #tpu.memory_space<vmem>>
    %120 = tpu.memref_squeeze %119 : memref<1x8x1664xf32, #tpu.memory_space<vmem>> -> memref<8x1664xf32, #tpu.memory_space<vmem>>
    %c0_64 = arith.constant 0 : index
    %c99 = arith.constant 99 : index
    %121 = vector.load %120[%c0_64, %c99] : memref<8x1664xf32, #tpu.memory_space<vmem>>, vector<8x1408xf32>
    %122 = vector.extract_strided_slice %23 {offsets = [0, 13], sizes = [8, 1], strides = [1, 1]} : vector<8x25xf32> to vector<8x1xf32>
    %123 = vector.broadcast %122 : vector<8x1xf32> to vector<8x1408xf32>
    %124 = arith.mulf %121, %123 : vector<8x1408xf32>
    %125 = arith.addf %118, %124 : vector<8x1408xf32>
    %c0_i32_65 = arith.constant 0 : i32
    %c0_i32_66 = arith.constant 0 : i32
    %126 = tpu.memref_slice %arg14[%12, %c0_i32_65, %c0_i32_66] : memref<2x8x1664xf32, #tpu.memory_space<vmem>> -> memref<1x8x1664xf32, #tpu.memory_space<vmem>>
    %127 = tpu.memref_squeeze %126 : memref<1x8x1664xf32, #tpu.memory_space<vmem>> -> memref<8x1664xf32, #tpu.memory_space<vmem>>
    %c0_67 = arith.constant 0 : index
    %c100 = arith.constant 100 : index
    %128 = vector.load %127[%c0_67, %c100] : memref<8x1664xf32, #tpu.memory_space<vmem>>, vector<8x1408xf32>
    %129 = vector.extract_strided_slice %23 {offsets = [0, 14], sizes = [8, 1], strides = [1, 1]} : vector<8x25xf32> to vector<8x1xf32>
    %130 = vector.broadcast %129 : vector<8x1xf32> to vector<8x1408xf32>
    %131 = arith.mulf %128, %130 : vector<8x1408xf32>
    %132 = arith.addf %125, %131 : vector<8x1408xf32>
    %c0_i32_68 = arith.constant 0 : i32
    %c0_i32_69 = arith.constant 0 : i32
    %133 = tpu.memref_slice %arg14[%12, %c0_i32_68, %c0_i32_69] : memref<2x8x1664xf32, #tpu.memory_space<vmem>> -> memref<1x8x1664xf32, #tpu.memory_space<vmem>>
    %134 = tpu.memref_squeeze %133 : memref<1x8x1664xf32, #tpu.memory_space<vmem>> -> memref<8x1664xf32, #tpu.memory_space<vmem>>
    %c0_70 = arith.constant 0 : index
    %c144 = arith.constant 144 : index
    %135 = vector.load %134[%c0_70, %c144] : memref<8x1664xf32, #tpu.memory_space<vmem>>, vector<8x1408xf32>
    %136 = vector.extract_strided_slice %23 {offsets = [0, 15], sizes = [8, 1], strides = [1, 1]} : vector<8x25xf32> to vector<8x1xf32>
    %137 = vector.broadcast %136 : vector<8x1xf32> to vector<8x1408xf32>
    %138 = arith.mulf %135, %137 : vector<8x1408xf32>
    %139 = arith.addf %132, %138 : vector<8x1408xf32>
    %c0_i32_71 = arith.constant 0 : i32
    %c0_i32_72 = arith.constant 0 : i32
    %140 = tpu.memref_slice %arg14[%12, %c0_i32_71, %c0_i32_72] : memref<2x8x1664xf32, #tpu.memory_space<vmem>> -> memref<1x8x1664xf32, #tpu.memory_space<vmem>>
    %141 = tpu.memref_squeeze %140 : memref<1x8x1664xf32, #tpu.memory_space<vmem>> -> memref<8x1664xf32, #tpu.memory_space<vmem>>
    %c0_73 = arith.constant 0 : index
    %c145 = arith.constant 145 : index
    %142 = vector.load %141[%c0_73, %c145] : memref<8x1664xf32, #tpu.memory_space<vmem>>, vector<8x1408xf32>
    %143 = vector.extract_strided_slice %23 {offsets = [0, 16], sizes = [8, 1], strides = [1, 1]} : vector<8x25xf32> to vector<8x1xf32>
    %144 = vector.broadcast %143 : vector<8x1xf32> to vector<8x1408xf32>
    %145 = arith.mulf %142, %144 : vector<8x1408xf32>
    %146 = arith.addf %139, %145 : vector<8x1408xf32>
    %c0_i32_74 = arith.constant 0 : i32
    %c0_i32_75 = arith.constant 0 : i32
    %147 = tpu.memref_slice %arg14[%12, %c0_i32_74, %c0_i32_75] : memref<2x8x1664xf32, #tpu.memory_space<vmem>> -> memref<1x8x1664xf32, #tpu.memory_space<vmem>>
    %148 = tpu.memref_squeeze %147 : memref<1x8x1664xf32, #tpu.memory_space<vmem>> -> memref<8x1664xf32, #tpu.memory_space<vmem>>
    %c0_76 = arith.constant 0 : index
    %c146 = arith.constant 146 : index
    %149 = vector.load %148[%c0_76, %c146] : memref<8x1664xf32, #tpu.memory_space<vmem>>, vector<8x1408xf32>
    %150 = vector.extract_strided_slice %23 {offsets = [0, 17], sizes = [8, 1], strides = [1, 1]} : vector<8x25xf32> to vector<8x1xf32>
    %151 = vector.broadcast %150 : vector<8x1xf32> to vector<8x1408xf32>
    %152 = arith.mulf %149, %151 : vector<8x1408xf32>
    %153 = arith.addf %146, %152 : vector<8x1408xf32>
    %c0_i32_77 = arith.constant 0 : i32
    %c0_i32_78 = arith.constant 0 : i32
    %154 = tpu.memref_slice %arg14[%12, %c0_i32_77, %c0_i32_78] : memref<2x8x1664xf32, #tpu.memory_space<vmem>> -> memref<1x8x1664xf32, #tpu.memory_space<vmem>>
    %155 = tpu.memref_squeeze %154 : memref<1x8x1664xf32, #tpu.memory_space<vmem>> -> memref<8x1664xf32, #tpu.memory_space<vmem>>
    %c0_79 = arith.constant 0 : index
    %c147 = arith.constant 147 : index
    %156 = vector.load %155[%c0_79, %c147] : memref<8x1664xf32, #tpu.memory_space<vmem>>, vector<8x1408xf32>
    %157 = vector.extract_strided_slice %23 {offsets = [0, 18], sizes = [8, 1], strides = [1, 1]} : vector<8x25xf32> to vector<8x1xf32>
    %158 = vector.broadcast %157 : vector<8x1xf32> to vector<8x1408xf32>
    %159 = arith.mulf %156, %158 : vector<8x1408xf32>
    %160 = arith.addf %153, %159 : vector<8x1408xf32>
    %c0_i32_80 = arith.constant 0 : i32
    %c0_i32_81 = arith.constant 0 : i32
    %161 = tpu.memref_slice %arg14[%12, %c0_i32_80, %c0_i32_81] : memref<2x8x1664xf32, #tpu.memory_space<vmem>> -> memref<1x8x1664xf32, #tpu.memory_space<vmem>>
    %162 = tpu.memref_squeeze %161 : memref<1x8x1664xf32, #tpu.memory_space<vmem>> -> memref<8x1664xf32, #tpu.memory_space<vmem>>
    %c0_82 = arith.constant 0 : index
    %c148 = arith.constant 148 : index
    %163 = vector.load %162[%c0_82, %c148] : memref<8x1664xf32, #tpu.memory_space<vmem>>, vector<8x1408xf32>
    %164 = vector.extract_strided_slice %23 {offsets = [0, 19], sizes = [8, 1], strides = [1, 1]} : vector<8x25xf32> to vector<8x1xf32>
    %165 = vector.broadcast %164 : vector<8x1xf32> to vector<8x1408xf32>
    %166 = arith.mulf %163, %165 : vector<8x1408xf32>
    %167 = arith.addf %160, %166 : vector<8x1408xf32>
    %c0_i32_83 = arith.constant 0 : i32
    %c0_i32_84 = arith.constant 0 : i32
    %168 = tpu.memref_slice %arg14[%12, %c0_i32_83, %c0_i32_84] : memref<2x8x1664xf32, #tpu.memory_space<vmem>> -> memref<1x8x1664xf32, #tpu.memory_space<vmem>>
    %169 = tpu.memref_squeeze %168 : memref<1x8x1664xf32, #tpu.memory_space<vmem>> -> memref<8x1664xf32, #tpu.memory_space<vmem>>
    %c0_85 = arith.constant 0 : index
    %c192 = arith.constant 192 : index
    %170 = vector.load %169[%c0_85, %c192] : memref<8x1664xf32, #tpu.memory_space<vmem>>, vector<8x1408xf32>
    %171 = vector.extract_strided_slice %23 {offsets = [0, 20], sizes = [8, 1], strides = [1, 1]} : vector<8x25xf32> to vector<8x1xf32>
    %172 = vector.broadcast %171 : vector<8x1xf32> to vector<8x1408xf32>
    %173 = arith.mulf %170, %172 : vector<8x1408xf32>
    %174 = arith.addf %167, %173 : vector<8x1408xf32>
    %c0_i32_86 = arith.constant 0 : i32
    %c0_i32_87 = arith.constant 0 : i32
    %175 = tpu.memref_slice %arg14[%12, %c0_i32_86, %c0_i32_87] : memref<2x8x1664xf32, #tpu.memory_space<vmem>> -> memref<1x8x1664xf32, #tpu.memory_space<vmem>>
    %176 = tpu.memref_squeeze %175 : memref<1x8x1664xf32, #tpu.memory_space<vmem>> -> memref<8x1664xf32, #tpu.memory_space<vmem>>
    %c0_88 = arith.constant 0 : index
    %c193 = arith.constant 193 : index
    %177 = vector.load %176[%c0_88, %c193] : memref<8x1664xf32, #tpu.memory_space<vmem>>, vector<8x1408xf32>
    %178 = vector.extract_strided_slice %23 {offsets = [0, 21], sizes = [8, 1], strides = [1, 1]} : vector<8x25xf32> to vector<8x1xf32>
    %179 = vector.broadcast %178 : vector<8x1xf32> to vector<8x1408xf32>
    %180 = arith.mulf %177, %179 : vector<8x1408xf32>
    %181 = arith.addf %174, %180 : vector<8x1408xf32>
    %c0_i32_89 = arith.constant 0 : i32
    %c0_i32_90 = arith.constant 0 : i32
    %182 = tpu.memref_slice %arg14[%12, %c0_i32_89, %c0_i32_90] : memref<2x8x1664xf32, #tpu.memory_space<vmem>> -> memref<1x8x1664xf32, #tpu.memory_space<vmem>>
    %183 = tpu.memref_squeeze %182 : memref<1x8x1664xf32, #tpu.memory_space<vmem>> -> memref<8x1664xf32, #tpu.memory_space<vmem>>
    %c0_91 = arith.constant 0 : index
    %c194 = arith.constant 194 : index
    %184 = vector.load %183[%c0_91, %c194] : memref<8x1664xf32, #tpu.memory_space<vmem>>, vector<8x1408xf32>
    %185 = vector.extract_strided_slice %23 {offsets = [0, 22], sizes = [8, 1], strides = [1, 1]} : vector<8x25xf32> to vector<8x1xf32>
    %186 = vector.broadcast %185 : vector<8x1xf32> to vector<8x1408xf32>
    %187 = arith.mulf %184, %186 : vector<8x1408xf32>
    %188 = arith.addf %181, %187 : vector<8x1408xf32>
    %c0_i32_92 = arith.constant 0 : i32
    %c0_i32_93 = arith.constant 0 : i32
    %189 = tpu.memref_slice %arg14[%12, %c0_i32_92, %c0_i32_93] : memref<2x8x1664xf32, #tpu.memory_space<vmem>> -> memref<1x8x1664xf32, #tpu.memory_space<vmem>>
    %190 = tpu.memref_squeeze %189 : memref<1x8x1664xf32, #tpu.memory_space<vmem>> -> memref<8x1664xf32, #tpu.memory_space<vmem>>
    %c0_94 = arith.constant 0 : index
    %c195 = arith.constant 195 : index
    %191 = vector.load %190[%c0_94, %c195] : memref<8x1664xf32, #tpu.memory_space<vmem>>, vector<8x1408xf32>
    %192 = vector.extract_strided_slice %23 {offsets = [0, 23], sizes = [8, 1], strides = [1, 1]} : vector<8x25xf32> to vector<8x1xf32>
    %193 = vector.broadcast %192 : vector<8x1xf32> to vector<8x1408xf32>
    %194 = arith.mulf %191, %193 : vector<8x1408xf32>
    %195 = arith.addf %188, %194 : vector<8x1408xf32>
    %c0_i32_95 = arith.constant 0 : i32
    %c0_i32_96 = arith.constant 0 : i32
    %196 = tpu.memref_slice %arg14[%12, %c0_i32_95, %c0_i32_96] : memref<2x8x1664xf32, #tpu.memory_space<vmem>> -> memref<1x8x1664xf32, #tpu.memory_space<vmem>>
    %197 = tpu.memref_squeeze %196 : memref<1x8x1664xf32, #tpu.memory_space<vmem>> -> memref<8x1664xf32, #tpu.memory_space<vmem>>
    %c0_97 = arith.constant 0 : index
    %c196 = arith.constant 196 : index
    %198 = vector.load %197[%c0_97, %c196] : memref<8x1664xf32, #tpu.memory_space<vmem>>, vector<8x1408xf32>
    %199 = vector.extract_strided_slice %23 {offsets = [0, 24], sizes = [8, 1], strides = [1, 1]} : vector<8x25xf32> to vector<8x1xf32>
    %200 = vector.broadcast %199 : vector<8x1xf32> to vector<8x1408xf32>
    %201 = arith.mulf %198, %200 : vector<8x1408xf32>
    %202 = arith.addf %195, %201 : vector<8x1408xf32>
    %203 = vector.broadcast %25 : vector<8x1xf32> to vector<8x1408xf32>
    %204 = arith.addf %202, %203 : vector<8x1408xf32>
    %205 = vector.broadcast %28 : vector<1x1408xf32> to vector<8x1408xf32>
    %206 = arith.mulf %204, %205 : vector<8x1408xf32>
    %c0_98 = arith.constant 0 : index
    %c0_99 = arith.constant 0 : index
    %207 = vector.load %arg15[%c0_98, %c0_99] : memref<8x1408xf32, #tpu.memory_space<vmem>>, vector<8x1408xf32>
    tpu.vector_store %arg15[%c0_98, %c0_99], %206 {strides = array<i32>} : memref<8x1408xf32, #tpu.memory_space<vmem>>, vector<8x1408xf32>,
    %c0_100 = arith.constant 0 : index
    %c0_101 = arith.constant 0 : index
    %208 = vector.load %arg15[%c0_100, %c0_101] : memref<8x1408xf32, #tpu.memory_space<vmem>>, vector<8x384xf32>
    %209 = vector.extract_strided_slice %24 {offsets = [0, 0], sizes = [8, 1], strides = [1, 1]} : vector<8x49xf32> to vector<8x1xf32>
    %210 = vector.broadcast %209 : vector<8x1xf32> to vector<8x384xf32>
    %211 = arith.mulf %208, %210 : vector<8x384xf32>
    %c0_102 = arith.constant 0 : index
    %c3_103 = arith.constant 3 : index
    %212 = vector.load %arg15[%c0_102, %c3_103] : memref<8x1408xf32, #tpu.memory_space<vmem>>, vector<8x384xf32>
    %213 = vector.extract_strided_slice %24 {offsets = [0, 1], sizes = [8, 1], strides = [1, 1]} : vector<8x49xf32> to vector<8x1xf32>
    %214 = vector.broadcast %213 : vector<8x1xf32> to vector<8x384xf32>
    %215 = arith.mulf %212, %214 : vector<8x384xf32>
    %216 = arith.addf %211, %215 : vector<8x384xf32>
    %c0_104 = arith.constant 0 : index
    %c6 = arith.constant 6 : index
    %217 = vector.load %arg15[%c0_104, %c6] : memref<8x1408xf32, #tpu.memory_space<vmem>>, vector<8x384xf32>
    %218 = vector.extract_strided_slice %24 {offsets = [0, 2], sizes = [8, 1], strides = [1, 1]} : vector<8x49xf32> to vector<8x1xf32>
    %219 = vector.broadcast %218 : vector<8x1xf32> to vector<8x384xf32>
    %220 = arith.mulf %217, %219 : vector<8x384xf32>
    %221 = arith.addf %216, %220 : vector<8x384xf32>
    %c0_105 = arith.constant 0 : index
    %c9 = arith.constant 9 : index
    %222 = vector.load %arg15[%c0_105, %c9] : memref<8x1408xf32, #tpu.memory_space<vmem>>, vector<8x384xf32>
    %223 = vector.extract_strided_slice %24 {offsets = [0, 3], sizes = [8, 1], strides = [1, 1]} : vector<8x49xf32> to vector<8x1xf32>
    %224 = vector.broadcast %223 : vector<8x1xf32> to vector<8x384xf32>
    %225 = arith.mulf %222, %224 : vector<8x384xf32>
    %226 = arith.addf %221, %225 : vector<8x384xf32>
    %c0_106 = arith.constant 0 : index
    %c12 = arith.constant 12 : index
    %227 = vector.load %arg15[%c0_106, %c12] : memref<8x1408xf32, #tpu.memory_space<vmem>>, vector<8x384xf32>
    %228 = vector.extract_strided_slice %24 {offsets = [0, 4], sizes = [8, 1], strides = [1, 1]} : vector<8x49xf32> to vector<8x1xf32>
    %229 = vector.broadcast %228 : vector<8x1xf32> to vector<8x384xf32>
    %230 = arith.mulf %227, %229 : vector<8x384xf32>
    %231 = arith.addf %226, %230 : vector<8x384xf32>
    %c0_107 = arith.constant 0 : index
    %c15 = arith.constant 15 : index
    %232 = vector.load %arg15[%c0_107, %c15] : memref<8x1408xf32, #tpu.memory_space<vmem>>, vector<8x384xf32>
    %233 = vector.extract_strided_slice %24 {offsets = [0, 5], sizes = [8, 1], strides = [1, 1]} : vector<8x49xf32> to vector<8x1xf32>
    %234 = vector.broadcast %233 : vector<8x1xf32> to vector<8x384xf32>
    %235 = arith.mulf %232, %234 : vector<8x384xf32>
    %236 = arith.addf %231, %235 : vector<8x384xf32>
    %c0_108 = arith.constant 0 : index
    %c18 = arith.constant 18 : index
    %237 = vector.load %arg15[%c0_108, %c18] : memref<8x1408xf32, #tpu.memory_space<vmem>>, vector<8x384xf32>
    %238 = vector.extract_strided_slice %24 {offsets = [0, 6], sizes = [8, 1], strides = [1, 1]} : vector<8x49xf32> to vector<8x1xf32>
    %239 = vector.broadcast %238 : vector<8x1xf32> to vector<8x384xf32>
    %240 = arith.mulf %237, %239 : vector<8x384xf32>
    %241 = arith.addf %236, %240 : vector<8x384xf32>
    %c0_109 = arith.constant 0 : index
    %c144_110 = arith.constant 144 : index
    %242 = vector.load %arg15[%c0_109, %c144_110] : memref<8x1408xf32, #tpu.memory_space<vmem>>, vector<8x384xf32>
    %243 = vector.extract_strided_slice %24 {offsets = [0, 7], sizes = [8, 1], strides = [1, 1]} : vector<8x49xf32> to vector<8x1xf32>
    %244 = vector.broadcast %243 : vector<8x1xf32> to vector<8x384xf32>
    %245 = arith.mulf %242, %244 : vector<8x384xf32>
    %246 = arith.addf %241, %245 : vector<8x384xf32>
    %c0_111 = arith.constant 0 : index
    %c147_112 = arith.constant 147 : index
    %247 = vector.load %arg15[%c0_111, %c147_112] : memref<8x1408xf32, #tpu.memory_space<vmem>>, vector<8x384xf32>
    %248 = vector.extract_strided_slice %24 {offsets = [0, 8], sizes = [8, 1], strides = [1, 1]} : vector<8x49xf32> to vector<8x1xf32>
    %249 = vector.broadcast %248 : vector<8x1xf32> to vector<8x384xf32>
    %250 = arith.mulf %247, %249 : vector<8x384xf32>
    %251 = arith.addf %246, %250 : vector<8x384xf32>
    %c0_113 = arith.constant 0 : index
    %c150 = arith.constant 150 : index
    %252 = vector.load %arg15[%c0_113, %c150] : memref<8x1408xf32, #tpu.memory_space<vmem>>, vector<8x384xf32>
    %253 = vector.extract_strided_slice %24 {offsets = [0, 9], sizes = [8, 1], strides = [1, 1]} : vector<8x49xf32> to vector<8x1xf32>
    %254 = vector.broadcast %253 : vector<8x1xf32> to vector<8x384xf32>
    %255 = arith.mulf %252, %254 : vector<8x384xf32>
    %256 = arith.addf %251, %255 : vector<8x384xf32>
    %c0_114 = arith.constant 0 : index
    %c153 = arith.constant 153 : index
    %257 = vector.load %arg15[%c0_114, %c153] : memref<8x1408xf32, #tpu.memory_space<vmem>>, vector<8x384xf32>
    %258 = vector.extract_strided_slice %24 {offsets = [0, 10], sizes = [8, 1], strides = [1, 1]} : vector<8x49xf32> to vector<8x1xf32>
    %259 = vector.broadcast %258 : vector<8x1xf32> to vector<8x384xf32>
    %260 = arith.mulf %257, %259 : vector<8x384xf32>
    %261 = arith.addf %256, %260 : vector<8x384xf32>
    %c0_115 = arith.constant 0 : index
    %c156 = arith.constant 156 : index
    %262 = vector.load %arg15[%c0_115, %c156] : memref<8x1408xf32, #tpu.memory_space<vmem>>, vector<8x384xf32>
    %263 = vector.extract_strided_slice %24 {offsets = [0, 11], sizes = [8, 1], strides = [1, 1]} : vector<8x49xf32> to vector<8x1xf32>
    %264 = vector.broadcast %263 : vector<8x1xf32> to vector<8x384xf32>
    %265 = arith.mulf %262, %264 : vector<8x384xf32>
    %266 = arith.addf %261, %265 : vector<8x384xf32>
    %c0_116 = arith.constant 0 : index
    %c159 = arith.constant 159 : index
    %267 = vector.load %arg15[%c0_116, %c159] : memref<8x1408xf32, #tpu.memory_space<vmem>>, vector<8x384xf32>
    %268 = vector.extract_strided_slice %24 {offsets = [0, 12], sizes = [8, 1], strides = [1, 1]} : vector<8x49xf32> to vector<8x1xf32>
    %269 = vector.broadcast %268 : vector<8x1xf32> to vector<8x384xf32>
    %270 = arith.mulf %267, %269 : vector<8x384xf32>
    %271 = arith.addf %266, %270 : vector<8x384xf32>
    %c0_117 = arith.constant 0 : index
    %c162 = arith.constant 162 : index
    %272 = vector.load %arg15[%c0_117, %c162] : memref<8x1408xf32, #tpu.memory_space<vmem>>, vector<8x384xf32>
    %273 = vector.extract_strided_slice %24 {offsets = [0, 13], sizes = [8, 1], strides = [1, 1]} : vector<8x49xf32> to vector<8x1xf32>
    %274 = vector.broadcast %273 : vector<8x1xf32> to vector<8x384xf32>
    %275 = arith.mulf %272, %274 : vector<8x384xf32>
    %276 = arith.addf %271, %275 : vector<8x384xf32>
    %c0_118 = arith.constant 0 : index
    %c288 = arith.constant 288 : index
    %277 = vector.load %arg15[%c0_118, %c288] : memref<8x1408xf32, #tpu.memory_space<vmem>>, vector<8x384xf32>
    %278 = vector.extract_strided_slice %24 {offsets = [0, 14], sizes = [8, 1], strides = [1, 1]} : vector<8x49xf32> to vector<8x1xf32>
    %279 = vector.broadcast %278 : vector<8x1xf32> to vector<8x384xf32>
    %280 = arith.mulf %277, %279 : vector<8x384xf32>
    %281 = arith.addf %276, %280 : vector<8x384xf32>
    %c0_119 = arith.constant 0 : index
    %c291 = arith.constant 291 : index
    %282 = vector.load %arg15[%c0_119, %c291] : memref<8x1408xf32, #tpu.memory_space<vmem>>, vector<8x384xf32>
    %283 = vector.extract_strided_slice %24 {offsets = [0, 15], sizes = [8, 1], strides = [1, 1]} : vector<8x49xf32> to vector<8x1xf32>
    %284 = vector.broadcast %283 : vector<8x1xf32> to vector<8x384xf32>
    %285 = arith.mulf %282, %284 : vector<8x384xf32>
    %286 = arith.addf %281, %285 : vector<8x384xf32>
    %c0_120 = arith.constant 0 : index
    %c294 = arith.constant 294 : index
    %287 = vector.load %arg15[%c0_120, %c294] : memref<8x1408xf32, #tpu.memory_space<vmem>>, vector<8x384xf32>
    %288 = vector.extract_strided_slice %24 {offsets = [0, 16], sizes = [8, 1], strides = [1, 1]} : vector<8x49xf32> to vector<8x1xf32>
    %289 = vector.broadcast %288 : vector<8x1xf32> to vector<8x384xf32>
    %290 = arith.mulf %287, %289 : vector<8x384xf32>
    %291 = arith.addf %286, %290 : vector<8x384xf32>
    %c0_121 = arith.constant 0 : index
    %c297 = arith.constant 297 : index
    %292 = vector.load %arg15[%c0_121, %c297] : memref<8x1408xf32, #tpu.memory_space<vmem>>, vector<8x384xf32>
    %293 = vector.extract_strided_slice %24 {offsets = [0, 17], sizes = [8, 1], strides = [1, 1]} : vector<8x49xf32> to vector<8x1xf32>
    %294 = vector.broadcast %293 : vector<8x1xf32> to vector<8x384xf32>
    %295 = arith.mulf %292, %294 : vector<8x384xf32>
    %296 = arith.addf %291, %295 : vector<8x384xf32>
    %c0_122 = arith.constant 0 : index
    %c300 = arith.constant 300 : index
    %297 = vector.load %arg15[%c0_122, %c300] : memref<8x1408xf32, #tpu.memory_space<vmem>>, vector<8x384xf32>
    %298 = vector.extract_strided_slice %24 {offsets = [0, 18], sizes = [8, 1], strides = [1, 1]} : vector<8x49xf32> to vector<8x1xf32>
    %299 = vector.broadcast %298 : vector<8x1xf32> to vector<8x384xf32>
    %300 = arith.mulf %297, %299 : vector<8x384xf32>
    %301 = arith.addf %296, %300 : vector<8x384xf32>
    %c0_123 = arith.constant 0 : index
    %c303 = arith.constant 303 : index
    %302 = vector.load %arg15[%c0_123, %c303] : memref<8x1408xf32, #tpu.memory_space<vmem>>, vector<8x384xf32>
    %303 = vector.extract_strided_slice %24 {offsets = [0, 19], sizes = [8, 1], strides = [1, 1]} : vector<8x49xf32> to vector<8x1xf32>
    %304 = vector.broadcast %303 : vector<8x1xf32> to vector<8x384xf32>
    %305 = arith.mulf %302, %304 : vector<8x384xf32>
    %306 = arith.addf %301, %305 : vector<8x384xf32>
    %c0_124 = arith.constant 0 : index
    %c306 = arith.constant 306 : index
    %307 = vector.load %arg15[%c0_124, %c306] : memref<8x1408xf32, #tpu.memory_space<vmem>>, vector<8x384xf32>
    %308 = vector.extract_strided_slice %24 {offsets = [0, 20], sizes = [8, 1], strides = [1, 1]} : vector<8x49xf32> to vector<8x1xf32>
    %309 = vector.broadcast %308 : vector<8x1xf32> to vector<8x384xf32>
    %310 = arith.mulf %307, %309 : vector<8x384xf32>
    %311 = arith.addf %306, %310 : vector<8x384xf32>
    %c0_125 = arith.constant 0 : index
    %c432 = arith.constant 432 : index
    %312 = vector.load %arg15[%c0_125, %c432] : memref<8x1408xf32, #tpu.memory_space<vmem>>, vector<8x384xf32>
    %313 = vector.extract_strided_slice %24 {offsets = [0, 21], sizes = [8, 1], strides = [1, 1]} : vector<8x49xf32> to vector<8x1xf32>
    %314 = vector.broadcast %313 : vector<8x1xf32> to vector<8x384xf32>
    %315 = arith.mulf %312, %314 : vector<8x384xf32>
    %316 = arith.addf %311, %315 : vector<8x384xf32>
    %c0_126 = arith.constant 0 : index
    %c435 = arith.constant 435 : index
    %317 = vector.load %arg15[%c0_126, %c435] : memref<8x1408xf32, #tpu.memory_space<vmem>>, vector<8x384xf32>
    %318 = vector.extract_strided_slice %24 {offsets = [0, 22], sizes = [8, 1], strides = [1, 1]} : vector<8x49xf32> to vector<8x1xf32>
    %319 = vector.broadcast %318 : vector<8x1xf32> to vector<8x384xf32>
    %320 = arith.mulf %317, %319 : vector<8x384xf32>
    %321 = arith.addf %316, %320 : vector<8x384xf32>
    %c0_127 = arith.constant 0 : index
    %c438 = arith.constant 438 : index
    %322 = vector.load %arg15[%c0_127, %c438] : memref<8x1408xf32, #tpu.memory_space<vmem>>, vector<8x384xf32>
    %323 = vector.extract_strided_slice %24 {offsets = [0, 23], sizes = [8, 1], strides = [1, 1]} : vector<8x49xf32> to vector<8x1xf32>
    %324 = vector.broadcast %323 : vector<8x1xf32> to vector<8x384xf32>
    %325 = arith.mulf %322, %324 : vector<8x384xf32>
    %326 = arith.addf %321, %325 : vector<8x384xf32>
    %c0_128 = arith.constant 0 : index
    %c441 = arith.constant 441 : index
    %327 = vector.load %arg15[%c0_128, %c441] : memref<8x1408xf32, #tpu.memory_space<vmem>>, vector<8x384xf32>
    %328 = vector.extract_strided_slice %24 {offsets = [0, 24], sizes = [8, 1], strides = [1, 1]} : vector<8x49xf32> to vector<8x1xf32>
    %329 = vector.broadcast %328 : vector<8x1xf32> to vector<8x384xf32>
    %330 = arith.mulf %327, %329 : vector<8x384xf32>
    %331 = arith.addf %326, %330 : vector<8x384xf32>
    %c0_129 = arith.constant 0 : index
    %c444 = arith.constant 444 : index
    %332 = vector.load %arg15[%c0_129, %c444] : memref<8x1408xf32, #tpu.memory_space<vmem>>, vector<8x384xf32>
    %333 = vector.extract_strided_slice %24 {offsets = [0, 25], sizes = [8, 1], strides = [1, 1]} : vector<8x49xf32> to vector<8x1xf32>
    %334 = vector.broadcast %333 : vector<8x1xf32> to vector<8x384xf32>
    %335 = arith.mulf %332, %334 : vector<8x384xf32>
    %336 = arith.addf %331, %335 : vector<8x384xf32>
    %c0_130 = arith.constant 0 : index
    %c447 = arith.constant 447 : index
    %337 = vector.load %arg15[%c0_130, %c447] : memref<8x1408xf32, #tpu.memory_space<vmem>>, vector<8x384xf32>
    %338 = vector.extract_strided_slice %24 {offsets = [0, 26], sizes = [8, 1], strides = [1, 1]} : vector<8x49xf32> to vector<8x1xf32>
    %339 = vector.broadcast %338 : vector<8x1xf32> to vector<8x384xf32>
    %340 = arith.mulf %337, %339 : vector<8x384xf32>
    %341 = arith.addf %336, %340 : vector<8x384xf32>
    %c0_131 = arith.constant 0 : index
    %c450 = arith.constant 450 : index
    %342 = vector.load %arg15[%c0_131, %c450] : memref<8x1408xf32, #tpu.memory_space<vmem>>, vector<8x384xf32>
    %343 = vector.extract_strided_slice %24 {offsets = [0, 27], sizes = [8, 1], strides = [1, 1]} : vector<8x49xf32> to vector<8x1xf32>
    %344 = vector.broadcast %343 : vector<8x1xf32> to vector<8x384xf32>
    %345 = arith.mulf %342, %344 : vector<8x384xf32>
    %346 = arith.addf %341, %345 : vector<8x384xf32>
    %c0_132 = arith.constant 0 : index
    %c576 = arith.constant 576 : index
    %347 = vector.load %arg15[%c0_132, %c576] : memref<8x1408xf32, #tpu.memory_space<vmem>>, vector<8x384xf32>
    %348 = vector.extract_strided_slice %24 {offsets = [0, 28], sizes = [8, 1], strides = [1, 1]} : vector<8x49xf32> to vector<8x1xf32>
    %349 = vector.broadcast %348 : vector<8x1xf32> to vector<8x384xf32>
    %350 = arith.mulf %347, %349 : vector<8x384xf32>
    %351 = arith.addf %346, %350 : vector<8x384xf32>
    %c0_133 = arith.constant 0 : index
    %c579 = arith.constant 579 : index
    %352 = vector.load %arg15[%c0_133, %c579] : memref<8x1408xf32, #tpu.memory_space<vmem>>, vector<8x384xf32>
    %353 = vector.extract_strided_slice %24 {offsets = [0, 29], sizes = [8, 1], strides = [1, 1]} : vector<8x49xf32> to vector<8x1xf32>
    %354 = vector.broadcast %353 : vector<8x1xf32> to vector<8x384xf32>
    %355 = arith.mulf %352, %354 : vector<8x384xf32>
    %356 = arith.addf %351, %355 : vector<8x384xf32>
    %c0_134 = arith.constant 0 : index
    %c582 = arith.constant 582 : index
    %357 = vector.load %arg15[%c0_134, %c582] : memref<8x1408xf32, #tpu.memory_space<vmem>>, vector<8x384xf32>
    %358 = vector.extract_strided_slice %24 {offsets = [0, 30], sizes = [8, 1], strides = [1, 1]} : vector<8x49xf32> to vector<8x1xf32>
    %359 = vector.broadcast %358 : vector<8x1xf32> to vector<8x384xf32>
    %360 = arith.mulf %357, %359 : vector<8x384xf32>
    %361 = arith.addf %356, %360 : vector<8x384xf32>
    %c0_135 = arith.constant 0 : index
    %c585 = arith.constant 585 : index
    %362 = vector.load %arg15[%c0_135, %c585] : memref<8x1408xf32, #tpu.memory_space<vmem>>, vector<8x384xf32>
    %363 = vector.extract_strided_slice %24 {offsets = [0, 31], sizes = [8, 1], strides = [1, 1]} : vector<8x49xf32> to vector<8x1xf32>
    %364 = vector.broadcast %363 : vector<8x1xf32> to vector<8x384xf32>
    %365 = arith.mulf %362, %364 : vector<8x384xf32>
    %366 = arith.addf %361, %365 : vector<8x384xf32>
    %c0_136 = arith.constant 0 : index
    %c588 = arith.constant 588 : index
    %367 = vector.load %arg15[%c0_136, %c588] : memref<8x1408xf32, #tpu.memory_space<vmem>>, vector<8x384xf32>
    %368 = vector.extract_strided_slice %24 {offsets = [0, 32], sizes = [8, 1], strides = [1, 1]} : vector<8x49xf32> to vector<8x1xf32>
    %369 = vector.broadcast %368 : vector<8x1xf32> to vector<8x384xf32>
    %370 = arith.mulf %367, %369 : vector<8x384xf32>
    %371 = arith.addf %366, %370 : vector<8x384xf32>
    %c0_137 = arith.constant 0 : index
    %c591 = arith.constant 591 : index
    %372 = vector.load %arg15[%c0_137, %c591] : memref<8x1408xf32, #tpu.memory_space<vmem>>, vector<8x384xf32>
    %373 = vector.extract_strided_slice %24 {offsets = [0, 33], sizes = [8, 1], strides = [1, 1]} : vector<8x49xf32> to vector<8x1xf32>
    %374 = vector.broadcast %373 : vector<8x1xf32> to vector<8x384xf32>
    %375 = arith.mulf %372, %374 : vector<8x384xf32>
    %376 = arith.addf %371, %375 : vector<8x384xf32>
    %c0_138 = arith.constant 0 : index
    %c594 = arith.constant 594 : index
    %377 = vector.load %arg15[%c0_138, %c594] : memref<8x1408xf32, #tpu.memory_space<vmem>>, vector<8x384xf32>
    %378 = vector.extract_strided_slice %24 {offsets = [0, 34], sizes = [8, 1], strides = [1, 1]} : vector<8x49xf32> to vector<8x1xf32>
    %379 = vector.broadcast %378 : vector<8x1xf32> to vector<8x384xf32>
    %380 = arith.mulf %377, %379 : vector<8x384xf32>
    %381 = arith.addf %376, %380 : vector<8x384xf32>
    %c0_139 = arith.constant 0 : index
    %c720 = arith.constant 720 : index
    %382 = vector.load %arg15[%c0_139, %c720] : memref<8x1408xf32, #tpu.memory_space<vmem>>, vector<8x384xf32>
    %383 = vector.extract_strided_slice %24 {offsets = [0, 35], sizes = [8, 1], strides = [1, 1]} : vector<8x49xf32> to vector<8x1xf32>
    %384 = vector.broadcast %383 : vector<8x1xf32> to vector<8x384xf32>
    %385 = arith.mulf %382, %384 : vector<8x384xf32>
    %386 = arith.addf %381, %385 : vector<8x384xf32>
    %c0_140 = arith.constant 0 : index
    %c723 = arith.constant 723 : index
    %387 = vector.load %arg15[%c0_140, %c723] : memref<8x1408xf32, #tpu.memory_space<vmem>>, vector<8x384xf32>
    %388 = vector.extract_strided_slice %24 {offsets = [0, 36], sizes = [8, 1], strides = [1, 1]} : vector<8x49xf32> to vector<8x1xf32>
    %389 = vector.broadcast %388 : vector<8x1xf32> to vector<8x384xf32>
    %390 = arith.mulf %387, %389 : vector<8x384xf32>
    %391 = arith.addf %386, %390 : vector<8x384xf32>
    %c0_141 = arith.constant 0 : index
    %c726 = arith.constant 726 : index
    %392 = vector.load %arg15[%c0_141, %c726] : memref<8x1408xf32, #tpu.memory_space<vmem>>, vector<8x384xf32>
    %393 = vector.extract_strided_slice %24 {offsets = [0, 37], sizes = [8, 1], strides = [1, 1]} : vector<8x49xf32> to vector<8x1xf32>
    %394 = vector.broadcast %393 : vector<8x1xf32> to vector<8x384xf32>
    %395 = arith.mulf %392, %394 : vector<8x384xf32>
    %396 = arith.addf %391, %395 : vector<8x384xf32>
    %c0_142 = arith.constant 0 : index
    %c729 = arith.constant 729 : index
    %397 = vector.load %arg15[%c0_142, %c729] : memref<8x1408xf32, #tpu.memory_space<vmem>>, vector<8x384xf32>
    %398 = vector.extract_strided_slice %24 {offsets = [0, 38], sizes = [8, 1], strides = [1, 1]} : vector<8x49xf32> to vector<8x1xf32>
    %399 = vector.broadcast %398 : vector<8x1xf32> to vector<8x384xf32>
    %400 = arith.mulf %397, %399 : vector<8x384xf32>
    %401 = arith.addf %396, %400 : vector<8x384xf32>
    %c0_143 = arith.constant 0 : index
    %c732 = arith.constant 732 : index
    %402 = vector.load %arg15[%c0_143, %c732] : memref<8x1408xf32, #tpu.memory_space<vmem>>, vector<8x384xf32>
    %403 = vector.extract_strided_slice %24 {offsets = [0, 39], sizes = [8, 1], strides = [1, 1]} : vector<8x49xf32> to vector<8x1xf32>
    %404 = vector.broadcast %403 : vector<8x1xf32> to vector<8x384xf32>
    %405 = arith.mulf %402, %404 : vector<8x384xf32>
    %406 = arith.addf %401, %405 : vector<8x384xf32>
    %c0_144 = arith.constant 0 : index
    %c735 = arith.constant 735 : index
    %407 = vector.load %arg15[%c0_144, %c735] : memref<8x1408xf32, #tpu.memory_space<vmem>>, vector<8x384xf32>
    %408 = vector.extract_strided_slice %24 {offsets = [0, 40], sizes = [8, 1], strides = [1, 1]} : vector<8x49xf32> to vector<8x1xf32>
    %409 = vector.broadcast %408 : vector<8x1xf32> to vector<8x384xf32>
    %410 = arith.mulf %407, %409 : vector<8x384xf32>
    %411 = arith.addf %406, %410 : vector<8x384xf32>
    %c0_145 = arith.constant 0 : index
    %c738 = arith.constant 738 : index
    %412 = vector.load %arg15[%c0_145, %c738] : memref<8x1408xf32, #tpu.memory_space<vmem>>, vector<8x384xf32>
    %413 = vector.extract_strided_slice %24 {offsets = [0, 41], sizes = [8, 1], strides = [1, 1]} : vector<8x49xf32> to vector<8x1xf32>
    %414 = vector.broadcast %413 : vector<8x1xf32> to vector<8x384xf32>
    %415 = arith.mulf %412, %414 : vector<8x384xf32>
    %416 = arith.addf %411, %415 : vector<8x384xf32>
    %c0_146 = arith.constant 0 : index
    %c864 = arith.constant 864 : index
    %417 = vector.load %arg15[%c0_146, %c864] : memref<8x1408xf32, #tpu.memory_space<vmem>>, vector<8x384xf32>
    %418 = vector.extract_strided_slice %24 {offsets = [0, 42], sizes = [8, 1], strides = [1, 1]} : vector<8x49xf32> to vector<8x1xf32>
    %419 = vector.broadcast %418 : vector<8x1xf32> to vector<8x384xf32>
    %420 = arith.mulf %417, %419 : vector<8x384xf32>
    %421 = arith.addf %416, %420 : vector<8x384xf32>
    %c0_147 = arith.constant 0 : index
    %c867 = arith.constant 867 : index
    %422 = vector.load %arg15[%c0_147, %c867] : memref<8x1408xf32, #tpu.memory_space<vmem>>, vector<8x384xf32>
    %423 = vector.extract_strided_slice %24 {offsets = [0, 43], sizes = [8, 1], strides = [1, 1]} : vector<8x49xf32> to vector<8x1xf32>
    %424 = vector.broadcast %423 : vector<8x1xf32> to vector<8x384xf32>
    %425 = arith.mulf %422, %424 : vector<8x384xf32>
    %426 = arith.addf %421, %425 : vector<8x384xf32>
    %c0_148 = arith.constant 0 : index
    %c870 = arith.constant 870 : index
    %427 = vector.load %arg15[%c0_148, %c870] : memref<8x1408xf32, #tpu.memory_space<vmem>>, vector<8x384xf32>
    %428 = vector.extract_strided_slice %24 {offsets = [0, 44], sizes = [8, 1], strides = [1, 1]} : vector<8x49xf32> to vector<8x1xf32>
    %429 = vector.broadcast %428 : vector<8x1xf32> to vector<8x384xf32>
    %430 = arith.mulf %427, %429 : vector<8x384xf32>
    %431 = arith.addf %426, %430 : vector<8x384xf32>
    %c0_149 = arith.constant 0 : index
    %c873 = arith.constant 873 : index
    %432 = vector.load %arg15[%c0_149, %c873] : memref<8x1408xf32, #tpu.memory_space<vmem>>, vector<8x384xf32>
    %433 = vector.extract_strided_slice %24 {offsets = [0, 45], sizes = [8, 1], strides = [1, 1]} : vector<8x49xf32> to vector<8x1xf32>
    %434 = vector.broadcast %433 : vector<8x1xf32> to vector<8x384xf32>
    %435 = arith.mulf %432, %434 : vector<8x384xf32>
    %436 = arith.addf %431, %435 : vector<8x384xf32>
    %c0_150 = arith.constant 0 : index
    %c876 = arith.constant 876 : index
    %437 = vector.load %arg15[%c0_150, %c876] : memref<8x1408xf32, #tpu.memory_space<vmem>>, vector<8x384xf32>
    %438 = vector.extract_strided_slice %24 {offsets = [0, 46], sizes = [8, 1], strides = [1, 1]} : vector<8x49xf32> to vector<8x1xf32>
    %439 = vector.broadcast %438 : vector<8x1xf32> to vector<8x384xf32>
    %440 = arith.mulf %437, %439 : vector<8x384xf32>
    %441 = arith.addf %436, %440 : vector<8x384xf32>
    %c0_151 = arith.constant 0 : index
    %c879 = arith.constant 879 : index
    %442 = vector.load %arg15[%c0_151, %c879] : memref<8x1408xf32, #tpu.memory_space<vmem>>, vector<8x384xf32>
    %443 = vector.extract_strided_slice %24 {offsets = [0, 47], sizes = [8, 1], strides = [1, 1]} : vector<8x49xf32> to vector<8x1xf32>
    %444 = vector.broadcast %443 : vector<8x1xf32> to vector<8x384xf32>
    %445 = arith.mulf %442, %444 : vector<8x384xf32>
    %446 = arith.addf %441, %445 : vector<8x384xf32>
    %c0_152 = arith.constant 0 : index
    %c882 = arith.constant 882 : index
    %447 = vector.load %arg15[%c0_152, %c882] : memref<8x1408xf32, #tpu.memory_space<vmem>>, vector<8x384xf32>
    %448 = vector.extract_strided_slice %24 {offsets = [0, 48], sizes = [8, 1], strides = [1, 1]} : vector<8x49xf32> to vector<8x1xf32>
    %449 = vector.broadcast %448 : vector<8x1xf32> to vector<8x384xf32>
    %450 = arith.mulf %447, %449 : vector<8x384xf32>
    %451 = arith.addf %446, %450 : vector<8x384xf32>
    %452 = vector.broadcast %26 : vector<8x1xf32> to vector<8x384xf32>
    %453 = arith.addf %451, %452 : vector<8x384xf32>
    %c0_153 = arith.constant 0 : index
    %c441_154 = arith.constant 441 : index
    %454 = vector.load %arg15[%c0_153, %c441_154] : memref<8x1408xf32, #tpu.memory_space<vmem>>, vector<8x384xf32>
    %c0_155 = arith.constant 0 : index
    %c0_156 = arith.constant 0 : index
    %455 = vector.load %arg8[%c0_155, %c0_156] : memref<4x8xbf16, #tpu.memory_space<vmem>>, vector<4x8xbf16>
    %456 = arith.truncf %454 : vector<8x384xf32> to vector<8x384xbf16>
    %cst = arith.constant dense<0.000000e+00> : vector<4x384xf32>
    %457 = tpu.matmul %455, %456, %cst {dimension_numbers = #tpu.dot_dimension_numbers<[1], [0], [0], [1], [0, 0, 1, 1], [], []>} : vector<4x8xbf16>, vector<8x384xbf16>, vector<4x384xf32> -> vector<4x384xf32>
    %c0_157 = arith.constant 0 : index
    %c0_158 = arith.constant 0 : index
    %458 = vector.load %arg9[%c0_157, %c0_158] : memref<4x1xf32, #tpu.memory_space<vmem>>, vector<4x1xf32>
    %459 = vector.broadcast %458 : vector<4x1xf32> to vector<4x384xf32>
    %460 = arith.addf %457, %459 : vector<4x384xf32>
    %c0_159 = arith.constant 0 : index
    %c0_160 = arith.constant 0 : index
    %461 = vector.load %arg10[%c0_159, %c0_160] : memref<4x8xbf16, #tpu.memory_space<vmem>>, vector<4x8xbf16>
    %462 = arith.truncf %453 : vector<8x384xf32> to vector<8x384xbf16>
    %cst_161 = arith.constant dense<0.000000e+00> : vector<4x384xf32>
    %463 = tpu.matmul %461, %462, %cst_161 {dimension_numbers = #tpu.dot_dimension_numbers<[1], [0], [0], [1], [0, 0, 1, 1], [], []>} : vector<4x8xbf16>, vector<8x384xbf16>, vector<4x384xf32> -> vector<4x384xf32>
    %c0_162 = arith.constant 0 : index
    %c0_163 = arith.constant 0 : index
    %464 = vector.load %arg11[%c0_162, %c0_163] : memref<4x1xf32, #tpu.memory_space<vmem>>, vector<4x1xf32>
    %465 = vector.broadcast %464 : vector<4x1xf32> to vector<4x384xf32>
    %466 = arith.addf %463, %465 : vector<4x384xf32>
    %c0_164 = arith.constant 0 : index
    %c0_165 = arith.constant 0 : index
    %c0_166 = arith.constant 0 : index
    %467 = vector.load %arg12[%c0_164, %c0_165, %c0_166] : memref<1x4x384xf32, #tpu.memory_space<vmem>>, vector<1x4x384xf32>
    %468 = vector.shape_cast %467 : vector<1x4x384xf32> to vector<4x384xf32>
    %469 = vector.shape_cast %460 : vector<4x384xf32> to vector<1x4x384xf32>
    tpu.vector_store %arg12[%c0_164, %c0_165, %c0_166], %469 {strides = array<i32>} : memref<1x4x384xf32, #tpu.memory_space<vmem>>, vector<1x4x384xf32>,
    %c0_167 = arith.constant 0 : index
    %c0_168 = arith.constant 0 : index
    %c0_169 = arith.constant 0 : index
    %470 = vector.load %arg13[%c0_167, %c0_168, %c0_169] : memref<1x4x384xf32, #tpu.memory_space<vmem>>, vector<1x4x384xf32>
    %471 = vector.shape_cast %470 : vector<1x4x384xf32> to vector<4x384xf32>
    %472 = vector.shape_cast %466 : vector<4x384xf32> to vector<1x4x384xf32>
    tpu.vector_store %arg13[%c0_167, %c0_168, %c0_169], %472 {strides = array<i32>} : memref<1x4x384xf32, #tpu.memory_space<vmem>>, vector<1x4x384xf32>,
    return
  }
  func.func @transform_1(%arg0: i32, %arg1: i32) -> (i32, i32, i32) {
    %c0_i32 = arith.constant 0 : i32
    %c0_i32_0 = arith.constant 0 : i32
    %c0_i32_1 = arith.constant 0 : i32
    return %arg1, %c0_i32, %c0_i32_0 : i32, i32, i32
  }
  func.func @transform_2(%arg0: i32, %arg1: i32) -> (i32, i32) {
    %c0_i32 = arith.constant 0 : i32
    %c0_i32_0 = arith.constant 0 : i32
    %c0_i32_1 = arith.constant 0 : i32
    return %c0_i32, %c0_i32_0 : i32, i32
  }
  func.func @transform_3(%arg0: i32, %arg1: i32) -> (i32, i32) {
    %c0_i32 = arith.constant 0 : i32
    %c0_i32_0 = arith.constant 0 : i32
    %c0_i32_1 = arith.constant 0 : i32
    return %c0_i32, %c0_i32_0 : i32, i32
  }
  func.func @transform_4(%arg0: i32, %arg1: i32) -> (i32, i32) {
    %c0_i32 = arith.constant 0 : i32
    %c0_i32_0 = arith.constant 0 : i32
    %c0_i32_1 = arith.constant 0 : i32
    return %c0_i32, %c0_i32_0 : i32, i32
  }
  func.func @transform_5(%arg0: i32, %arg1: i32) -> (i32, i32) {
    %c0_i32 = arith.constant 0 : i32
    %c0_i32_0 = arith.constant 0 : i32
    %c0_i32_1 = arith.constant 0 : i32
    return %c0_i32, %c0_i32_0 : i32, i32
  }
  func.func @transform_6(%arg0: i32, %arg1: i32) -> (i32, i32) {
    %c0_i32 = arith.constant 0 : i32
    %c0_i32_0 = arith.constant 0 : i32
    %c0_i32_1 = arith.constant 0 : i32
    return %c0_i32, %c0_i32_0 : i32, i32
  }
  func.func @transform_7(%arg0: i32, %arg1: i32) -> (i32, i32) {
    %c0_i32 = arith.constant 0 : i32
    %c0_i32_0 = arith.constant 0 : i32
    %c0_i32_1 = arith.constant 0 : i32
    return %c0_i32, %c0_i32_0 : i32, i32
  }
  func.func @transform_8(%arg0: i32, %arg1: i32) -> (i32, i32) {
    %c0_i32 = arith.constant 0 : i32
    %c0_i32_0 = arith.constant 0 : i32
    %c0_i32_1 = arith.constant 0 : i32
    return %c0_i32, %c0_i32_0 : i32, i32
  }
  func.func @transform_9(%arg0: i32, %arg1: i32) -> (i32, i32) {
    %c0_i32 = arith.constant 0 : i32
    %c0_i32_0 = arith.constant 0 : i32
    %c0_i32_1 = arith.constant 0 : i32
    return %c0_i32, %c0_i32_0 : i32, i32
  }
  func.func @transform_10(%arg0: i32, %arg1: i32) -> (i32, i32, i32) {
    %c0_i32 = arith.constant 0 : i32
    %c0_i32_0 = arith.constant 0 : i32
    return %arg0, %c0_i32, %arg1 : i32, i32, i32
  }
  func.func @transform_11(%arg0: i32, %arg1: i32) -> (i32, i32, i32) {
    %c0_i32 = arith.constant 0 : i32
    %c0_i32_0 = arith.constant 0 : i32
    return %arg0, %c0_i32, %arg1 : i32, i32, i32
  }
}

</mosaic_0001>

<llo_original>
// kernel: _lambda_.1
$region0: #{_lambda_.1}
  #allocation0 [shape = 'u32[]', space=smem, size = 0x4, offset = 0x4, fixed_abs, tag = 'smem constant byte address 0x4 - core index']
  #allocation1 [shape = 'u32[144,128]{1,0:T(1,128)}', space=vmem, size = 0x12000, scoped, tag = 'internal scratch']
  #allocation2 [shape = 'f32[2,8,1664]{2,1,0:T(8,128)}', space=vmem, size = 0x1a000, scoped, tag = 'scratch operand']
  #allocation3 [shape = 'f32[8,1408]{1,0:T(8,128)}', space=vmem, size = 0xb000, scoped, tag = 'scratch operand']
  #allocation4 [shape = 's32[2]{0}', space=sflag, size = 0x8, scoped, tag = 'scratch operand']
  #allocation5 [shape = 's32[]', space=sflag, size = 0x4, offset = 0, fixed_abs, tag = 'sflag constant byte address 0x0 - dummy sync flag']
  #allocation6 [shape = 's32[]', space=sflag, size = 0x4, offset = 0, fixed_abs, tag = 'sflag constant byte address 0x0 - dummy sync flag']
  %s0 = inlined_call_operand.vmem [shape: f32[2,8,2048], index: 0, kind: input, shape index: {}]
  %s1 = inlined_call_operand.vmem [shape: f32[2,1,1408], index: 1, kind: input, shape index: {}]
  %s2 = inlined_call_operand.vmem [shape: f32[8,25], index: 2, kind: input, shape index: {}]
  %s3 = inlined_call_operand.vmem [shape: f32[8,1], index: 3, kind: input, shape index: {}]
  %s4 = inlined_call_operand.vmem [shape: f32[8,49], index: 4, kind: input, shape index: {}]
  %s5 = inlined_call_operand.vmem [shape: f32[8,1], index: 5, kind: input, shape index: {}]
  %s6 = inlined_call_operand.vmem [shape: bf16[4,8], index: 6, kind: input, shape index: {}]
  %s7 = inlined_call_operand.vmem [shape: f32[4,1], index: 7, kind: input, shape index: {}]
  %s8 = inlined_call_operand.vmem [shape: bf16[4,8], index: 8, kind: input, shape index: {}]
  %s9 = inlined_call_operand.vmem [shape: f32[4,1], index: 9, kind: input, shape index: {}]
  %s10 = inlined_call_operand.vmem [shape: f32[2,4,768], index: 10, kind: output, shape index: {0}]
  %s11 = inlined_call_operand.vmem [shape: f32[2,4,768], index: 11, kind: output, shape index: {1}]
  %12 = xla_tuple %s10, %s11
  %s13 = sld [smem:[#allocation0]]
  $region153: #{_lambda_.1} parent=0
    _
  %s15 = ssub.s32 1, %s13
  %s16 = scalar_select 0, %s15, %s13
  loop: start=0, step=1, limit=6
  $region2: #{_lambda_.1} parent=0 // loop_pre_header
    _
  $region3: #{_lambda_.1} parent=0 // loop_header
    %s18 = sphi 0, %s22
    %p19 = scmp.ge.s32.totalorder %s18, 6
    %s25 = sphi 0, %s37
    %s26 = sphi 0, %s33
    %s27 = sphi 0, %s25
    %s28 = sphi 0, %s26
    %s29 = sphi 0, %s27
    %s30 = sphi 0, %s28
    %s40 = sphi 0, %s42
    %s43 = sphi 0, %s40
    %s44 = sphi 0, %s43
    %s60 = sphi 0, %s44
    %s64 = sphi 0, %s64
    %s66 = sphi 0, %s64
    %s67 = sphi 0, %s66
    %s81 = sphi 0, %s67
    %s85 = sphi 0, %s85
    %s87 = sphi 0, %s85
    %s88 = sphi 0, %s87
    %s102 = sphi 0, %s88
    %s106 = sphi 0, %s106
    %s108 = sphi 0, %s106
    %s109 = sphi 0, %s108
    %s123 = sphi 0, %s109
    %s127 = sphi 0, %s127
    %s129 = sphi 0, %s127
    %s130 = sphi 0, %s129
    %s144 = sphi 0, %s130
    %s148 = sphi 0, %s148
    %s150 = sphi 0, %s148
    %s151 = sphi 0, %s150
    %s165 = sphi 0, %s151
    %s169 = sphi 0, %s169
    %s171 = sphi 0, %s169
    %s172 = sphi 0, %s171
    %s186 = sphi 0, %s172
    %s190 = sphi 0, %s190
    %s192 = sphi 0, %s190
    %s193 = sphi 0, %s192
    %s207 = sphi 0, %s193
    %s211 = sphi 0, %s211
    %s213 = sphi 0, %s211
    %s214 = sphi 0, %s213
    %s228 = sphi 0, %s214
    %s236 = sphi 0, %s238
    %s239 = sphi 0, %s236
    %s240 = sphi 0, %s239
    %s256 = sphi 0, %s240
    %s264 = sphi 0, %s266
    %s267 = sphi 0, %s264
    %s268 = sphi 0, %s267
    %s284 = sphi 0, %s268
  $region4: #{_lambda_.1} parent=0 // loop_header_branch
    %21 = sbr.rel (%p19) target = $region8
  $region5: #{_lambda_.1} parent=0 // loop_body
    %s23 = ssub.s32 %s18, 1
    %s24 = ssub.s32 %s18, 2
    %s31 = sadd.s32 1, %s26
    %p32 = scmp.ge.s32.totalorder %s31, 2
    %s33 = scalar_select %p32, 0, %s31
    %s34 = sadd.s32 1, %s25
    %s35 = scalar_select %p32, %s34, %s25
    %p36 = scmp.ge.s32.totalorder %s35, 2
    %s37 = scalar_select %p36, 0, %s35
    %s38 = ssub.s32 %s26, %s33
    %p39 = scmp.eq.s32.totalorder %s38, 0
    %s41 = sadd.s32 %s40, 1
    %s42 = scalar_select %p39, %s40, %s41
    %p45 = pneg %p39
    %p46 = scmp.eq.s32.totalorder %s18, 3
    %p47 = por %p45, %p46
    %p48 = scmp.ne.s32.totalorder %s40, %s43
    %p49 = scmp.eq.s32.totalorder %s18, 0
    %p50 = por %p48, %p49
    %p51 = scmp.ne.s32.totalorder %s40, %s43
    %p52 = scmp.eq.s32.totalorder %s23, 3
    %p53 = por %p51, %p52
    %p54 = scmp.ne.s32.totalorder %s43, %s44
    %p55 = scmp.eq.s32.totalorder %s23, 0
    %p56 = por %p54, %p55
    %p57 = scmp.ne.s32.totalorder %s43, %s44
    %p58 = scmp.eq.s32.totalorder %s24, 3
    %p59 = por %p57, %p58
    %p61 = scmp.ne.s32.totalorder %s44, %s60
    %p62 = scmp.eq.s32.totalorder %s24, 0
    %p63 = por %p61, %p62
    %s65 = sadd.s32 %s64, 1
    %p68 = scmp.eq.s32.totalorder %s18, 3
    %p69 = scmp.ne.s32.totalorder %s64, %s66
    %p70 = scmp.eq.s32.totalorder %s18, 0
    %p71 = por %p69, %p70
    %p72 = scmp.ne.s32.totalorder %s64, %s66
    %p73 = scmp.eq.s32.totalorder %s23, 3
    %p74 = por %p72, %p73
    %p75 = scmp.ne.s32.totalorder %s66, %s67
    %p76 = scmp.eq.s32.totalorder %s23, 0
    %p77 = por %p75, %p76
    %p78 = scmp.ne.s32.totalorder %s66, %s67
    %p79 = scmp.eq.s32.totalorder %s24, 3
    %p80 = por %p78, %p79
    %p82 = scmp.ne.s32.totalorder %s67, %s81
    %p83 = scmp.eq.s32.totalorder %s24, 0
    %p84 = por %p82, %p83
    %s86 = sadd.s32 %s85, 1
    %p89 = scmp.eq.s32.totalorder %s18, 3
    %p90 = scmp.ne.s32.totalorder %s85, %s87
    %p91 = scmp.eq.s32.totalorder %s18, 0
    %p92 = por %p90, %p91
    %p93 = scmp.ne.s32.totalorder %s85, %s87
    %p94 = scmp.eq.s32.totalorder %s23, 3
    %p95 = por %p93, %p94
    %p96 = scmp.ne.s32.totalorder %s87, %s88
    %p97 = scmp.eq.s32.totalorder %s23, 0
    %p98 = por %p96, %p97
    %p99 = scmp.ne.s32.totalorder %s87, %s88
    %p100 = scmp.eq.s32.totalorder %s24, 3
    %p101 = por %p99, %p100
    %p103 = scmp.ne.s32.totalorder %s88, %s102
    %p104 = scmp.eq.s32.totalorder %s24, 0
    %p105 = por %p103, %p104
    %s107 = sadd.s32 %s106, 1
    %p110 = scmp.eq.s32.totalorder %s18, 3
    %p111 = scmp.ne.s32.totalorder %s106, %s108
    %p112 = scmp.eq.s32.totalorder %s18, 0
    %p113 = por %p111, %p112
    %p114 = scmp.ne.s32.totalorder %s106, %s108
    %p115 = scmp.eq.s32.totalorder %s23, 3
    %p116 = por %p114, %p115
    %p117 = scmp.ne.s32.totalorder %s108, %s109
    %p118 = scmp.eq.s32.totalorder %s23, 0
    %p119 = por %p117, %p118
    %p120 = scmp.ne.s32.totalorder %s108, %s109
    %p121 = scmp.eq.s32.totalorder %s24, 3
    %p122 = por %p120, %p121
    %p124 = scmp.ne.s32.totalorder %s109, %s123
    %p125 = scmp.eq.s32.totalorder %s24, 0
    %p126 = por %p124, %p125
    %s128 = sadd.s32 %s127, 1
    %p131 = scmp.eq.s32.totalorder %s18, 3
    %p132 = scmp.ne.s32.totalorder %s127, %s129
    %p133 = scmp.eq.s32.totalorder %s18, 0
    %p134 = por %p132, %p133
    %p135 = scmp.ne.s32.totalorder %s127, %s129
    %p136 = scmp.eq.s32.totalorder %s23, 3
    %p137 = por %p135, %p136
    %p138 = scmp.ne.s32.totalorder %s129, %s130
    %p139 = scmp.eq.s32.totalorder %s23, 0
    %p140 = por %p138, %p139
    %p141 = scmp.ne.s32.totalorder %s129, %s130
    %p142 = scmp.eq.s32.totalorder %s24, 3
    %p143 = por %p141, %p142
    %p145 = scmp.ne.s32.totalorder %s130, %s144
    %p146 = scmp.eq.s32.totalorder %s24, 0
    %p147 = por %p145, %p146
    %s149 = sadd.s32 %s148, 1
    %p152 = scmp.eq.s32.totalorder %s18, 3
    %p153 = scmp.ne.s32.totalorder %s148, %s150
    %p154 = scmp.eq.s32.totalorder %s18, 0
    %p155 = por %p153, %p154
    %p156 = scmp.ne.s32.totalorder %s148, %s150
    %p157 = scmp.eq.s32.totalorder %s23, 3
    %p158 = por %p156, %p157
    %p159 = scmp.ne.s32.totalorder %s150, %s151
    %p160 = scmp.eq.s32.totalorder %s23, 0
    %p161 = por %p159, %p160
    %p162 = scmp.ne.s32.totalorder %s150, %s151
    %p163 = scmp.eq.s32.totalorder %s24, 3
    %p164 = por %p162, %p163
    %p166 = scmp.ne.s32.totalorder %s151, %s165
    %p167 = scmp.eq.s32.totalorder %s24, 0
    %p168 = por %p166, %p167
    %s170 = sadd.s32 %s169, 1
    %p173 = scmp.eq.s32.totalorder %s18, 3
    %p174 = scmp.ne.s32.totalorder %s169, %s171
    %p175 = scmp.eq.s32.totalorder %s18, 0
    %p176 = por %p174, %p175
    %p177 = scmp.ne.s32.totalorder %s169, %s171
    %p178 = scmp.eq.s32.totalorder %s23, 3
    %p179 = por %p177, %p178
    %p180 = scmp.ne.s32.totalorder %s171, %s172
    %p181 = scmp.eq.s32.totalorder %s23, 0
    %p182 = por %p180, %p181
    %p183 = scmp.ne.s32.totalorder %s171, %s172
    %p184 = scmp.eq.s32.totalorder %s24, 3
    %p185 = por %p183, %p184
    %p187 = scmp.ne.s32.totalorder %s172, %s186
    %p188 = scmp.eq.s32.totalorder %s24, 0
    %p189 = por %p187, %p188
    %s191 = sadd.s32 %s190, 1
    %p194 = scmp.eq.s32.totalorder %s18, 3
    %p195 = scmp.ne.s32.totalorder %s190, %s192
    %p196 = scmp.eq.s32.totalorder %s18, 0
    %p197 = por %p195, %p196
    %p198 = scmp.ne.s32.totalorder %s190, %s192
    %p199 = scmp.eq.s32.totalorder %s23, 3
    %p200 = por %p198, %p199
    %p201 = scmp.ne.s32.totalorder %s192, %s193
    %p202 = scmp.eq.s32.totalorder %s23, 0
    %p203 = por %p201, %p202
    %p204 = scmp.ne.s32.totalorder %s192, %s193
    %p205 = scmp.eq.s32.totalorder %s24, 3
    %p206 = por %p204, %p205
    %p208 = scmp.ne.s32.totalorder %s193, %s207
    %p209 = scmp.eq.s32.totalorder %s24, 0
    %p210 = por %p208, %p209
    %s212 = sadd.s32 %s211, 1
    %p215 = scmp.eq.s32.totalorder %s18, 3
    %p216 = scmp.ne.s32.totalorder %s211, %s213
    %p217 = scmp.eq.s32.totalorder %s18, 0
    %p218 = por %p216, %p217
    %p219 = scmp.ne.s32.totalorder %s211, %s213
    %p220 = scmp.eq.s32.totalorder %s23, 3
    %p221 = por %p219, %p220
    %p222 = scmp.ne.s32.totalorder %s213, %s214
    %p223 = scmp.eq.s32.totalorder %s23, 0
    %p224 = por %p222, %p223
    %p225 = scmp.ne.s32.totalorder %s213, %s214
    %p226 = scmp.eq.s32.totalorder %s24, 3
    %p227 = por %p225, %p226
    %p229 = scmp.ne.s32.totalorder %s214, %s228
    %p230 = scmp.eq.s32.totalorder %s24, 0
    %p231 = por %p229, %p230
    %s232 = ssub.s32 %s25, %s37
    %s233 = ssub.s32 %s26, %s33
    %s234 = sor.u32 %s232, %s233
    %p235 = scmp.eq.s32.totalorder %s234, 0
    %s237 = sadd.s32 %s236, 1
    %s238 = scalar_select %p235, %s236, %s237
    %p241 = pneg %p235
    %p242 = scmp.eq.s32.totalorder %s18, 3
    %p243 = por %p241, %p242
    %p244 = scmp.ne.s32.totalorder %s236, %s239
    %p245 = scmp.eq.s32.totalorder %s18, 0
    %p246 = por %p244, %p245
    %p247 = scmp.ne.s32.totalorder %s236, %s239
    %p248 = scmp.eq.s32.totalorder %s23, 3
    %p249 = por %p247, %p248
    %p250 = scmp.ne.s32.totalorder %s239, %s240
    %p251 = scmp.eq.s32.totalorder %s23, 0
    %p252 = por %p250, %p251
    %p253 = scmp.ne.s32.totalorder %s239, %s240
    %p254 = scmp.eq.s32.totalorder %s24, 3
    %p255 = por %p253, %p254
    %p257 = scmp.ne.s32.totalorder %s240, %s256
    %p258 = scmp.eq.s32.totalorder %s24, 0
    %p259 = por %p257, %p258
    %s260 = ssub.s32 %s25, %s37
    %s261 = ssub.s32 %s26, %s33
    %s262 = sor.u32 %s260, %s261
    %p263 = scmp.eq.s32.totalorder %s262, 0
    %s265 = sadd.s32 %s264, 1
    %s266 = scalar_select %p263, %s264, %s265
    %p269 = pneg %p263
    %p270 = scmp.eq.s32.totalorder %s18, 3
    %p271 = por %p269, %p270
    %p272 = scmp.ne.s32.totalorder %s264, %s267
    %p273 = scmp.eq.s32.totalorder %s18, 0
    %p274 = por %p272, %p273
    %p275 = scmp.ne.s32.totalorder %s264, %s267
    %p276 = scmp.eq.s32.totalorder %s23, 3
    %p277 = por %p275, %p276
    %p278 = scmp.ne.s32.totalorder %s267, %s268
    %p279 = scmp.eq.s32.totalorder %s23, 0
    %p280 = por %p278, %p279
    %p281 = scmp.ne.s32.totalorder %s267, %s268
    %p282 = scmp.eq.s32.totalorder %s24, 3
    %p283 = por %p281, %p282
    %p285 = scmp.ne.s32.totalorder %s268, %s284
    %p286 = scmp.eq.s32.totalorder %s24, 0
    %p287 = por %p285, %p286
    %p288 = scmp.le.s32.totalorder 1, %s18
    %p289 = scmp.lt.s32.totalorder %s18, 5
    %p290 = pnand %p288, %p289
    %p291 = pneg %p290
    // Predicated region
    $region9: #{_lambda_.1} parent=5 // pred_check
      _
    $region10: #{_lambda_.1} parent=5 // pred_check_branch
      %293 = sbr.rel (%p290) target = $region12
    $region11: #{_lambda_.1} parent=5 // pred_region
      %s294 = ssub.s32 %s18, 1
      // Predicated region
      $region13: #{_lambda_.1} parent=11 // pred_check
        %p295 = pneg %p77
      $region14: #{_lambda_.1} parent=11 // pred_check_branch
        %297 = sbr.rel (%p295) target = $region16
      $region15: #{_lambda_.1} parent=11 // pred_region
        _
      $region16: #{_lambda_.1} parent=11 // pred_fallthru
        _
      // Predicated region
      $region17: #{_lambda_.1} parent=11 // pred_check
        %p298 = pneg %p98
      $region18: #{_lambda_.1} parent=11 // pred_check_branch
        %300 = sbr.rel (%p298) target = $region20
      $region19: #{_lambda_.1} parent=11 // pred_region
        _
      $region20: #{_lambda_.1} parent=11 // pred_fallthru
        _
      // Predicated region
      $region21: #{_lambda_.1} parent=11 // pred_check
        %p301 = pneg %p119
      $region22: #{_lambda_.1} parent=11 // pred_check_branch
        %303 = sbr.rel (%p301) target = $region24
      $region23: #{_lambda_.1} parent=11 // pred_region
        _
      $region24: #{_lambda_.1} parent=11 // pred_fallthru
        _
      // Predicated region
      $region25: #{_lambda_.1} parent=11 // pred_check
        %p304 = pneg %p140
      $region26: #{_lambda_.1} parent=11 // pred_check_branch
        %306 = sbr.rel (%p304) target = $region28
      $region27: #{_lambda_.1} parent=11 // pred_region
        _
      $region28: #{_lambda_.1} parent=11 // pred_fallthru
        _
      // Predicated region
      $region29: #{_lambda_.1} parent=11 // pred_check
        %p307 = pneg %p161
      $region30: #{_lambda_.1} parent=11 // pred_check_branch
        %309 = sbr.rel (%p307) target = $region32
      $region31: #{_lambda_.1} parent=11 // pred_region
        _
      $region32: #{_lambda_.1} parent=11 // pred_fallthru
        _
      // Predicated region
      $region33: #{_lambda_.1} parent=11 // pred_check
        %p310 = pneg %p182
      $region34: #{_lambda_.1} parent=11 // pred_check_branch
        %312 = sbr.rel (%p310) target = $region36
      $region35: #{_lambda_.1} parent=11 // pred_region
        _
      $region36: #{_lambda_.1} parent=11 // pred_fallthru
        _
      // Predicated region
      $region37: #{_lambda_.1} parent=11 // pred_check
        %p313 = pneg %p203
      $region38: #{_lambda_.1} parent=11 // pred_check_branch
        %315 = sbr.rel (%p313) target = $region40
      $region39: #{_lambda_.1} parent=11 // pred_region
        _
      $region40: #{_lambda_.1} parent=11 // pred_fallthru
        _
      // Predicated region
      $region41: #{_lambda_.1} parent=11 // pred_check
        %p316 = pneg %p224
      $region42: #{_lambda_.1} parent=11 // pred_check_branch
        %318 = sbr.rel (%p316) target = $region44
      $region43: #{_lambda_.1} parent=11 // pred_region
        _
      $region44: #{_lambda_.1} parent=11 // pred_fallthru
        _
    $region12: #{_lambda_.1} parent=5 // pred_fallthru
      _
    %p319 = scmp.lt.s32.totalorder %s18, 4
    // Predicated region
    $region45: #{_lambda_.1} parent=5 // pred_check
      %p320 = pneg %p319
    $region46: #{_lambda_.1} parent=5 // pred_check_branch
      %322 = sbr.rel (%p320) target = $region48
    $region47: #{_lambda_.1} parent=5 // pred_region
      // Predicated region
      $region49: #{_lambda_.1} parent=47 // pred_check
        %p323 = pneg %p50
      $region50: #{_lambda_.1} parent=47 // pred_check_branch
        %325 = sbr.rel (%p323) target = $region52
      $region51: #{_lambda_.1} parent=47 // pred_region
        %p326 = scmp.lt.s32.totalorder %s26, 1
        %s327 = scalar_select %p326, %s26, 1
        %s328 = smul.addr %s327, 11
        %s329 = scalar_lea.vmem %s1, %s328
      $region52: #{_lambda_.1} parent=47 // pred_fallthru
        _
    $region48: #{_lambda_.1} parent=5 // pred_fallthru
      _
    %p330 = scmp.le.s32.totalorder 1, %s18
    %p331 = scmp.lt.s32.totalorder %s18, 5
    %p332 = pnand %p330, %p331
    %p333 = pneg %p332
    // Predicated region
    $region53: #{_lambda_.1} parent=5 // pred_check
      _
    $region54: #{_lambda_.1} parent=5 // pred_check_branch
      %335 = sbr.rel (%p332) target = $region56
    $region55: #{_lambda_.1} parent=5 // pred_region
      %s336 = ssub.s32 %s18, 1
      %p337 = scmp.lt.s32.totalorder %s28, 1
      %s338 = scalar_select %p337, %s28, 1
      %s339 = smul.addr %s338, 11
      %s340 = scalar_lea.vmem %s1, %s339
      %p341 = pneg %p56
      %p342 = pneg %p53
      %p343 = pneg %p77
      %p344 = pneg %p74
      %p345 = pneg %p98
      %p346 = pneg %p95
      %p347 = pneg %p119
      %p348 = pneg %p116
      %p349 = pneg %p140
      %p350 = pneg %p137
      %p351 = pneg %p161
      %p352 = pneg %p158
      %p353 = pneg %p182
      %p354 = pneg %p179
      %p355 = pneg %p203
      %p356 = pneg %p200
      %p357 = pneg %p224
      %p358 = pneg %p221
      %p359 = pneg %p252
      %p360 = pneg %p249
      %s361 = smul.u32 3, %s28
      %p362 = scmp.lt.s32.totalorder %s27, 1
      %s363 = scalar_select %p362, %s27, 1
      %p364 = scmp.lt.s32.totalorder %s361, 5
      %s365 = scalar_select %p364, %s361, 5
      %s366 = smul.addr %s363, 6
      %s367 = sadd.s32 %s365, %s366
      %s368 = smul.addr %s367, 4
      %s369 = scalar_lea.vmem %s10, %s368
      %p370 = pneg %p280
      %p371 = pneg %p277
      %s372 = smul.u32 3, %s28
      %p373 = scmp.lt.s32.totalorder %s27, 1
      %s374 = scalar_select %p373, %s27, 1
      %p375 = scmp.lt.s32.totalorder %s372, 5
      %s376 = scalar_select %p375, %s372, 5
      %s377 = smul.addr %s374, 6
      %s378 = sadd.s32 %s376, %s377
      %s379 = smul.addr %s378, 4
      %s380 = scalar_lea.vmem %s11, %s379
      %p381 = scmp.lt.s32.totalorder %s28, 1
      %s382 = scalar_select %p381, %s28, 1
      %s383 = smul.addr %s382, 11
      %s384 = scalar_lea.vmem %s1, %s383
      %s385 = smul.u32 3, %s28
      %p386 = scmp.lt.s32.totalorder %s27, 1
      %s387 = scalar_select %p386, %s27, 1
      %p388 = scmp.lt.s32.totalorder %s385, 5
      %s389 = scalar_select %p388, %s385, 5
      %s390 = smul.addr %s387, 6
      %s391 = sadd.s32 %s389, %s390
      %s392 = smul.addr %s391, 4
      %s393 = scalar_lea.vmem %s10, %s392
      %s394 = smul.u32 3, %s28
      %s395 = smul.u32 3, %s28
      %p396 = scmp.lt.s32.totalorder %s27, 1
      %s397 = scalar_select %p396, %s27, 1
      %p398 = scmp.lt.s32.totalorder %s395, 5
      %s399 = scalar_select %p398, %s395, 5
      %s400 = smul.addr %s397, 6
      %s401 = sadd.s32 %s399, %s400
      %s402 = smul.addr %s401, 4
      %s403 = scalar_lea.vmem %s11, %s402
      %s404 = smul.u32 3, %s28
      %p406 = scmp.eq.s32.totalorder %s28, 0
      // Predicated region
      $region57: #{_lambda_.1} parent=55 // pred_check
        %p407 = pneg %p406
      $region58: #{_lambda_.1} parent=55 // pred_check_branch
        %409 = sbr.rel (%p407) target = $region60
      $region59: #{_lambda_.1} parent=55 // pred_region
        %s410 = smul.u32 %s27, 16
        %s411 = smul.addr %s410, 8
        %s412 = scalar_lea.vmem %s0, %s411
        %p414 = scmp.lt.u32.totalorder 104, 8
        %p415 = pneg %p414
        // Predicated region
        $region61: #{_lambda_.1} parent=59 // pred_check
          _
        $region62: #{_lambda_.1} parent=59 // pred_check_branch
          %417 = sbr.rel (%p414) target = $region64
        $region63: #{_lambda_.1} parent=59 // pred_region
          %s432 = sand.u32 104, 7
          %p433 = scmp.eq.s32.totalorder %s432, 0
          // Predicated region
          $region76: #{_lambda_.1} parent=63 // pred_check
            %p434 = pneg %p433
          $region77: #{_lambda_.1} parent=63 // pred_check_branch
            %436 = sbr.rel (%p434) target = $region79
          $region78: #{_lambda_.1} parent=63 // pred_region
            loop: start=0, step=1, limit=1
            $region80: #{_lambda_.1} parent=78 // loop_pre_header
              _
            $region81: #{_lambda_.1} parent=78 // loop_header
              %s438 = sphi 0, %s442
              %p439 = scmp.ge.s32.totalorder %s438, 1
              %s443 = sphi %s412, %s412
              %s444 = sphi [#allocation2], [#allocation2]
            $region82: #{_lambda_.1} parent=78 // loop_header_branch
              %441 = sbr.rel (%p439) target = $region86
            $region83: #{_lambda_.1} parent=78 // loop_body
              %v445 = vld [vmem:[%s443] sm:$0xff]
              %446 = vst [vmem:[%s444] sm:$0xff] %v445
              %v447 = vld [vmem:[%s443 + $0x8] sm:$0xff]
              %448 = vst [vmem:[%s444 + $0x8] sm:$0xff] %v447
              %v449 = vld [vmem:[%s443 + $0x10] sm:$0xff]
              %450 = vst [vmem:[%s444 + $0x10] sm:$0xff] %v449
              %v451 = vld [vmem:[%s443 + $0x18] sm:$0xff]
              %452 = vst [vmem:[%s444 + $0x18] sm:$0xff] %v451
              %v453 = vld [vmem:[%s443 + $0x20] sm:$0xff]
              %454 = vst [vmem:[%s444 + $0x20] sm:$0xff] %v453
              %v455 = vld [vmem:[%s443 + $0x28] sm:$0xff]
              %456 = vst [vmem:[%s444 + $0x28] sm:$0xff] %v455
              %v457 = vld [vmem:[%s443 + $0x30] sm:$0xff]
              %458 = vst [vmem:[%s444 + $0x30] sm:$0xff] %v457
              %v459 = vld [vmem:[%s443 + $0x38] sm:$0xff]
              %460 = vst [vmem:[%s444 + $0x38] sm:$0xff] %v459
              %v461 = vld [vmem:[%s443 + $0x40] sm:$0xff]
              %462 = vst [vmem:[%s444 + $0x40] sm:$0xff] %v461
              %v463 = vld [vmem:[%s443 + $0x48] sm:$0xff]
              %464 = vst [vmem:[%s444 + $0x48] sm:$0xff] %v463
              %v465 = vld [vmem:[%s443 + $0x50] sm:$0xff]
              %466 = vst [vmem:[%s444 + $0x50] sm:$0xff] %v465
              %v467 = vld [vmem:[%s443 + $0x58] sm:$0xff]
              %468 = vst [vmem:[%s444 + $0x58] sm:$0xff] %v467
              %v469 = vld [vmem:[%s443 + $0x60] sm:$0xff]
              %470 = vst [vmem:[%s444 + $0x60] sm:$0xff] %v469
            $region84: #{_lambda_.1} parent=78 // loop_footer
              %s442 = sadd.s32 1, %s438
            $region85: #{_lambda_.1} parent=78 // loop_footer_branch
              %437 = sbr.rel target = $region81
            $region86: #{_lambda_.1} parent=78 // loop_exit
              _
          $region79: #{_lambda_.1} parent=63 // pred_fallthru
            _
          %p471 = pneg %p433
          // Predicated region
          $region87: #{_lambda_.1} parent=63 // pred_check
            _
          $region88: #{_lambda_.1} parent=63 // pred_check_branch
            %473 = sbr.rel (%p433) target = $region90
          $region89: #{_lambda_.1} parent=63 // pred_region
            %s474 = sand.u32 104, 7
          $region90: #{_lambda_.1} parent=63 // pred_fallthru
            _
        $region64: #{_lambda_.1} parent=59 // pred_fallthru
          _
        // Predicated region
        $region65: #{_lambda_.1} parent=59 // pred_check
          %p418 = pneg %p414
        $region66: #{_lambda_.1} parent=59 // pred_check_branch
          %420 = sbr.rel (%p418) target = $region68
        $region67: #{_lambda_.1} parent=59 // pred_region
          %s421 = sshllo.u32 0, 104
          loop: start=0, step=1, limit=1
          $region69: #{_lambda_.1} parent=67 // loop_pre_header
            _
          $region70: #{_lambda_.1} parent=67 // loop_header
            %s423 = sphi 0, %s427
            %p424 = scmp.ge.s32.totalorder %s423, 1
            %s428 = sphi %s412, %s412
            %s429 = sphi [#allocation2], [#allocation2]
          $region71: #{_lambda_.1} parent=67 // loop_header_branch
            %426 = sbr.rel (%p424) target = $region75
          $region72: #{_lambda_.1} parent=67 // loop_body
            %v430 = vld [vmem:[%s428] sm:%s421]
            %431 = vst [vmem:[%s429] sm:%s421] %v430
          $region73: #{_lambda_.1} parent=67 // loop_footer
            %s427 = sadd.s32 1, %s423
          $region74: #{_lambda_.1} parent=67 // loop_footer_branch
            %422 = sbr.rel target = $region70
          $region75: #{_lambda_.1} parent=67 // loop_exit
            _
        $region68: #{_lambda_.1} parent=59 // pred_fallthru
          _
        // Predicated region
        $region91: #{_lambda_.1} parent=59 // pred_check
          _
        $region92: #{_lambda_.1} parent=59 // pred_check_branch
          %477 = sbr.rel (0) target = $region94
        $region93: #{_lambda_.1} parent=59 // pred_region
          %478 = vsyncadd [#allocation4], 1664
        $region94: #{_lambda_.1} parent=59 // pred_fallthru
          _
      $region60: #{_lambda_.1} parent=55 // pred_fallthru
        _
      %p479 = scmp.lt.s32.totalorder %s28, 0
      %s480 = ssub.s32 0, %s28
      %s481 = scalar_select %p479, %s480, %s28
      %s482 = sand.u32 %s481, 1
      %s483 = ssub.s32 0, %s482
      %s484 = scalar_select %p479, %s483, %s482
      %p485 = scmp.ne.s32.totalorder %s484, 0
      %p486 = scmp.lt.s32.totalorder %s484, 0
      %p487 = pnand %p486, %p485
      %p488 = pneg %p487
      %s489 = sadd.s32 %s484, 2
      %s490 = scalar_select %p488, %s489, %s484
      %s491 = smul.u32 %s490, 13
      %s492 = smul.addr %s491, 8
      %s493 = scalar_lea.vmem [#allocation2], %s492
      %s494 = scalar_lea.sflag [#allocation4], %s490
      %s495 = smul.u32 8, 1
      %s496 = smul.u32 %s495, 13
      %s497 = sshll.u32 %s496, 4
      %498 = dma.done %s494, %s497
      %s499 = sadd.s32 %s28, 1
      %p500 = scmp.lt.s32.totalorder %s499, 2
      // Predicated region
      $region95: #{_lambda_.1} parent=55 // pred_check
        %p501 = pneg %p500
      $region96: #{_lambda_.1} parent=55 // pred_check_branch
        %503 = sbr.rel (%p501) target = $region98
      $region97: #{_lambda_.1} parent=55 // pred_region
        %s504 = smul.u32 %s499, 384
        %s505 = ssub.s32 1, %s490
        %s506 = sshra.s32 %s504, 7
        %s507 = sand.u32 %s504, 127
        %s508 = smul.u32 %s27, 16
        %s509 = sadd.s32 %s506, %s508
        %s510 = smul.addr %s509, 8
        %s511 = scalar_lea.vmem %s0, %s510
        %s512 = smul.u32 %s505, 13
        %s513 = smul.addr %s512, 8
        %s514 = scalar_lea.vmem [#allocation2], %s513
        %s515 = scalar_lea.sflag [#allocation4], %s505
        %p517 = scmp.lt.u32.totalorder 104, 8
        %p518 = pneg %p517
        // Predicated region
        $region99: #{_lambda_.1} parent=97 // pred_check
          _
        $region100: #{_lambda_.1} parent=97 // pred_check_branch
          %520 = sbr.rel (%p517) target = $region102
        $region101: #{_lambda_.1} parent=97 // pred_region
          %s535 = sand.u32 104, 7
          %p536 = scmp.eq.s32.totalorder %s535, 0
          // Predicated region
          $region114: #{_lambda_.1} parent=101 // pred_check
            %p537 = pneg %p536
          $region115: #{_lambda_.1} parent=101 // pred_check_branch
            %539 = sbr.rel (%p537) target = $region117
          $region116: #{_lambda_.1} parent=101 // pred_region
            loop: start=0, step=1, limit=1
            $region118: #{_lambda_.1} parent=116 // loop_pre_header
              _
            $region119: #{_lambda_.1} parent=116 // loop_header
              %s541 = sphi 0, %s545
              %p542 = scmp.ge.s32.totalorder %s541, 1
              %s546 = sphi %s511, %s511
              %s547 = sphi %s514, %s514
            $region120: #{_lambda_.1} parent=116 // loop_header_branch
              %544 = sbr.rel (%p542) target = $region124
            $region121: #{_lambda_.1} parent=116 // loop_body
              %v548 = vld [vmem:[%s546] sm:$0xff]
              %549 = vst [vmem:[%s547] sm:$0xff] %v548
              %v550 = vld [vmem:[%s546 + $0x8] sm:$0xff]
              %551 = vst [vmem:[%s547 + $0x8] sm:$0xff] %v550
              %v552 = vld [vmem:[%s546 + $0x10] sm:$0xff]
              %553 = vst [vmem:[%s547 + $0x10] sm:$0xff] %v552
              %v554 = vld [vmem:[%s546 + $0x18] sm:$0xff]
              %555 = vst [vmem:[%s547 + $0x18] sm:$0xff] %v554
              %v556 = vld [vmem:[%s546 + $0x20] sm:$0xff]
              %557 = vst [vmem:[%s547 + $0x20] sm:$0xff] %v556
              %v558 = vld [vmem:[%s546 + $0x28] sm:$0xff]
              %559 = vst [vmem:[%s547 + $0x28] sm:$0xff] %v558
              %v560 = vld [vmem:[%s546 + $0x30] sm:$0xff]
              %561 = vst [vmem:[%s547 + $0x30] sm:$0xff] %v560
              %v562 = vld [vmem:[%s546 + $0x38] sm:$0xff]
              %563 = vst [vmem:[%s547 + $0x38] sm:$0xff] %v562
              %v564 = vld [vmem:[%s546 + $0x40] sm:$0xff]
              %565 = vst [vmem:[%s547 + $0x40] sm:$0xff] %v564
              %v566 = vld [vmem:[%s546 + $0x48] sm:$0xff]
              %567 = vst [vmem:[%s547 + $0x48] sm:$0xff] %v566
              %v568 = vld [vmem:[%s546 + $0x50] sm:$0xff]
              %569 = vst [vmem:[%s547 + $0x50] sm:$0xff] %v568
              %v570 = vld [vmem:[%s546 + $0x58] sm:$0xff]
              %571 = vst [vmem:[%s547 + $0x58] sm:$0xff] %v570
              %v572 = vld [vmem:[%s546 + $0x60] sm:$0xff]
              %573 = vst [vmem:[%s547 + $0x60] sm:$0xff] %v572
            $region122: #{_lambda_.1} parent=116 // loop_footer
              %s545 = sadd.s32 1, %s541
            $region123: #{_lambda_.1} parent=116 // loop_footer_branch
              %540 = sbr.rel target = $region119
            $region124: #{_lambda_.1} parent=116 // loop_exit
              _
          $region117: #{_lambda_.1} parent=101 // pred_fallthru
            _
          %p574 = pneg %p536
          // Predicated region
          $region125: #{_lambda_.1} parent=101 // pred_check
            _
          $region126: #{_lambda_.1} parent=101 // pred_check_branch
            %576 = sbr.rel (%p536) target = $region128
          $region127: #{_lambda_.1} parent=101 // pred_region
            %s577 = sand.u32 104, 7
          $region128: #{_lambda_.1} parent=101 // pred_fallthru
            _
        $region102: #{_lambda_.1} parent=97 // pred_fallthru
          _
        // Predicated region
        $region103: #{_lambda_.1} parent=97 // pred_check
          %p521 = pneg %p517
        $region104: #{_lambda_.1} parent=97 // pred_check_branch
          %523 = sbr.rel (%p521) target = $region106
        $region105: #{_lambda_.1} parent=97 // pred_region
          %s524 = sshllo.u32 0, 104
          loop: start=0, step=1, limit=1
          $region107: #{_lambda_.1} parent=105 // loop_pre_header
            _
          $region108: #{_lambda_.1} parent=105 // loop_header
            %s526 = sphi 0, %s530
            %p527 = scmp.ge.s32.totalorder %s526, 1
            %s531 = sphi %s511, %s511
            %s532 = sphi %s514, %s514
          $region109: #{_lambda_.1} parent=105 // loop_header_branch
            %529 = sbr.rel (%p527) target = $region113
          $region110: #{_lambda_.1} parent=105 // loop_body
            %v533 = vld [vmem:[%s531] sm:%s524]
            %534 = vst [vmem:[%s532] sm:%s524] %v533
          $region111: #{_lambda_.1} parent=105 // loop_footer
            %s530 = sadd.s32 1, %s526
          $region112: #{_lambda_.1} parent=105 // loop_footer_branch
            %525 = sbr.rel target = $region108
          $region113: #{_lambda_.1} parent=105 // loop_exit
            _
        $region106: #{_lambda_.1} parent=97 // pred_fallthru
          _
        // Predicated region
        $region129: #{_lambda_.1} parent=97 // pred_check
          _
        $region130: #{_lambda_.1} parent=97 // pred_check_branch
          %580 = sbr.rel (0) target = $region132
        $region131: #{_lambda_.1} parent=97 // pred_region
          %581 = vsyncadd %s515, 1664
        $region132: #{_lambda_.1} parent=97 // pred_fallthru
          _
      $region98: #{_lambda_.1} parent=55 // pred_fallthru
        _
      %v582 = vld [vmem:[%s2] sm:$0xff]
      %v583 = vld [vmem:[%s4] sm:$0xff]
      %v584 = vld [vmem:[%s3] sm:$0xff]
      %v585 = vld [vmem:[%s5] sm:$0xff]
      %v586 = vld [vmem:[%s384] sm:$0xff]
      %v587 = vld [vmem:[%s384 + $0x8] sm:$0x7]
      %v588 = vld [vmem:[%s493] sm:$0xff]
      %v589 = vld [vmem:[%s493 + $0x8] sm:$0xff]
      %v590 = vld [vmem:[%s493 + $0x10] sm:$0xff]
      %v591 = vld [vmem:[%s493 + $0x18] sm:$0xff]
      %v592 = vld [vmem:[%s493 + $0x20] sm:$0xff]
      %v593 = vld [vmem:[%s493 + $0x28] sm:$0xff]
      %v594 = vld [vmem:[%s493 + $0x30] sm:$0xff]
      %v595 = vld [vmem:[%s493 + $0x38] sm:$0xff]
      %v596 = vld [vmem:[%s493 + $0x40] sm:$0xff]
      %v597 = vld [vmem:[%s493 + $0x48] sm:$0xff]
      %v598 = vld [vmem:[%s493 + $0x50] sm:$0xff]
      %600 = vset.pattern.permute.xlu0 0
      %601 = vperm.xlu0 %600, %v582
      %v602 = vpop.permute.xlu0 %601
      %v604 = vmul.f32 %v588, %v602
      %v605 = vmul.f32 %v589, %v602
      %v606 = vmul.f32 %v590, %v602
      %v607 = vmul.f32 %v591, %v602
      %v608 = vmul.f32 %v592, %v602
      %v609 = vmul.f32 %v593, %v602
      %v610 = vmul.f32 %v594, %v602
      %v611 = vmul.f32 %v595, %v602
      %v612 = vmul.f32 %v596, %v602
      %v613 = vmul.f32 %v597, %v602
      %v614 = vmul.f32 %v598, %v602
      %v615 = vld [vmem:[%s493] sm:$0xff]
      %v616 = vld [vmem:[%s493 + $0x8] sm:$0xff]
      %v617 = vld [vmem:[%s493 + $0x10] sm:$0xff]
      %v618 = vld [vmem:[%s493 + $0x18] sm:$0xff]
      %v619 = vld [vmem:[%s493 + $0x20] sm:$0xff]
      %v620 = vld [vmem:[%s493 + $0x28] sm:$0xff]
      %v621 = vld [vmem:[%s493 + $0x30] sm:$0xff]
      %v622 = vld [vmem:[%s493 + $0x38] sm:$0xff]
      %v623 = vld [vmem:[%s493 + $0x40] sm:$0xff]
      %v624 = vld [vmem:[%s493 + $0x48] sm:$0xff]
      %v625 = vld [vmem:[%s493 + $0x50] sm:$0xff]
      %v626 = vld [vmem:[%s493 + $0x58] sm:$0xff]
      %627 = vset.pattern.permute.xlu0 1
      %628 = vperm.xlu0 %627, %v582
      %v629 = vpop.permute.xlu0 %628
      %v631 = vmul.f32 %v615, %v629
      %v632 = vmul.f32 %v616, %v629
      %v633 = vmul.f32 %v617, %v629
      %v634 = vmul.f32 %v618, %v629
      %v635 = vmul.f32 %v619, %v629
      %v636 = vmul.f32 %v620, %v629
      %v637 = vmul.f32 %v621, %v629
      %v638 = vmul.f32 %v622, %v629
      %v639 = vmul.f32 %v623, %v629
      %v640 = vmul.f32 %v624, %v629
      %v641 = vmul.f32 %v625, %v629
      %v642 = vmul.f32 %v626, %v629
      %655 = vrot.lane.b32.xlu0 %v631, 127
      %v656 = vpop.permute.xlu0 %655
      %657 = vrot.lane.b32.xlu0 %v632, 127
      %v658 = vpop.permute.xlu0 %657
      %659 = vrot.lane.b32.xlu0 %v633, 127
      %v660 = vpop.permute.xlu0 %659
      %661 = vrot.lane.b32.xlu0 %v634, 127
      %v662 = vpop.permute.xlu0 %661
      %663 = vrot.lane.b32.xlu0 %v635, 127
      %v664 = vpop.permute.xlu0 %663
      %665 = vrot.lane.b32.xlu0 %v636, 127
      %v666 = vpop.permute.xlu0 %665
      %667 = vrot.lane.b32.xlu0 %v637, 127
      %v668 = vpop.permute.xlu0 %667
      %669 = vrot.lane.b32.xlu0 %v638, 127
      %v670 = vpop.permute.xlu0 %669
      %671 = vrot.lane.b32.xlu0 %v639, 127
      %v672 = vpop.permute.xlu0 %671
      %673 = vrot.lane.b32.xlu0 %v640, 127
      %v674 = vpop.permute.xlu0 %673
      %675 = vrot.lane.b32.xlu0 %v641, 127
      %v676 = vpop.permute.xlu0 %675
      %677 = vrot.lane.b32.xlu0 %v642, 127
      %v678 = vpop.permute.xlu0 %677
      %vm679 = vcmask 1039360
      %v680 = vsel %vm679, %v656, %v658
      %v681 = vsel %vm679, %v658, %v660
      %v682 = vsel %vm679, %v660, %v662
      %v683 = vsel %vm679, %v662, %v664
      %v684 = vsel %vm679, %v664, %v666
      %v685 = vsel %vm679, %v666, %v668
      %v686 = vsel %vm679, %v668, %v670
      %v687 = vsel %vm679, %v670, %v672
      %v688 = vsel %vm679, %v672, %v674
      %v689 = vsel %vm679, %v674, %v676
      %v690 = vsel %vm679, %v676, %v678
      %v702 = vadd.f32 %v604, %v680
      %v703 = vadd.f32 %v605, %v681
      %v704 = vadd.f32 %v606, %v682
      %v705 = vadd.f32 %v607, %v683
      %v706 = vadd.f32 %v608, %v684
      %v707 = vadd.f32 %v609, %v685
      %v708 = vadd.f32 %v610, %v686
      %v709 = vadd.f32 %v611, %v687
      %v710 = vadd.f32 %v612, %v688
      %v711 = vadd.f32 %v613, %v689
      %v712 = vadd.f32 %v614, %v690
      %713 = vset.pattern.permute.xlu0 2
      %714 = vperm.xlu0 %713, %v582
      %v715 = vpop.permute.xlu0 %714
      %v717 = vmul.f32 %v615, %v715
      %v718 = vmul.f32 %v616, %v715
      %v719 = vmul.f32 %v617, %v715
      %v720 = vmul.f32 %v618, %v715
      %v721 = vmul.f32 %v619, %v715
      %v722 = vmul.f32 %v620, %v715
      %v723 = vmul.f32 %v621, %v715
      %v724 = vmul.f32 %v622, %v715
      %v725 = vmul.f32 %v623, %v715
      %v726 = vmul.f32 %v624, %v715
      %v727 = vmul.f32 %v625, %v715
      %v728 = vmul.f32 %v626, %v715
      %741 = vrot.lane.b32.xlu0 %v717, 126
      %v742 = vpop.permute.xlu0 %741
      %743 = vrot.lane.b32.xlu0 %v718, 126
      %v744 = vpop.permute.xlu0 %743
      %745 = vrot.lane.b32.xlu0 %v719, 126
      %v746 = vpop.permute.xlu0 %745
      %747 = vrot.lane.b32.xlu0 %v720, 126
      %v748 = vpop.permute.xlu0 %747
      %749 = vrot.lane.b32.xlu0 %v721, 126
      %v750 = vpop.permute.xlu0 %749
      %751 = vrot.lane.b32.xlu0 %v722, 126
      %v752 = vpop.permute.xlu0 %751
      %753 = vrot.lane.b32.xlu0 %v723, 126
      %v754 = vpop.permute.xlu0 %753
      %755 = vrot.lane.b32.xlu0 %v724, 126
      %v756 = vpop.permute.xlu0 %755
      %757 = vrot.lane.b32.xlu0 %v725, 126
      %v758 = vpop.permute.xlu0 %757
      %759 = vrot.lane.b32.xlu0 %v726, 126
      %v760 = vpop.permute.xlu0 %759
      %761 = vrot.lane.b32.xlu0 %v727, 126
      %v762 = vpop.permute.xlu0 %761
      %763 = vrot.lane.b32.xlu0 %v728, 126
      %v764 = vpop.permute.xlu0 %763
      %vm765 = vcmask 1031168
      %v766 = vsel %vm765, %v742, %v744
      %v767 = vsel %vm765, %v744, %v746
      %v768 = vsel %vm765, %v746, %v748
      %v769 = vsel %vm765, %v748, %v750
      %v770 = vsel %vm765, %v750, %v752
      %v771 = vsel %vm765, %v752, %v754
      %v772 = vsel %vm765, %v754, %v756
      %v773 = vsel %vm765, %v756, %v758
      %v774 = vsel %vm765, %v758, %v760
      %v775 = vsel %vm765, %v760, %v762
      %v776 = vsel %vm765, %v762, %v764
      %v788 = vadd.f32 %v702, %v766
      %v789 = vadd.f32 %v703, %v767
      %v790 = vadd.f32 %v704, %v768
      %v791 = vadd.f32 %v705, %v769
      %v792 = vadd.f32 %v706, %v770
      %v793 = vadd.f32 %v707, %v771
      %v794 = vadd.f32 %v708, %v772
      %v795 = vadd.f32 %v709, %v773
      %v796 = vadd.f32 %v710, %v774
      %v797 = vadd.f32 %v711, %v775
      %v798 = vadd.f32 %v712, %v776
      %799 = vset.pattern.permute.xlu0 3
      %800 = vperm.xlu0 %799, %v582
      %v801 = vpop.permute.xlu0 %800
      %v803 = vmul.f32 %v615, %v801
      %v804 = vmul.f32 %v616, %v801
      %v805 = vmul.f32 %v617, %v801
      %v806 = vmul.f32 %v618, %v801
      %v807 = vmul.f32 %v619, %v801
      %v808 = vmul.f32 %v620, %v801
      %v809 = vmul.f32 %v621, %v801
      %v810 = vmul.f32 %v622, %v801
      %v811 = vmul.f32 %v623, %v801
      %v812 = vmul.f32 %v624, %v801
      %v813 = vmul.f32 %v625, %v801
      %v814 = vmul.f32 %v626, %v801
      %827 = vrot.lane.b32.xlu0 %v803, 125
      %v828 = vpop.permute.xlu0 %827
      %829 = vrot.lane.b32.xlu0 %v804, 125
      %v830 = vpop.permute.xlu0 %829
      %831 = vrot.lane.b32.xlu0 %v805, 125
      %v832 = vpop.permute.xlu0 %831
      %833 = vrot.lane.b32.xlu0 %v806, 125
      %v834 = vpop.permute.xlu0 %833
      %835 = vrot.lane.b32.xlu0 %v807, 125
      %v836 = vpop.permute.xlu0 %835
      %837 = vrot.lane.b32.xlu0 %v808, 125
      %v838 = vpop.permute.xlu0 %837
      %839 = vrot.lane.b32.xlu0 %v809, 125
      %v840 = vpop.permute.xlu0 %839
      %841 = vrot.lane.b32.xlu0 %v810, 125
      %v842 = vpop.permute.xlu0 %841
      %843 = vrot.lane.b32.xlu0 %v811, 125
      %v844 = vpop.permute.xlu0 %843
      %845 = vrot.lane.b32.xlu0 %v812, 125
      %v846 = vpop.permute.xlu0 %845
      %847 = vrot.lane.b32.xlu0 %v813, 125
      %v848 = vpop.permute.xlu0 %847
      %849 = vrot.lane.b32.xlu0 %v814, 125
      %v850 = vpop.permute.xlu0 %849
      %vm851 = vcmask 1022976
      %v852 = vsel %vm851, %v828, %v830
      %v853 = vsel %vm851, %v830, %v832
      %v854 = vsel %vm851, %v832, %v834
      %v855 = vsel %vm851, %v834, %v836
      %v856 = vsel %vm851, %v836, %v838
      %v857 = vsel %vm851, %v838, %v840
      %v858 = vsel %vm851, %v840, %v842
      %v859 = vsel %vm851, %v842, %v844
      %v860 = vsel %vm851, %v844, %v846
      %v861 = vsel %vm851, %v846, %v848
      %v862 = vsel %vm851, %v848, %v850
      %v874 = vadd.f32 %v788, %v852
      %v875 = vadd.f32 %v789, %v853
      %v876 = vadd.f32 %v790, %v854
      %v877 = vadd.f32 %v791, %v855
      %v878 = vadd.f32 %v792, %v856
      %v879 = vadd.f32 %v793, %v857
      %v880 = vadd.f32 %v794, %v858
      %v881 = vadd.f32 %v795, %v859
      %v882 = vadd.f32 %v796, %v860
      %v883 = vadd.f32 %v797, %v861
      %v884 = vadd.f32 %v798, %v862
      %885 = vset.pattern.permute.xlu0 4
      %886 = vperm.xlu0 %885, %v582
      %v887 = vpop.permute.xlu0 %886
      %v889 = vmul.f32 %v615, %v887
      %v890 = vmul.f32 %v616, %v887
      %v891 = vmul.f32 %v617, %v887
      %v892 = vmul.f32 %v618, %v887
      %v893 = vmul.f32 %v619, %v887
      %v894 = vmul.f32 %v620, %v887
      %v895 = vmul.f32 %v621, %v887
      %v896 = vmul.f32 %v622, %v887
      %v897 = vmul.f32 %v623, %v887
      %v898 = vmul.f32 %v624, %v887
      %v899 = vmul.f32 %v625, %v887
      %v900 = vmul.f32 %v626, %v887
      %913 = vrot.lane.b32.xlu0 %v889, 124
      %v914 = vpop.permute.xlu0 %913
      %915 = vrot.lane.b32.xlu0 %v890, 124
      %v916 = vpop.permute.xlu0 %915
      %917 = vrot.lane.b32.xlu0 %v891, 124
      %v918 = vpop.permute.xlu0 %917
      %919 = vrot.lane.b32.xlu0 %v892, 124
      %v920 = vpop.permute.xlu0 %919
      %921 = vrot.lane.b32.xlu0 %v893, 124
      %v922 = vpop.permute.xlu0 %921
      %923 = vrot.lane.b32.xlu0 %v894, 124
      %v924 = vpop.permute.xlu0 %923
      %925 = vrot.lane.b32.xlu0 %v895, 124
      %v926 = vpop.permute.xlu0 %925
      %927 = vrot.lane.b32.xlu0 %v896, 124
      %v928 = vpop.permute.xlu0 %927
      %929 = vrot.lane.b32.xlu0 %v897, 124
      %v930 = vpop.permute.xlu0 %929
      %931 = vrot.lane.b32.xlu0 %v898, 124
      %v932 = vpop.permute.xlu0 %931
      %933 = vrot.lane.b32.xlu0 %v899, 124
      %v934 = vpop.permute.xlu0 %933
      %935 = vrot.lane.b32.xlu0 %v900, 124
      %v936 = vpop.permute.xlu0 %935
      %vm937 = vcmask 1014784
      %v938 = vsel %vm937, %v914, %v916
      %v939 = vsel %vm937, %v916, %v918
      %v940 = vsel %vm937, %v918, %v920
      %v941 = vsel %vm937, %v920, %v922
      %v942 = vsel %vm937, %v922, %v924
      %v943 = vsel %vm937, %v924, %v926
      %v944 = vsel %vm937, %v926, %v928
      %v945 = vsel %vm937, %v928, %v930
      %v946 = vsel %vm937, %v930, %v932
      %v947 = vsel %vm937, %v932, %v934
      %v948 = vsel %vm937, %v934, %v936
      %v960 = vadd.f32 %v874, %v938
      %v961 = vadd.f32 %v875, %v939
      %v962 = vadd.f32 %v876, %v940
      %v963 = vadd.f32 %v877, %v941
      %v964 = vadd.f32 %v878, %v942
      %v965 = vadd.f32 %v879, %v943
      %v966 = vadd.f32 %v880, %v944
      %v967 = vadd.f32 %v881, %v945
      %v968 = vadd.f32 %v882, %v946
      %v969 = vadd.f32 %v883, %v947
      %v970 = vadd.f32 %v884, %v948
      %971 = vset.pattern.permute.xlu0 5
      %972 = vperm.xlu0 %971, %v582
      %v973 = vpop.permute.xlu0 %972
      %v975 = vmul.f32 %v615, %v973
      %v976 = vmul.f32 %v616, %v973
      %v977 = vmul.f32 %v617, %v973
      %v978 = vmul.f32 %v618, %v973
      %v979 = vmul.f32 %v619, %v973
      %v980 = vmul.f32 %v620, %v973
      %v981 = vmul.f32 %v621, %v973
      %v982 = vmul.f32 %v622, %v973
      %v983 = vmul.f32 %v623, %v973
      %v984 = vmul.f32 %v624, %v973
      %v985 = vmul.f32 %v625, %v973
      %v986 = vmul.f32 %v626, %v973
      %999 = vrot.lane.b32.xlu0 %v975, 80
      %v1000 = vpop.permute.xlu0 %999
      %1001 = vrot.lane.b32.xlu0 %v976, 80
      %v1002 = vpop.permute.xlu0 %1001
      %1003 = vrot.lane.b32.xlu0 %v977, 80
      %v1004 = vpop.permute.xlu0 %1003
      %1005 = vrot.lane.b32.xlu0 %v978, 80
      %v1006 = vpop.permute.xlu0 %1005
      %1007 = vrot.lane.b32.xlu0 %v979, 80
      %v1008 = vpop.permute.xlu0 %1007
      %1009 = vrot.lane.b32.xlu0 %v980, 80
      %v1010 = vpop.permute.xlu0 %1009
      %1011 = vrot.lane.b32.xlu0 %v981, 80
      %v1012 = vpop.permute.xlu0 %1011
      %1013 = vrot.lane.b32.xlu0 %v982, 80
      %v1014 = vpop.permute.xlu0 %1013
      %1015 = vrot.lane.b32.xlu0 %v983, 80
      %v1016 = vpop.permute.xlu0 %1015
      %1017 = vrot.lane.b32.xlu0 %v984, 80
      %v1018 = vpop.permute.xlu0 %1017
      %1019 = vrot.lane.b32.xlu0 %v985, 80
      %v1020 = vpop.permute.xlu0 %1019
      %1021 = vrot.lane.b32.xlu0 %v986, 80
      %v1022 = vpop.permute.xlu0 %1021
      %vm1023 = vcmask 654336
      %v1024 = vsel %vm1023, %v1000, %v1002
      %v1025 = vsel %vm1023, %v1002, %v1004
      %v1026 = vsel %vm1023, %v1004, %v1006
      %v1027 = vsel %vm1023, %v1006, %v1008
      %v1028 = vsel %vm1023, %v1008, %v1010
      %v1029 = vsel %vm1023, %v1010, %v1012
      %v1030 = vsel %vm1023, %v1012, %v1014
      %v1031 = vsel %vm1023, %v1014, %v1016
      %v1032 = vsel %vm1023, %v1016, %v1018
      %v1033 = vsel %vm1023, %v1018, %v1020
      %v1034 = vsel %vm1023, %v1020, %v1022
      %v1046 = vadd.f32 %v960, %v1024
      %v1047 = vadd.f32 %v961, %v1025
      %v1048 = vadd.f32 %v962, %v1026
      %v1049 = vadd.f32 %v963, %v1027
      %v1050 = vadd.f32 %v964, %v1028
      %v1051 = vadd.f32 %v965, %v1029
      %v1052 = vadd.f32 %v966, %v1030
      %v1053 = vadd.f32 %v967, %v1031
      %v1054 = vadd.f32 %v968, %v1032
      %v1055 = vadd.f32 %v969, %v1033
      %v1056 = vadd.f32 %v970, %v1034
      %1057 = vset.pattern.permute.xlu0 6
      %1058 = vperm.xlu0 %1057, %v582
      %v1059 = vpop.permute.xlu0 %1058
      %v1061 = vmul.f32 %v615, %v1059
      %v1062 = vmul.f32 %v616, %v1059
      %v1063 = vmul.f32 %v617, %v1059
      %v1064 = vmul.f32 %v618, %v1059
      %v1065 = vmul.f32 %v619, %v1059
      %v1066 = vmul.f32 %v620, %v1059
      %v1067 = vmul.f32 %v621, %v1059
      %v1068 = vmul.f32 %v622, %v1059
      %v1069 = vmul.f32 %v623, %v1059
      %v1070 = vmul.f32 %v624, %v1059
      %v1071 = vmul.f32 %v625, %v1059
      %v1072 = vmul.f32 %v626, %v1059
      %1085 = vrot.lane.b32.xlu0 %v1061, 79
      %v1086 = vpop.permute.xlu0 %1085
      %1087 = vrot.lane.b32.xlu0 %v1062, 79
      %v1088 = vpop.permute.xlu0 %1087
      %1089 = vrot.lane.b32.xlu0 %v1063, 79
      %v1090 = vpop.permute.xlu0 %1089
      %1091 = vrot.lane.b32.xlu0 %v1064, 79
      %v1092 = vpop.permute.xlu0 %1091
      %1093 = vrot.lane.b32.xlu0 %v1065, 79
      %v1094 = vpop.permute.xlu0 %1093
      %1095 = vrot.lane.b32.xlu0 %v1066, 79
      %v1096 = vpop.permute.xlu0 %1095
      %1097 = vrot.lane.b32.xlu0 %v1067, 79
      %v1098 = vpop.permute.xlu0 %1097
      %1099 = vrot.lane.b32.xlu0 %v1068, 79
      %v1100 = vpop.permute.xlu0 %1099
      %1101 = vrot.lane.b32.xlu0 %v1069, 79
      %v1102 = vpop.permute.xlu0 %1101
      %1103 = vrot.lane.b32.xlu0 %v1070, 79
      %v1104 = vpop.permute.xlu0 %1103
      %1105 = vrot.lane.b32.xlu0 %v1071, 79
      %v1106 = vpop.permute.xlu0 %1105
      %1107 = vrot.lane.b32.xlu0 %v1072, 79
      %v1108 = vpop.permute.xlu0 %1107
      %vm1109 = vcmask 646144
      %v1110 = vsel %vm1109, %v1086, %v1088
      %v1111 = vsel %vm1109, %v1088, %v1090
      %v1112 = vsel %vm1109, %v1090, %v1092
      %v1113 = vsel %vm1109, %v1092, %v1094
      %v1114 = vsel %vm1109, %v1094, %v1096
      %v1115 = vsel %vm1109, %v1096, %v1098
      %v1116 = vsel %vm1109, %v1098, %v1100
      %v1117 = vsel %vm1109, %v1100, %v1102
      %v1118 = vsel %vm1109, %v1102, %v1104
      %v1119 = vsel %vm1109, %v1104, %v1106
      %v1120 = vsel %vm1109, %v1106, %v1108
      %v1132 = vadd.f32 %v1046, %v1110
      %v1133 = vadd.f32 %v1047, %v1111
      %v1134 = vadd.f32 %v1048, %v1112
      %v1135 = vadd.f32 %v1049, %v1113
      %v1136 = vadd.f32 %v1050, %v1114
      %v1137 = vadd.f32 %v1051, %v1115
      %v1138 = vadd.f32 %v1052, %v1116
      %v1139 = vadd.f32 %v1053, %v1117
      %v1140 = vadd.f32 %v1054, %v1118
      %v1141 = vadd.f32 %v1055, %v1119
      %v1142 = vadd.f32 %v1056, %v1120
      %1143 = vset.pattern.permute.xlu0 7
      %1144 = vperm.xlu0 %1143, %v582
      %v1145 = vpop.permute.xlu0 %1144
      %v1147 = vmul.f32 %v615, %v1145
      %v1148 = vmul.f32 %v616, %v1145
      %v1149 = vmul.f32 %v617, %v1145
      %v1150 = vmul.f32 %v618, %v1145
      %v1151 = vmul.f32 %v619, %v1145
      %v1152 = vmul.f32 %v620, %v1145
      %v1153 = vmul.f32 %v621, %v1145
      %v1154 = vmul.f32 %v622, %v1145
      %v1155 = vmul.f32 %v623, %v1145
      %v1156 = vmul.f32 %v624, %v1145
      %v1157 = vmul.f32 %v625, %v1145
      %v1158 = vmul.f32 %v626, %v1145
      %1171 = vrot.lane.b32.xlu0 %v1147, 78
      %v1172 = vpop.permute.xlu0 %1171
      %1173 = vrot.lane.b32.xlu0 %v1148, 78
      %v1174 = vpop.permute.xlu0 %1173
      %1175 = vrot.lane.b32.xlu0 %v1149, 78
      %v1176 = vpop.permute.xlu0 %1175
      %1177 = vrot.lane.b32.xlu0 %v1150, 78
      %v1178 = vpop.permute.xlu0 %1177
      %1179 = vrot.lane.b32.xlu0 %v1151, 78
      %v1180 = vpop.permute.xlu0 %1179
      %1181 = vrot.lane.b32.xlu0 %v1152, 78
      %v1182 = vpop.permute.xlu0 %1181
      %1183 = vrot.lane.b32.xlu0 %v1153, 78
      %v1184 = vpop.permute.xlu0 %1183
      %1185 = vrot.lane.b32.xlu0 %v1154, 78
      %v1186 = vpop.permute.xlu0 %1185
      %1187 = vrot.lane.b32.xlu0 %v1155, 78
      %v1188 = vpop.permute.xlu0 %1187
      %1189 = vrot.lane.b32.xlu0 %v1156, 78
      %v1190 = vpop.permute.xlu0 %1189
      %1191 = vrot.lane.b32.xlu0 %v1157, 78
      %v1192 = vpop.permute.xlu0 %1191
      %1193 = vrot.lane.b32.xlu0 %v1158, 78
      %v1194 = vpop.permute.xlu0 %1193
      %vm1195 = vcmask 637952
      %v1196 = vsel %vm1195, %v1172, %v1174
      %v1197 = vsel %vm1195, %v1174, %v1176
      %v1198 = vsel %vm1195, %v1176, %v1178
      %v1199 = vsel %vm1195, %v1178, %v1180
      %v1200 = vsel %vm1195, %v1180, %v1182
      %v1201 = vsel %vm1195, %v1182, %v1184
      %v1202 = vsel %vm1195, %v1184, %v1186
      %v1203 = vsel %vm1195, %v1186, %v1188
      %v1204 = vsel %vm1195, %v1188, %v1190
      %v1205 = vsel %vm1195, %v1190, %v1192
      %v1206 = vsel %vm1195, %v1192, %v1194
      %v1218 = vadd.f32 %v1132, %v1196
      %v1219 = vadd.f32 %v1133, %v1197
      %v1220 = vadd.f32 %v1134, %v1198
      %v1221 = vadd.f32 %v1135, %v1199
      %v1222 = vadd.f32 %v1136, %v1200
      %v1223 = vadd.f32 %v1137, %v1201
      %v1224 = vadd.f32 %v1138, %v1202
      %v1225 = vadd.f32 %v1139, %v1203
      %v1226 = vadd.f32 %v1140, %v1204
      %v1227 = vadd.f32 %v1141, %v1205
      %v1228 = vadd.f32 %v1142, %v1206
      %1229 = vset.pattern.permute.xlu0 8
      %1230 = vperm.xlu0 %1229, %v582
      %v1231 = vpop.permute.xlu0 %1230
      %v1233 = vmul.f32 %v615, %v1231
      %v1234 = vmul.f32 %v616, %v1231
      %v1235 = vmul.f32 %v617, %v1231
      %v1236 = vmul.f32 %v618, %v1231
      %v1237 = vmul.f32 %v619, %v1231
      %v1238 = vmul.f32 %v620, %v1231
      %v1239 = vmul.f32 %v621, %v1231
      %v1240 = vmul.f32 %v622, %v1231
      %v1241 = vmul.f32 %v623, %v1231
      %v1242 = vmul.f32 %v624, %v1231
      %v1243 = vmul.f32 %v625, %v1231
      %v1244 = vmul.f32 %v626, %v1231
      %1257 = vrot.lane.b32.xlu0 %v1233, 77
      %v1258 = vpop.permute.xlu0 %1257
      %1259 = vrot.lane.b32.xlu0 %v1234, 77
      %v1260 = vpop.permute.xlu0 %1259
      %1261 = vrot.lane.b32.xlu0 %v1235, 77
      %v1262 = vpop.permute.xlu0 %1261
      %1263 = vrot.lane.b32.xlu0 %v1236, 77
      %v1264 = vpop.permute.xlu0 %1263
      %1265 = vrot.lane.b32.xlu0 %v1237, 77
      %v1266 = vpop.permute.xlu0 %1265
      %1267 = vrot.lane.b32.xlu0 %v1238, 77
      %v1268 = vpop.permute.xlu0 %1267
      %1269 = vrot.lane.b32.xlu0 %v1239, 77
      %v1270 = vpop.permute.xlu0 %1269
      %1271 = vrot.lane.b32.xlu0 %v1240, 77
      %v1272 = vpop.permute.xlu0 %1271
      %1273 = vrot.lane.b32.xlu0 %v1241, 77
      %v1274 = vpop.permute.xlu0 %1273
      %1275 = vrot.lane.b32.xlu0 %v1242, 77
      %v1276 = vpop.permute.xlu0 %1275
      %1277 = vrot.lane.b32.xlu0 %v1243, 77
      %v1278 = vpop.permute.xlu0 %1277
      %1279 = vrot.lane.b32.xlu0 %v1244, 77
      %v1280 = vpop.permute.xlu0 %1279
      %vm1281 = vcmask 629760
      %v1282 = vsel %vm1281, %v1258, %v1260
      %v1283 = vsel %vm1281, %v1260, %v1262
      %v1284 = vsel %vm1281, %v1262, %v1264
      %v1285 = vsel %vm1281, %v1264, %v1266
      %v1286 = vsel %vm1281, %v1266, %v1268
      %v1287 = vsel %vm1281, %v1268, %v1270
      %v1288 = vsel %vm1281, %v1270, %v1272
      %v1289 = vsel %vm1281, %v1272, %v1274
      %v1290 = vsel %vm1281, %v1274, %v1276
      %v1291 = vsel %vm1281, %v1276, %v1278
      %v1292 = vsel %vm1281, %v1278, %v1280
      %v1304 = vadd.f32 %v1218, %v1282
      %v1305 = vadd.f32 %v1219, %v1283
      %v1306 = vadd.f32 %v1220, %v1284
      %v1307 = vadd.f32 %v1221, %v1285
      %v1308 = vadd.f32 %v1222, %v1286
      %v1309 = vadd.f32 %v1223, %v1287
      %v1310 = vadd.f32 %v1224, %v1288
      %v1311 = vadd.f32 %v1225, %v1289
      %v1312 = vadd.f32 %v1226, %v1290
      %v1313 = vadd.f32 %v1227, %v1291
      %v1314 = vadd.f32 %v1228, %v1292
      %1315 = vset.pattern.permute.xlu0 9
      %1316 = vperm.xlu0 %1315, %v582
      %v1317 = vpop.permute.xlu0 %1316
      %v1319 = vmul.f32 %v615, %v1317
      %v1320 = vmul.f32 %v616, %v1317
      %v1321 = vmul.f32 %v617, %v1317
      %v1322 = vmul.f32 %v618, %v1317
      %v1323 = vmul.f32 %v619, %v1317
      %v1324 = vmul.f32 %v620, %v1317
      %v1325 = vmul.f32 %v621, %v1317
      %v1326 = vmul.f32 %v622, %v1317
      %v1327 = vmul.f32 %v623, %v1317
      %v1328 = vmul.f32 %v624, %v1317
      %v1329 = vmul.f32 %v625, %v1317
      %v1330 = vmul.f32 %v626, %v1317
      %1343 = vrot.lane.b32.xlu0 %v1319, 76
      %v1344 = vpop.permute.xlu0 %1343
      %1345 = vrot.lane.b32.xlu0 %v1320, 76
      %v1346 = vpop.permute.xlu0 %1345
      %1347 = vrot.lane.b32.xlu0 %v1321, 76
      %v1348 = vpop.permute.xlu0 %1347
      %1349 = vrot.lane.b32.xlu0 %v1322, 76
      %v1350 = vpop.permute.xlu0 %1349
      %1351 = vrot.lane.b32.xlu0 %v1323, 76
      %v1352 = vpop.permute.xlu0 %1351
      %1353 = vrot.lane.b32.xlu0 %v1324, 76
      %v1354 = vpop.permute.xlu0 %1353
      %1355 = vrot.lane.b32.xlu0 %v1325, 76
      %v1356 = vpop.permute.xlu0 %1355
      %1357 = vrot.lane.b32.xlu0 %v1326, 76
      %v1358 = vpop.permute.xlu0 %1357
      %1359 = vrot.lane.b32.xlu0 %v1327, 76
      %v1360 = vpop.permute.xlu0 %1359
      %1361 = vrot.lane.b32.xlu0 %v1328, 76
      %v1362 = vpop.permute.xlu0 %1361
      %1363 = vrot.lane.b32.xlu0 %v1329, 76
      %v1364 = vpop.permute.xlu0 %1363
      %1365 = vrot.lane.b32.xlu0 %v1330, 76
      %v1366 = vpop.permute.xlu0 %1365
      %vm1367 = vcmask 621568
      %v1368 = vsel %vm1367, %v1344, %v1346
      %v1369 = vsel %vm1367, %v1346, %v1348
      %v1370 = vsel %vm1367, %v1348, %v1350
      %v1371 = vsel %vm1367, %v1350, %v1352
      %v1372 = vsel %vm1367, %v1352, %v1354
      %v1373 = vsel %vm1367, %v1354, %v1356
      %v1374 = vsel %vm1367, %v1356, %v1358
      %v1375 = vsel %vm1367, %v1358, %v1360
      %v1376 = vsel %vm1367, %v1360, %v1362
      %v1377 = vsel %vm1367, %v1362, %v1364
      %v1378 = vsel %vm1367, %v1364, %v1366
      %v1390 = vadd.f32 %v1304, %v1368
      %v1391 = vadd.f32 %v1305, %v1369
      %v1392 = vadd.f32 %v1306, %v1370
      %v1393 = vadd.f32 %v1307, %v1371
      %v1394 = vadd.f32 %v1308, %v1372
      %v1395 = vadd.f32 %v1309, %v1373
      %v1396 = vadd.f32 %v1310, %v1374
      %v1397 = vadd.f32 %v1311, %v1375
      %v1398 = vadd.f32 %v1312, %v1376
      %v1399 = vadd.f32 %v1313, %v1377
      %v1400 = vadd.f32 %v1314, %v1378
      %1401 = vset.pattern.permute.xlu0 10
      %1402 = vperm.xlu0 %1401, %v582
      %v1403 = vpop.permute.xlu0 %1402
      %v1405 = vmul.f32 %v615, %v1403
      %v1406 = vmul.f32 %v616, %v1403
      %v1407 = vmul.f32 %v617, %v1403
      %v1408 = vmul.f32 %v618, %v1403
      %v1409 = vmul.f32 %v619, %v1403
      %v1410 = vmul.f32 %v620, %v1403
      %v1411 = vmul.f32 %v621, %v1403
      %v1412 = vmul.f32 %v622, %v1403
      %v1413 = vmul.f32 %v623, %v1403
      %v1414 = vmul.f32 %v624, %v1403
      %v1415 = vmul.f32 %v625, %v1403
      %v1416 = vmul.f32 %v626, %v1403
      %1429 = vrot.lane.b32.xlu0 %v1405, 32
      %v1430 = vpop.permute.xlu0 %1429
      %1431 = vrot.lane.b32.xlu0 %v1406, 32
      %v1432 = vpop.permute.xlu0 %1431
      %1433 = vrot.lane.b32.xlu0 %v1407, 32
      %v1434 = vpop.permute.xlu0 %1433
      %1435 = vrot.lane.b32.xlu0 %v1408, 32
      %v1436 = vpop.permute.xlu0 %1435
      %1437 = vrot.lane.b32.xlu0 %v1409, 32
      %v1438 = vpop.permute.xlu0 %1437
      %1439 = vrot.lane.b32.xlu0 %v1410, 32
      %v1440 = vpop.permute.xlu0 %1439
      %1441 = vrot.lane.b32.xlu0 %v1411, 32
      %v1442 = vpop.permute.xlu0 %1441
      %1443 = vrot.lane.b32.xlu0 %v1412, 32
      %v1444 = vpop.permute.xlu0 %1443
      %1445 = vrot.lane.b32.xlu0 %v1413, 32
      %v1446 = vpop.permute.xlu0 %1445
      %1447 = vrot.lane.b32.xlu0 %v1414, 32
      %v1448 = vpop.permute.xlu0 %1447
      %1449 = vrot.lane.b32.xlu0 %v1415, 32
      %v1450 = vpop.permute.xlu0 %1449
      %1451 = vrot.lane.b32.xlu0 %v1416, 32
      %v1452 = vpop.permute.xlu0 %1451
      %vm1453 = vcmask 261120
      %v1454 = vsel %vm1453, %v1430, %v1432
      %v1455 = vsel %vm1453, %v1432, %v1434
      %v1456 = vsel %vm1453, %v1434, %v1436
      %v1457 = vsel %vm1453, %v1436, %v1438
      %v1458 = vsel %vm1453, %v1438, %v1440
      %v1459 = vsel %vm1453, %v1440, %v1442
      %v1460 = vsel %vm1453, %v1442, %v1444
      %v1461 = vsel %vm1453, %v1444, %v1446
      %v1462 = vsel %vm1453, %v1446, %v1448
      %v1463 = vsel %vm1453, %v1448, %v1450
      %v1464 = vsel %vm1453, %v1450, %v1452
      %v1476 = vadd.f32 %v1390, %v1454
      %v1477 = vadd.f32 %v1391, %v1455
      %v1478 = vadd.f32 %v1392, %v1456
      %v1479 = vadd.f32 %v1393, %v1457
      %v1480 = vadd.f32 %v1394, %v1458
      %v1481 = vadd.f32 %v1395, %v1459
      %v1482 = vadd.f32 %v1396, %v1460
      %v1483 = vadd.f32 %v1397, %v1461
      %v1484 = vadd.f32 %v1398, %v1462
      %v1485 = vadd.f32 %v1399, %v1463
      %v1486 = vadd.f32 %v1400, %v1464
      %1487 = vset.pattern.permute.xlu0 11
      %1488 = vperm.xlu0 %1487, %v582
      %v1489 = vpop.permute.xlu0 %1488
      %v1491 = vmul.f32 %v615, %v1489
      %v1492 = vmul.f32 %v616, %v1489
      %v1493 = vmul.f32 %v617, %v1489
      %v1494 = vmul.f32 %v618, %v1489
      %v1495 = vmul.f32 %v619, %v1489
      %v1496 = vmul.f32 %v620, %v1489
      %v1497 = vmul.f32 %v621, %v1489
      %v1498 = vmul.f32 %v622, %v1489
      %v1499 = vmul.f32 %v623, %v1489
      %v1500 = vmul.f32 %v624, %v1489
      %v1501 = vmul.f32 %v625, %v1489
      %v1502 = vmul.f32 %v626, %v1489
      %1515 = vrot.lane.b32.xlu0 %v1491, 31
      %v1516 = vpop.permute.xlu0 %1515
      %1517 = vrot.lane.b32.xlu0 %v1492, 31
      %v1518 = vpop.permute.xlu0 %1517
      %1519 = vrot.lane.b32.xlu0 %v1493, 31
      %v1520 = vpop.permute.xlu0 %1519
      %1521 = vrot.lane.b32.xlu0 %v1494, 31
      %v1522 = vpop.permute.xlu0 %1521
      %1523 = vrot.lane.b32.xlu0 %v1495, 31
      %v1524 = vpop.permute.xlu0 %1523
      %1525 = vrot.lane.b32.xlu0 %v1496, 31
      %v1526 = vpop.permute.xlu0 %1525
      %1527 = vrot.lane.b32.xlu0 %v1497, 31
      %v1528 = vpop.permute.xlu0 %1527
      %1529 = vrot.lane.b32.xlu0 %v1498, 31
      %v1530 = vpop.permute.xlu0 %1529
      %1531 = vrot.lane.b32.xlu0 %v1499, 31
      %v1532 = vpop.permute.xlu0 %1531
      %1533 = vrot.lane.b32.xlu0 %v1500, 31
      %v1534 = vpop.permute.xlu0 %1533
      %1535 = vrot.lane.b32.xlu0 %v1501, 31
      %v1536 = vpop.permute.xlu0 %1535
      %1537 = vrot.lane.b32.xlu0 %v1502, 31
      %v1538 = vpop.permute.xlu0 %1537
      %vm1539 = vcmask 252928
      %v1540 = vsel %vm1539, %v1516, %v1518
      %v1541 = vsel %vm1539, %v1518, %v1520
      %v1542 = vsel %vm1539, %v1520, %v1522
      %v1543 = vsel %vm1539, %v1522, %v1524
      %v1544 = vsel %vm1539, %v1524, %v1526
      %v1545 = vsel %vm1539, %v1526, %v1528
      %v1546 = vsel %vm1539, %v1528, %v1530
      %v1547 = vsel %vm1539, %v1530, %v1532
      %v1548 = vsel %vm1539, %v1532, %v1534
      %v1549 = vsel %vm1539, %v1534, %v1536
      %v1550 = vsel %vm1539, %v1536, %v1538
      %v1562 = vadd.f32 %v1476, %v1540
      %v1563 = vadd.f32 %v1477, %v1541
      %v1564 = vadd.f32 %v1478, %v1542
      %v1565 = vadd.f32 %v1479, %v1543
      %v1566 = vadd.f32 %v1480, %v1544
      %v1567 = vadd.f32 %v1481, %v1545
      %v1568 = vadd.f32 %v1482, %v1546
      %v1569 = vadd.f32 %v1483, %v1547
      %v1570 = vadd.f32 %v1484, %v1548
      %v1571 = vadd.f32 %v1485, %v1549
      %v1572 = vadd.f32 %v1486, %v1550
      %1573 = vset.pattern.permute.xlu0 12
      %1574 = vperm.xlu0 %1573, %v582
      %v1575 = vpop.permute.xlu0 %1574
      %v1577 = vmul.f32 %v615, %v1575
      %v1578 = vmul.f32 %v616, %v1575
      %v1579 = vmul.f32 %v617, %v1575
      %v1580 = vmul.f32 %v618, %v1575
      %v1581 = vmul.f32 %v619, %v1575
      %v1582 = vmul.f32 %v620, %v1575
      %v1583 = vmul.f32 %v621, %v1575
      %v1584 = vmul.f32 %v622, %v1575
      %v1585 = vmul.f32 %v623, %v1575
      %v1586 = vmul.f32 %v624, %v1575
      %v1587 = vmul.f32 %v625, %v1575
      %v1588 = vmul.f32 %v626, %v1575
      %1601 = vrot.lane.b32.xlu0 %v1577, 30
      %v1602 = vpop.permute.xlu0 %1601
      %1603 = vrot.lane.b32.xlu0 %v1578, 30
      %v1604 = vpop.permute.xlu0 %1603
      %1605 = vrot.lane.b32.xlu0 %v1579, 30
      %v1606 = vpop.permute.xlu0 %1605
      %1607 = vrot.lane.b32.xlu0 %v1580, 30
      %v1608 = vpop.permute.xlu0 %1607
      %1609 = vrot.lane.b32.xlu0 %v1581, 30
      %v1610 = vpop.permute.xlu0 %1609
      %1611 = vrot.lane.b32.xlu0 %v1582, 30
      %v1612 = vpop.permute.xlu0 %1611
      %1613 = vrot.lane.b32.xlu0 %v1583, 30
      %v1614 = vpop.permute.xlu0 %1613
      %1615 = vrot.lane.b32.xlu0 %v1584, 30
      %v1616 = vpop.permute.xlu0 %1615
      %1617 = vrot.lane.b32.xlu0 %v1585, 30
      %v1618 = vpop.permute.xlu0 %1617
      %1619 = vrot.lane.b32.xlu0 %v1586, 30
      %v1620 = vpop.permute.xlu0 %1619
      %1621 = vrot.lane.b32.xlu0 %v1587, 30
      %v1622 = vpop.permute.xlu0 %1621
      %1623 = vrot.lane.b32.xlu0 %v1588, 30
      %v1624 = vpop.permute.xlu0 %1623
      %vm1625 = vcmask 244736
      %v1626 = vsel %vm1625, %v1602, %v1604
      %v1627 = vsel %vm1625, %v1604, %v1606
      %v1628 = vsel %vm1625, %v1606, %v1608
      %v1629 = vsel %vm1625, %v1608, %v1610
      %v1630 = vsel %vm1625, %v1610, %v1612
      %v1631 = vsel %vm1625, %v1612, %v1614
      %v1632 = vsel %vm1625, %v1614, %v1616
      %v1633 = vsel %vm1625, %v1616, %v1618
      %v1634 = vsel %vm1625, %v1618, %v1620
      %v1635 = vsel %vm1625, %v1620, %v1622
      %v1636 = vsel %vm1625, %v1622, %v1624
      %v1648 = vadd.f32 %v1562, %v1626
      %v1649 = vadd.f32 %v1563, %v1627
      %v1650 = vadd.f32 %v1564, %v1628
      %v1651 = vadd.f32 %v1565, %v1629
      %v1652 = vadd.f32 %v1566, %v1630
      %v1653 = vadd.f32 %v1567, %v1631
      %v1654 = vadd.f32 %v1568, %v1632
      %v1655 = vadd.f32 %v1569, %v1633
      %v1656 = vadd.f32 %v1570, %v1634
      %v1657 = vadd.f32 %v1571, %v1635
      %v1658 = vadd.f32 %v1572, %v1636
      %1659 = vset.pattern.permute.xlu0 13
      %1660 = vperm.xlu0 %1659, %v582
      %v1661 = vpop.permute.xlu0 %1660
      %v1663 = vmul.f32 %v615, %v1661
      %v1664 = vmul.f32 %v616, %v1661
      %v1665 = vmul.f32 %v617, %v1661
      %v1666 = vmul.f32 %v618, %v1661
      %v1667 = vmul.f32 %v619, %v1661
      %v1668 = vmul.f32 %v620, %v1661
      %v1669 = vmul.f32 %v621, %v1661
      %v1670 = vmul.f32 %v622, %v1661
      %v1671 = vmul.f32 %v623, %v1661
      %v1672 = vmul.f32 %v624, %v1661
      %v1673 = vmul.f32 %v625, %v1661
      %v1674 = vmul.f32 %v626, %v1661
      %1687 = vrot.lane.b32.xlu0 %v1663, 29
      %v1688 = vpop.permute.xlu0 %1687
      %1689 = vrot.lane.b32.xlu0 %v1664, 29
      %v1690 = vpop.permute.xlu0 %1689
      %1691 = vrot.lane.b32.xlu0 %v1665, 29
      %v1692 = vpop.permute.xlu0 %1691
      %1693 = vrot.lane.b32.xlu0 %v1666, 29
      %v1694 = vpop.permute.xlu0 %1693
      %1695 = vrot.lane.b32.xlu0 %v1667, 29
      %v1696 = vpop.permute.xlu0 %1695
      %1697 = vrot.lane.b32.xlu0 %v1668, 29
      %v1698 = vpop.permute.xlu0 %1697
      %1699 = vrot.lane.b32.xlu0 %v1669, 29
      %v1700 = vpop.permute.xlu0 %1699
      %1701 = vrot.lane.b32.xlu0 %v1670, 29
      %v1702 = vpop.permute.xlu0 %1701
      %1703 = vrot.lane.b32.xlu0 %v1671, 29
      %v1704 = vpop.permute.xlu0 %1703
      %1705 = vrot.lane.b32.xlu0 %v1672, 29
      %v1706 = vpop.permute.xlu0 %1705
      %1707 = vrot.lane.b32.xlu0 %v1673, 29
      %v1708 = vpop.permute.xlu0 %1707
      %1709 = vrot.lane.b32.xlu0 %v1674, 29
      %v1710 = vpop.permute.xlu0 %1709
      %vm1711 = vcmask 236544
      %v1712 = vsel %vm1711, %v1688, %v1690
      %v1713 = vsel %vm1711, %v1690, %v1692
      %v1714 = vsel %vm1711, %v1692, %v1694
      %v1715 = vsel %vm1711, %v1694, %v1696
      %v1716 = vsel %vm1711, %v1696, %v1698
      %v1717 = vsel %vm1711, %v1698, %v1700
      %v1718 = vsel %vm1711, %v1700, %v1702
      %v1719 = vsel %vm1711, %v1702, %v1704
      %v1720 = vsel %vm1711, %v1704, %v1706
      %v1721 = vsel %vm1711, %v1706, %v1708
      %v1722 = vsel %vm1711, %v1708, %v1710
      %v1734 = vadd.f32 %v1648, %v1712
      %v1735 = vadd.f32 %v1649, %v1713
      %v1736 = vadd.f32 %v1650, %v1714
      %v1737 = vadd.f32 %v1651, %v1715
      %v1738 = vadd.f32 %v1652, %v1716
      %v1739 = vadd.f32 %v1653, %v1717
      %v1740 = vadd.f32 %v1654, %v1718
      %v1741 = vadd.f32 %v1655, %v1719
      %v1742 = vadd.f32 %v1656, %v1720
      %v1743 = vadd.f32 %v1657, %v1721
      %v1744 = vadd.f32 %v1658, %v1722
      %1745 = vset.pattern.permute.xlu0 14
      %1746 = vperm.xlu0 %1745, %v582
      %v1747 = vpop.permute.xlu0 %1746
      %v1749 = vmul.f32 %v615, %v1747
      %v1750 = vmul.f32 %v616, %v1747
      %v1751 = vmul.f32 %v617, %v1747
      %v1752 = vmul.f32 %v618, %v1747
      %v1753 = vmul.f32 %v619, %v1747
      %v1754 = vmul.f32 %v620, %v1747
      %v1755 = vmul.f32 %v621, %v1747
      %v1756 = vmul.f32 %v622, %v1747
      %v1757 = vmul.f32 %v623, %v1747
      %v1758 = vmul.f32 %v624, %v1747
      %v1759 = vmul.f32 %v625, %v1747
      %v1760 = vmul.f32 %v626, %v1747
      %1773 = vrot.lane.b32.xlu0 %v1749, 28
      %v1774 = vpop.permute.xlu0 %1773
      %1775 = vrot.lane.b32.xlu0 %v1750, 28
      %v1776 = vpop.permute.xlu0 %1775
      %1777 = vrot.lane.b32.xlu0 %v1751, 28
      %v1778 = vpop.permute.xlu0 %1777
      %1779 = vrot.lane.b32.xlu0 %v1752, 28
      %v1780 = vpop.permute.xlu0 %1779
      %1781 = vrot.lane.b32.xlu0 %v1753, 28
      %v1782 = vpop.permute.xlu0 %1781
      %1783 = vrot.lane.b32.xlu0 %v1754, 28
      %v1784 = vpop.permute.xlu0 %1783
      %1785 = vrot.lane.b32.xlu0 %v1755, 28
      %v1786 = vpop.permute.xlu0 %1785
      %1787 = vrot.lane.b32.xlu0 %v1756, 28
      %v1788 = vpop.permute.xlu0 %1787
      %1789 = vrot.lane.b32.xlu0 %v1757, 28
      %v1790 = vpop.permute.xlu0 %1789
      %1791 = vrot.lane.b32.xlu0 %v1758, 28
      %v1792 = vpop.permute.xlu0 %1791
      %1793 = vrot.lane.b32.xlu0 %v1759, 28
      %v1794 = vpop.permute.xlu0 %1793
      %1795 = vrot.lane.b32.xlu0 %v1760, 28
      %v1796 = vpop.permute.xlu0 %1795
      %vm1797 = vcmask 228352
      %v1798 = vsel %vm1797, %v1774, %v1776
      %v1799 = vsel %vm1797, %v1776, %v1778
      %v1800 = vsel %vm1797, %v1778, %v1780
      %v1801 = vsel %vm1797, %v1780, %v1782
      %v1802 = vsel %vm1797, %v1782, %v1784
      %v1803 = vsel %vm1797, %v1784, %v1786
      %v1804 = vsel %vm1797, %v1786, %v1788
      %v1805 = vsel %vm1797, %v1788, %v1790
      %v1806 = vsel %vm1797, %v1790, %v1792
      %v1807 = vsel %vm1797, %v1792, %v1794
      %v1808 = vsel %vm1797, %v1794, %v1796
      %v1820 = vadd.f32 %v1734, %v1798
      %v1821 = vadd.f32 %v1735, %v1799
      %v1822 = vadd.f32 %v1736, %v1800
      %v1823 = vadd.f32 %v1737, %v1801
      %v1824 = vadd.f32 %v1738, %v1802
      %v1825 = vadd.f32 %v1739, %v1803
      %v1826 = vadd.f32 %v1740, %v1804
      %v1827 = vadd.f32 %v1741, %v1805
      %v1828 = vadd.f32 %v1742, %v1806
      %v1829 = vadd.f32 %v1743, %v1807
      %v1830 = vadd.f32 %v1744, %v1808
      %v1831 = vld [vmem:[%s493 + $0x8] sm:$0xff]
      %v1832 = vld [vmem:[%s493 + $0x10] sm:$0xff]
      %v1833 = vld [vmem:[%s493 + $0x18] sm:$0xff]
      %v1834 = vld [vmem:[%s493 + $0x20] sm:$0xff]
      %v1835 = vld [vmem:[%s493 + $0x28] sm:$0xff]
      %v1836 = vld [vmem:[%s493 + $0x30] sm:$0xff]
      %v1837 = vld [vmem:[%s493 + $0x38] sm:$0xff]
      %v1838 = vld [vmem:[%s493 + $0x40] sm:$0xff]
      %v1839 = vld [vmem:[%s493 + $0x48] sm:$0xff]
      %v1840 = vld [vmem:[%s493 + $0x50] sm:$0xff]
      %v1841 = vld [vmem:[%s493 + $0x58] sm:$0xff]
      %v1842 = vld [vmem:[%s493 + $0x60] sm:$0xff]
      %1843 = vset.pattern.permute.xlu0 15
      %1844 = vperm.xlu0 %1843, %v582
      %v1845 = vpop.permute.xlu0 %1844
      %v1847 = vmul.f32 %v1831, %v1845
      %v1848 = vmul.f32 %v1832, %v1845
      %v1849 = vmul.f32 %v1833, %v1845
      %v1850 = vmul.f32 %v1834, %v1845
      %v1851 = vmul.f32 %v1835, %v1845
      %v1852 = vmul.f32 %v1836, %v1845
      %v1853 = vmul.f32 %v1837, %v1845
      %v1854 = vmul.f32 %v1838, %v1845
      %v1855 = vmul.f32 %v1839, %v1845
      %v1856 = vmul.f32 %v1840, %v1845
      %v1857 = vmul.f32 %v1841, %v1845
      %v1858 = vmul.f32 %v1842, %v1845
      %1871 = vrot.lane.b32.xlu0 %v1847, 112
      %v1872 = vpop.permute.xlu0 %1871
      %1873 = vrot.lane.b32.xlu0 %v1848, 112
      %v1874 = vpop.permute.xlu0 %1873
      %1875 = vrot.lane.b32.xlu0 %v1849, 112
      %v1876 = vpop.permute.xlu0 %1875
      %1877 = vrot.lane.b32.xlu0 %v1850, 112
      %v1878 = vpop.permute.xlu0 %1877
      %1879 = vrot.lane.b32.xlu0 %v1851, 112
      %v1880 = vpop.permute.xlu0 %1879
      %1881 = vrot.lane.b32.xlu0 %v1852, 112
      %v1882 = vpop.permute.xlu0 %1881
      %1883 = vrot.lane.b32.xlu0 %v1853, 112
      %v1884 = vpop.permute.xlu0 %1883
      %1885 = vrot.lane.b32.xlu0 %v1854, 112
      %v1886 = vpop.permute.xlu0 %1885
      %1887 = vrot.lane.b32.xlu0 %v1855, 112
      %v1888 = vpop.permute.xlu0 %1887
      %1889 = vrot.lane.b32.xlu0 %v1856, 112
      %v1890 = vpop.permute.xlu0 %1889
      %1891 = vrot.lane.b32.xlu0 %v1857, 112
      %v1892 = vpop.permute.xlu0 %1891
      %1893 = vrot.lane.b32.xlu0 %v1858, 112
      %v1894 = vpop.permute.xlu0 %1893
      %vm1895 = vcmask 916480
      %v1896 = vsel %vm1895, %v1872, %v1874
      %v1897 = vsel %vm1895, %v1874, %v1876
      %v1898 = vsel %vm1895, %v1876, %v1878
      %v1899 = vsel %vm1895, %v1878, %v1880
      %v1900 = vsel %vm1895, %v1880, %v1882
      %v1901 = vsel %vm1895, %v1882, %v1884
      %v1902 = vsel %vm1895, %v1884, %v1886
      %v1903 = vsel %vm1895, %v1886, %v1888
      %v1904 = vsel %vm1895, %v1888, %v1890
      %v1905 = vsel %vm1895, %v1890, %v1892
      %v1906 = vsel %vm1895, %v1892, %v1894
      %v1918 = vadd.f32 %v1820, %v1896
      %v1919 = vadd.f32 %v1821, %v1897
      %v1920 = vadd.f32 %v1822, %v1898
      %v1921 = vadd.f32 %v1823, %v1899
      %v1922 = vadd.f32 %v1824, %v1900
      %v1923 = vadd.f32 %v1825, %v1901
      %v1924 = vadd.f32 %v1826, %v1902
      %v1925 = vadd.f32 %v1827, %v1903
      %v1926 = vadd.f32 %v1828, %v1904
      %v1927 = vadd.f32 %v1829, %v1905
      %v1928 = vadd.f32 %v1830, %v1906
      %1929 = vset.pattern.permute.xlu0 16
      %1930 = vperm.xlu0 %1929, %v582
      %v1931 = vpop.permute.xlu0 %1930
      %v1933 = vmul.f32 %v1831, %v1931
      %v1934 = vmul.f32 %v1832, %v1931
      %v1935 = vmul.f32 %v1833, %v1931
      %v1936 = vmul.f32 %v1834, %v1931
      %v1937 = vmul.f32 %v1835, %v1931
      %v1938 = vmul.f32 %v1836, %v1931
      %v1939 = vmul.f32 %v1837, %v1931
      %v1940 = vmul.f32 %v1838, %v1931
      %v1941 = vmul.f32 %v1839, %v1931
      %v1942 = vmul.f32 %v1840, %v1931
      %v1943 = vmul.f32 %v1841, %v1931
      %v1944 = vmul.f32 %v1842, %v1931
      %1957 = vrot.lane.b32.xlu0 %v1933, 111
      %v1958 = vpop.permute.xlu0 %1957
      %1959 = vrot.lane.b32.xlu0 %v1934, 111
      %v1960 = vpop.permute.xlu0 %1959
      %1961 = vrot.lane.b32.xlu0 %v1935, 111
      %v1962 = vpop.permute.xlu0 %1961
      %1963 = vrot.lane.b32.xlu0 %v1936, 111
      %v1964 = vpop.permute.xlu0 %1963
      %1965 = vrot.lane.b32.xlu0 %v1937, 111
      %v1966 = vpop.permute.xlu0 %1965
      %1967 = vrot.lane.b32.xlu0 %v1938, 111
      %v1968 = vpop.permute.xlu0 %1967
      %1969 = vrot.lane.b32.xlu0 %v1939, 111
      %v1970 = vpop.permute.xlu0 %1969
      %1971 = vrot.lane.b32.xlu0 %v1940, 111
      %v1972 = vpop.permute.xlu0 %1971
      %1973 = vrot.lane.b32.xlu0 %v1941, 111
      %v1974 = vpop.permute.xlu0 %1973
      %1975 = vrot.lane.b32.xlu0 %v1942, 111
      %v1976 = vpop.permute.xlu0 %1975
      %1977 = vrot.lane.b32.xlu0 %v1943, 111
      %v1978 = vpop.permute.xlu0 %1977
      %1979 = vrot.lane.b32.xlu0 %v1944, 111
      %v1980 = vpop.permute.xlu0 %1979
      %vm1981 = vcmask 908288
      %v1982 = vsel %vm1981, %v1958, %v1960
      %v1983 = vsel %vm1981, %v1960, %v1962
      %v1984 = vsel %vm1981, %v1962, %v1964
      %v1985 = vsel %vm1981, %v1964, %v1966
      %v1986 = vsel %vm1981, %v1966, %v1968
      %v1987 = vsel %vm1981, %v1968, %v1970
      %v1988 = vsel %vm1981, %v1970, %v1972
      %v1989 = vsel %vm1981, %v1972, %v1974
      %v1990 = vsel %vm1981, %v1974, %v1976
      %v1991 = vsel %vm1981, %v1976, %v1978
      %v1992 = vsel %vm1981, %v1978, %v1980
      %v2004 = vadd.f32 %v1918, %v1982
      %v2005 = vadd.f32 %v1919, %v1983
      %v2006 = vadd.f32 %v1920, %v1984
      %v2007 = vadd.f32 %v1921, %v1985
      %v2008 = vadd.f32 %v1922, %v1986
      %v2009 = vadd.f32 %v1923, %v1987
      %v2010 = vadd.f32 %v1924, %v1988
      %v2011 = vadd.f32 %v1925, %v1989
      %v2012 = vadd.f32 %v1926, %v1990
      %v2013 = vadd.f32 %v1927, %v1991
      %v2014 = vadd.f32 %v1928, %v1992
      %2015 = vset.pattern.permute.xlu0 17
      %2016 = vperm.xlu0 %2015, %v582
      %v2017 = vpop.permute.xlu0 %2016
      %v2019 = vmul.f32 %v1831, %v2017
      %v2020 = vmul.f32 %v1832, %v2017
      %v2021 = vmul.f32 %v1833, %v2017
      %v2022 = vmul.f32 %v1834, %v2017
      %v2023 = vmul.f32 %v1835, %v2017
      %v2024 = vmul.f32 %v1836, %v2017
      %v2025 = vmul.f32 %v1837, %v2017
      %v2026 = vmul.f32 %v1838, %v2017
      %v2027 = vmul.f32 %v1839, %v2017
      %v2028 = vmul.f32 %v1840, %v2017
      %v2029 = vmul.f32 %v1841, %v2017
      %v2030 = vmul.f32 %v1842, %v2017
      %2043 = vrot.lane.b32.xlu0 %v2019, 110
      %v2044 = vpop.permute.xlu0 %2043
      %2045 = vrot.lane.b32.xlu0 %v2020, 110
      %v2046 = vpop.permute.xlu0 %2045
      %2047 = vrot.lane.b32.xlu0 %v2021, 110
      %v2048 = vpop.permute.xlu0 %2047
      %2049 = vrot.lane.b32.xlu0 %v2022, 110
      %v2050 = vpop.permute.xlu0 %2049
      %2051 = vrot.lane.b32.xlu0 %v2023, 110
      %v2052 = vpop.permute.xlu0 %2051
      %2053 = vrot.lane.b32.xlu0 %v2024, 110
      %v2054 = vpop.permute.xlu0 %2053
      %2055 = vrot.lane.b32.xlu0 %v2025, 110
      %v2056 = vpop.permute.xlu0 %2055
      %2057 = vrot.lane.b32.xlu0 %v2026, 110
      %v2058 = vpop.permute.xlu0 %2057
      %2059 = vrot.lane.b32.xlu0 %v2027, 110
      %v2060 = vpop.permute.xlu0 %2059
      %2061 = vrot.lane.b32.xlu0 %v2028, 110
      %v2062 = vpop.permute.xlu0 %2061
      %2063 = vrot.lane.b32.xlu0 %v2029, 110
      %v2064 = vpop.permute.xlu0 %2063
      %2065 = vrot.lane.b32.xlu0 %v2030, 110
      %v2066 = vpop.permute.xlu0 %2065
      %vm2067 = vcmask 900096
      %v2068 = vsel %vm2067, %v2044, %v2046
      %v2069 = vsel %vm2067, %v2046, %v2048
      %v2070 = vsel %vm2067, %v2048, %v2050
      %v2071 = vsel %vm2067, %v2050, %v2052
      %v2072 = vsel %vm2067, %v2052, %v2054
      %v2073 = vsel %vm2067, %v2054, %v2056
      %v2074 = vsel %vm2067, %v2056, %v2058
      %v2075 = vsel %vm2067, %v2058, %v2060
      %v2076 = vsel %vm2067, %v2060, %v2062
      %v2077 = vsel %vm2067, %v2062, %v2064
      %v2078 = vsel %vm2067, %v2064, %v2066
      %v2090 = vadd.f32 %v2004, %v2068
      %v2091 = vadd.f32 %v2005, %v2069
      %v2092 = vadd.f32 %v2006, %v2070
      %v2093 = vadd.f32 %v2007, %v2071
      %v2094 = vadd.f32 %v2008, %v2072
      %v2095 = vadd.f32 %v2009, %v2073
      %v2096 = vadd.f32 %v2010, %v2074
      %v2097 = vadd.f32 %v2011, %v2075
      %v2098 = vadd.f32 %v2012, %v2076
      %v2099 = vadd.f32 %v2013, %v2077
      %v2100 = vadd.f32 %v2014, %v2078
      %2101 = vset.pattern.permute.xlu0 18
      %2102 = vperm.xlu0 %2101, %v582
      %v2103 = vpop.permute.xlu0 %2102
      %v2105 = vmul.f32 %v1831, %v2103
      %v2106 = vmul.f32 %v1832, %v2103
      %v2107 = vmul.f32 %v1833, %v2103
      %v2108 = vmul.f32 %v1834, %v2103
      %v2109 = vmul.f32 %v1835, %v2103
      %v2110 = vmul.f32 %v1836, %v2103
      %v2111 = vmul.f32 %v1837, %v2103
      %v2112 = vmul.f32 %v1838, %v2103
      %v2113 = vmul.f32 %v1839, %v2103
      %v2114 = vmul.f32 %v1840, %v2103
      %v2115 = vmul.f32 %v1841, %v2103
      %v2116 = vmul.f32 %v1842, %v2103
      %2129 = vrot.lane.b32.xlu0 %v2105, 109
      %v2130 = vpop.permute.xlu0 %2129
      %2131 = vrot.lane.b32.xlu0 %v2106, 109
      %v2132 = vpop.permute.xlu0 %2131
      %2133 = vrot.lane.b32.xlu0 %v2107, 109
      %v2134 = vpop.permute.xlu0 %2133
      %2135 = vrot.lane.b32.xlu0 %v2108, 109
      %v2136 = vpop.permute.xlu0 %2135
      %2137 = vrot.lane.b32.xlu0 %v2109, 109
      %v2138 = vpop.permute.xlu0 %2137
      %2139 = vrot.lane.b32.xlu0 %v2110, 109
      %v2140 = vpop.permute.xlu0 %2139
      %2141 = vrot.lane.b32.xlu0 %v2111, 109
      %v2142 = vpop.permute.xlu0 %2141
      %2143 = vrot.lane.b32.xlu0 %v2112, 109
      %v2144 = vpop.permute.xlu0 %2143
      %2145 = vrot.lane.b32.xlu0 %v2113, 109
      %v2146 = vpop.permute.xlu0 %2145
      %2147 = vrot.lane.b32.xlu0 %v2114, 109
      %v2148 = vpop.permute.xlu0 %2147
      %2149 = vrot.lane.b32.xlu0 %v2115, 109
      %v2150 = vpop.permute.xlu0 %2149
      %2151 = vrot.lane.b32.xlu0 %v2116, 109
      %v2152 = vpop.permute.xlu0 %2151
      %vm2153 = vcmask 891904
      %v2154 = vsel %vm2153, %v2130, %v2132
      %v2155 = vsel %vm2153, %v2132, %v2134
      %v2156 = vsel %vm2153, %v2134, %v2136
      %v2157 = vsel %vm2153, %v2136, %v2138
      %v2158 = vsel %vm2153, %v2138, %v2140
      %v2159 = vsel %vm2153, %v2140, %v2142
      %v2160 = vsel %vm2153, %v2142, %v2144
      %v2161 = vsel %vm2153, %v2144, %v2146
      %v2162 = vsel %vm2153, %v2146, %v2148
      %v2163 = vsel %vm2153, %v2148, %v2150
      %v2164 = vsel %vm2153, %v2150, %v2152
      %v2176 = vadd.f32 %v2090, %v2154
      %v2177 = vadd.f32 %v2091, %v2155
      %v2178 = vadd.f32 %v2092, %v2156
      %v2179 = vadd.f32 %v2093, %v2157
      %v2180 = vadd.f32 %v2094, %v2158
      %v2181 = vadd.f32 %v2095, %v2159
      %v2182 = vadd.f32 %v2096, %v2160
      %v2183 = vadd.f32 %v2097, %v2161
      %v2184 = vadd.f32 %v2098, %v2162
      %v2185 = vadd.f32 %v2099, %v2163
      %v2186 = vadd.f32 %v2100, %v2164
      %2187 = vset.pattern.permute.xlu0 19
      %2188 = vperm.xlu0 %2187, %v582
      %v2189 = vpop.permute.xlu0 %2188
      %v2191 = vmul.f32 %v1831, %v2189
      %v2192 = vmul.f32 %v1832, %v2189
      %v2193 = vmul.f32 %v1833, %v2189
      %v2194 = vmul.f32 %v1834, %v2189
      %v2195 = vmul.f32 %v1835, %v2189
      %v2196 = vmul.f32 %v1836, %v2189
      %v2197 = vmul.f32 %v1837, %v2189
      %v2198 = vmul.f32 %v1838, %v2189
      %v2199 = vmul.f32 %v1839, %v2189
      %v2200 = vmul.f32 %v1840, %v2189
      %v2201 = vmul.f32 %v1841, %v2189
      %v2202 = vmul.f32 %v1842, %v2189
      %2215 = vrot.lane.b32.xlu0 %v2191, 108
      %v2216 = vpop.permute.xlu0 %2215
      %2217 = vrot.lane.b32.xlu0 %v2192, 108
      %v2218 = vpop.permute.xlu0 %2217
      %2219 = vrot.lane.b32.xlu0 %v2193, 108
      %v2220 = vpop.permute.xlu0 %2219
      %2221 = vrot.lane.b32.xlu0 %v2194, 108
      %v2222 = vpop.permute.xlu0 %2221
      %2223 = vrot.lane.b32.xlu0 %v2195, 108
      %v2224 = vpop.permute.xlu0 %2223
      %2225 = vrot.lane.b32.xlu0 %v2196, 108
      %v2226 = vpop.permute.xlu0 %2225
      %2227 = vrot.lane.b32.xlu0 %v2197, 108
      %v2228 = vpop.permute.xlu0 %2227
      %2229 = vrot.lane.b32.xlu0 %v2198, 108
      %v2230 = vpop.permute.xlu0 %2229
      %2231 = vrot.lane.b32.xlu0 %v2199, 108
      %v2232 = vpop.permute.xlu0 %2231
      %2233 = vrot.lane.b32.xlu0 %v2200, 108
      %v2234 = vpop.permute.xlu0 %2233
      %2235 = vrot.lane.b32.xlu0 %v2201, 108
      %v2236 = vpop.permute.xlu0 %2235
      %2237 = vrot.lane.b32.xlu0 %v2202, 108
      %v2238 = vpop.permute.xlu0 %2237
      %vm2239 = vcmask 883712
      %v2240 = vsel %vm2239, %v2216, %v2218
      %v2241 = vsel %vm2239, %v2218, %v2220
      %v2242 = vsel %vm2239, %v2220, %v2222
      %v2243 = vsel %vm2239, %v2222, %v2224
      %v2244 = vsel %vm2239, %v2224, %v2226
      %v2245 = vsel %vm2239, %v2226, %v2228
      %v2246 = vsel %vm2239, %v2228, %v2230
      %v2247 = vsel %vm2239, %v2230, %v2232
      %v2248 = vsel %vm2239, %v2232, %v2234
      %v2249 = vsel %vm2239, %v2234, %v2236
      %v2250 = vsel %vm2239, %v2236, %v2238
      %v2262 = vadd.f32 %v2176, %v2240
      %v2263 = vadd.f32 %v2177, %v2241
      %v2264 = vadd.f32 %v2178, %v2242
      %v2265 = vadd.f32 %v2179, %v2243
      %v2266 = vadd.f32 %v2180, %v2244
      %v2267 = vadd.f32 %v2181, %v2245
      %v2268 = vadd.f32 %v2182, %v2246
      %v2269 = vadd.f32 %v2183, %v2247
      %v2270 = vadd.f32 %v2184, %v2248
      %v2271 = vadd.f32 %v2185, %v2249
      %v2272 = vadd.f32 %v2186, %v2250
      %2273 = vset.pattern.permute.xlu0 20
      %2274 = vperm.xlu0 %2273, %v582
      %v2275 = vpop.permute.xlu0 %2274
      %v2277 = vmul.f32 %v1831, %v2275
      %v2278 = vmul.f32 %v1832, %v2275
      %v2279 = vmul.f32 %v1833, %v2275
      %v2280 = vmul.f32 %v1834, %v2275
      %v2281 = vmul.f32 %v1835, %v2275
      %v2282 = vmul.f32 %v1836, %v2275
      %v2283 = vmul.f32 %v1837, %v2275
      %v2284 = vmul.f32 %v1838, %v2275
      %v2285 = vmul.f32 %v1839, %v2275
      %v2286 = vmul.f32 %v1840, %v2275
      %v2287 = vmul.f32 %v1841, %v2275
      %v2288 = vmul.f32 %v1842, %v2275
      %2301 = vrot.lane.b32.xlu0 %v2277, 64
      %v2302 = vpop.permute.xlu0 %2301
      %2303 = vrot.lane.b32.xlu0 %v2278, 64
      %v2304 = vpop.permute.xlu0 %2303
      %2305 = vrot.lane.b32.xlu0 %v2279, 64
      %v2306 = vpop.permute.xlu0 %2305
      %2307 = vrot.lane.b32.xlu0 %v2280, 64
      %v2308 = vpop.permute.xlu0 %2307
      %2309 = vrot.lane.b32.xlu0 %v2281, 64
      %v2310 = vpop.permute.xlu0 %2309
      %2311 = vrot.lane.b32.xlu0 %v2282, 64
      %v2312 = vpop.permute.xlu0 %2311
      %2313 = vrot.lane.b32.xlu0 %v2283, 64
      %v2314 = vpop.permute.xlu0 %2313
      %2315 = vrot.lane.b32.xlu0 %v2284, 64
      %v2316 = vpop.permute.xlu0 %2315
      %2317 = vrot.lane.b32.xlu0 %v2285, 64
      %v2318 = vpop.permute.xlu0 %2317
      %2319 = vrot.lane.b32.xlu0 %v2286, 64
      %v2320 = vpop.permute.xlu0 %2319
      %2321 = vrot.lane.b32.xlu0 %v2287, 64
      %v2322 = vpop.permute.xlu0 %2321
      %2323 = vrot.lane.b32.xlu0 %v2288, 64
      %v2324 = vpop.permute.xlu0 %2323
      %vm2325 = vcmask 523264
      %v2326 = vsel %vm2325, %v2302, %v2304
      %v2327 = vsel %vm2325, %v2304, %v2306
      %v2328 = vsel %vm2325, %v2306, %v2308
      %v2329 = vsel %vm2325, %v2308, %v2310
      %v2330 = vsel %vm2325, %v2310, %v2312
      %v2331 = vsel %vm2325, %v2312, %v2314
      %v2332 = vsel %vm2325, %v2314, %v2316
      %v2333 = vsel %vm2325, %v2316, %v2318
      %v2334 = vsel %vm2325, %v2318, %v2320
      %v2335 = vsel %vm2325, %v2320, %v2322
      %v2336 = vsel %vm2325, %v2322, %v2324
      %v2348 = vadd.f32 %v2262, %v2326
      %v2349 = vadd.f32 %v2263, %v2327
      %v2350 = vadd.f32 %v2264, %v2328
      %v2351 = vadd.f32 %v2265, %v2329
      %v2352 = vadd.f32 %v2266, %v2330
      %v2353 = vadd.f32 %v2267, %v2331
      %v2354 = vadd.f32 %v2268, %v2332
      %v2355 = vadd.f32 %v2269, %v2333
      %v2356 = vadd.f32 %v2270, %v2334
      %v2357 = vadd.f32 %v2271, %v2335
      %v2358 = vadd.f32 %v2272, %v2336
      %2359 = vset.pattern.permute.xlu0 21
      %2360 = vperm.xlu0 %2359, %v582
      %v2361 = vpop.permute.xlu0 %2360
      %v2363 = vmul.f32 %v1831, %v2361
      %v2364 = vmul.f32 %v1832, %v2361
      %v2365 = vmul.f32 %v1833, %v2361
      %v2366 = vmul.f32 %v1834, %v2361
      %v2367 = vmul.f32 %v1835, %v2361
      %v2368 = vmul.f32 %v1836, %v2361
      %v2369 = vmul.f32 %v1837, %v2361
      %v2370 = vmul.f32 %v1838, %v2361
      %v2371 = vmul.f32 %v1839, %v2361
      %v2372 = vmul.f32 %v1840, %v2361
      %v2373 = vmul.f32 %v1841, %v2361
      %v2374 = vmul.f32 %v1842, %v2361
      %2387 = vrot.lane.b32.xlu0 %v2363, 63
      %v2388 = vpop.permute.xlu0 %2387
      %2389 = vrot.lane.b32.xlu0 %v2364, 63
      %v2390 = vpop.permute.xlu0 %2389
      %2391 = vrot.lane.b32.xlu0 %v2365, 63
      %v2392 = vpop.permute.xlu0 %2391
      %2393 = vrot.lane.b32.xlu0 %v2366, 63
      %v2394 = vpop.permute.xlu0 %2393
      %2395 = vrot.lane.b32.xlu0 %v2367, 63
      %v2396 = vpop.permute.xlu0 %2395
      %2397 = vrot.lane.b32.xlu0 %v2368, 63
      %v2398 = vpop.permute.xlu0 %2397
      %2399 = vrot.lane.b32.xlu0 %v2369, 63
      %v2400 = vpop.permute.xlu0 %2399
      %2401 = vrot.lane.b32.xlu0 %v2370, 63
      %v2402 = vpop.permute.xlu0 %2401
      %2403 = vrot.lane.b32.xlu0 %v2371, 63
      %v2404 = vpop.permute.xlu0 %2403
      %2405 = vrot.lane.b32.xlu0 %v2372, 63
      %v2406 = vpop.permute.xlu0 %2405
      %2407 = vrot.lane.b32.xlu0 %v2373, 63
      %v2408 = vpop.permute.xlu0 %2407
      %2409 = vrot.lane.b32.xlu0 %v2374, 63
      %v2410 = vpop.permute.xlu0 %2409
      %vm2411 = vcmask 515072
      %v2412 = vsel %vm2411, %v2388, %v2390
      %v2413 = vsel %vm2411, %v2390, %v2392
      %v2414 = vsel %vm2411, %v2392, %v2394
      %v2415 = vsel %vm2411, %v2394, %v2396
      %v2416 = vsel %vm2411, %v2396, %v2398
      %v2417 = vsel %vm2411, %v2398, %v2400
      %v2418 = vsel %vm2411, %v2400, %v2402
      %v2419 = vsel %vm2411, %v2402, %v2404
      %v2420 = vsel %vm2411, %v2404, %v2406
      %v2421 = vsel %vm2411, %v2406, %v2408
      %v2422 = vsel %vm2411, %v2408, %v2410
      %v2434 = vadd.f32 %v2348, %v2412
      %v2435 = vadd.f32 %v2349, %v2413
      %v2436 = vadd.f32 %v2350, %v2414
      %v2437 = vadd.f32 %v2351, %v2415
      %v2438 = vadd.f32 %v2352, %v2416
      %v2439 = vadd.f32 %v2353, %v2417
      %v2440 = vadd.f32 %v2354, %v2418
      %v2441 = vadd.f32 %v2355, %v2419
      %v2442 = vadd.f32 %v2356, %v2420
      %v2443 = vadd.f32 %v2357, %v2421
      %v2444 = vadd.f32 %v2358, %v2422
      %2445 = vset.pattern.permute.xlu0 22
      %2446 = vperm.xlu0 %2445, %v582
      %v2447 = vpop.permute.xlu0 %2446
      %v2449 = vmul.f32 %v1831, %v2447
      %v2450 = vmul.f32 %v1832, %v2447
      %v2451 = vmul.f32 %v1833, %v2447
      %v2452 = vmul.f32 %v1834, %v2447
      %v2453 = vmul.f32 %v1835, %v2447
      %v2454 = vmul.f32 %v1836, %v2447
      %v2455 = vmul.f32 %v1837, %v2447
      %v2456 = vmul.f32 %v1838, %v2447
      %v2457 = vmul.f32 %v1839, %v2447
      %v2458 = vmul.f32 %v1840, %v2447
      %v2459 = vmul.f32 %v1841, %v2447
      %v2460 = vmul.f32 %v1842, %v2447
      %2473 = vrot.lane.b32.xlu0 %v2449, 62
      %v2474 = vpop.permute.xlu0 %2473
      %2475 = vrot.lane.b32.xlu0 %v2450, 62
      %v2476 = vpop.permute.xlu0 %2475
      %2477 = vrot.lane.b32.xlu0 %v2451, 62
      %v2478 = vpop.permute.xlu0 %2477
      %2479 = vrot.lane.b32.xlu0 %v2452, 62
      %v2480 = vpop.permute.xlu0 %2479
      %2481 = vrot.lane.b32.xlu0 %v2453, 62
      %v2482 = vpop.permute.xlu0 %2481
      %2483 = vrot.lane.b32.xlu0 %v2454, 62
      %v2484 = vpop.permute.xlu0 %2483
      %2485 = vrot.lane.b32.xlu0 %v2455, 62
      %v2486 = vpop.permute.xlu0 %2485
      %2487 = vrot.lane.b32.xlu0 %v2456, 62
      %v2488 = vpop.permute.xlu0 %2487
      %2489 = vrot.lane.b32.xlu0 %v2457, 62
      %v2490 = vpop.permute.xlu0 %2489
      %2491 = vrot.lane.b32.xlu0 %v2458, 62
      %v2492 = vpop.permute.xlu0 %2491
      %2493 = vrot.lane.b32.xlu0 %v2459, 62
      %v2494 = vpop.permute.xlu0 %2493
      %2495 = vrot.lane.b32.xlu0 %v2460, 62
      %v2496 = vpop.permute.xlu0 %2495
      %vm2497 = vcmask 506880
      %v2498 = vsel %vm2497, %v2474, %v2476
      %v2499 = vsel %vm2497, %v2476, %v2478
      %v2500 = vsel %vm2497, %v2478, %v2480
      %v2501 = vsel %vm2497, %v2480, %v2482
      %v2502 = vsel %vm2497, %v2482, %v2484
      %v2503 = vsel %vm2497, %v2484, %v2486
      %v2504 = vsel %vm2497, %v2486, %v2488
      %v2505 = vsel %vm2497, %v2488, %v2490
      %v2506 = vsel %vm2497, %v2490, %v2492
      %v2507 = vsel %vm2497, %v2492, %v2494
      %v2508 = vsel %vm2497, %v2494, %v2496
      %v2520 = vadd.f32 %v2434, %v2498
      %v2521 = vadd.f32 %v2435, %v2499
      %v2522 = vadd.f32 %v2436, %v2500
      %v2523 = vadd.f32 %v2437, %v2501
      %v2524 = vadd.f32 %v2438, %v2502
      %v2525 = vadd.f32 %v2439, %v2503
      %v2526 = vadd.f32 %v2440, %v2504
      %v2527 = vadd.f32 %v2441, %v2505
      %v2528 = vadd.f32 %v2442, %v2506
      %v2529 = vadd.f32 %v2443, %v2507
      %v2530 = vadd.f32 %v2444, %v2508
      %2531 = vset.pattern.permute.xlu0 23
      %2532 = vperm.xlu0 %2531, %v582
      %v2533 = vpop.permute.xlu0 %2532
      %v2535 = vmul.f32 %v1831, %v2533
      %v2536 = vmul.f32 %v1832, %v2533
      %v2537 = vmul.f32 %v1833, %v2533
      %v2538 = vmul.f32 %v1834, %v2533
      %v2539 = vmul.f32 %v1835, %v2533
      %v2540 = vmul.f32 %v1836, %v2533
      %v2541 = vmul.f32 %v1837, %v2533
      %v2542 = vmul.f32 %v1838, %v2533
      %v2543 = vmul.f32 %v1839, %v2533
      %v2544 = vmul.f32 %v1840, %v2533
      %v2545 = vmul.f32 %v1841, %v2533
      %v2546 = vmul.f32 %v1842, %v2533
      %2559 = vrot.lane.b32.xlu0 %v2535, 61
      %v2560 = vpop.permute.xlu0 %2559
      %2561 = vrot.lane.b32.xlu0 %v2536, 61
      %v2562 = vpop.permute.xlu0 %2561
      %2563 = vrot.lane.b32.xlu0 %v2537, 61
      %v2564 = vpop.permute.xlu0 %2563
      %2565 = vrot.lane.b32.xlu0 %v2538, 61
      %v2566 = vpop.permute.xlu0 %2565
      %2567 = vrot.lane.b32.xlu0 %v2539, 61
      %v2568 = vpop.permute.xlu0 %2567
      %2569 = vrot.lane.b32.xlu0 %v2540, 61
      %v2570 = vpop.permute.xlu0 %2569
      %2571 = vrot.lane.b32.xlu0 %v2541, 61
      %v2572 = vpop.permute.xlu0 %2571
      %2573 = vrot.lane.b32.xlu0 %v2542, 61
      %v2574 = vpop.permute.xlu0 %2573
      %2575 = vrot.lane.b32.xlu0 %v2543, 61
      %v2576 = vpop.permute.xlu0 %2575
      %2577 = vrot.lane.b32.xlu0 %v2544, 61
      %v2578 = vpop.permute.xlu0 %2577
      %2579 = vrot.lane.b32.xlu0 %v2545, 61
      %v2580 = vpop.permute.xlu0 %2579
      %2581 = vrot.lane.b32.xlu0 %v2546, 61
      %v2582 = vpop.permute.xlu0 %2581
      %vm2583 = vcmask 498688
      %v2584 = vsel %vm2583, %v2560, %v2562
      %v2585 = vsel %vm2583, %v2562, %v2564
      %v2586 = vsel %vm2583, %v2564, %v2566
      %v2587 = vsel %vm2583, %v2566, %v2568
      %v2588 = vsel %vm2583, %v2568, %v2570
      %v2589 = vsel %vm2583, %v2570, %v2572
      %v2590 = vsel %vm2583, %v2572, %v2574
      %v2591 = vsel %vm2583, %v2574, %v2576
      %v2592 = vsel %vm2583, %v2576, %v2578
      %v2593 = vsel %vm2583, %v2578, %v2580
      %v2594 = vsel %vm2583, %v2580, %v2582
      %v2606 = vadd.f32 %v2520, %v2584
      %v2607 = vadd.f32 %v2521, %v2585
      %v2608 = vadd.f32 %v2522, %v2586
      %v2609 = vadd.f32 %v2523, %v2587
      %v2610 = vadd.f32 %v2524, %v2588
      %v2611 = vadd.f32 %v2525, %v2589
      %v2612 = vadd.f32 %v2526, %v2590
      %v2613 = vadd.f32 %v2527, %v2591
      %v2614 = vadd.f32 %v2528, %v2592
      %v2615 = vadd.f32 %v2529, %v2593
      %v2616 = vadd.f32 %v2530, %v2594
      %2617 = vset.pattern.permute.xlu0 24
      %2618 = vperm.xlu0 %2617, %v582
      %v2619 = vpop.permute.xlu0 %2618
      %v2621 = vmul.f32 %v1831, %v2619
      %v2622 = vmul.f32 %v1832, %v2619
      %v2623 = vmul.f32 %v1833, %v2619
      %v2624 = vmul.f32 %v1834, %v2619
      %v2625 = vmul.f32 %v1835, %v2619
      %v2626 = vmul.f32 %v1836, %v2619
      %v2627 = vmul.f32 %v1837, %v2619
      %v2628 = vmul.f32 %v1838, %v2619
      %v2629 = vmul.f32 %v1839, %v2619
      %v2630 = vmul.f32 %v1840, %v2619
      %v2631 = vmul.f32 %v1841, %v2619
      %v2632 = vmul.f32 %v1842, %v2619
      %2645 = vrot.lane.b32.xlu0 %v2621, 60
      %v2646 = vpop.permute.xlu0 %2645
      %2647 = vrot.lane.b32.xlu0 %v2622, 60
      %v2648 = vpop.permute.xlu0 %2647
      %2649 = vrot.lane.b32.xlu0 %v2623, 60
      %v2650 = vpop.permute.xlu0 %2649
      %2651 = vrot.lane.b32.xlu0 %v2624, 60
      %v2652 = vpop.permute.xlu0 %2651
      %2653 = vrot.lane.b32.xlu0 %v2625, 60
      %v2654 = vpop.permute.xlu0 %2653
      %2655 = vrot.lane.b32.xlu0 %v2626, 60
      %v2656 = vpop.permute.xlu0 %2655
      %2657 = vrot.lane.b32.xlu0 %v2627, 60
      %v2658 = vpop.permute.xlu0 %2657
      %2659 = vrot.lane.b32.xlu0 %v2628, 60
      %v2660 = vpop.permute.xlu0 %2659
      %2661 = vrot.lane.b32.xlu0 %v2629, 60
      %v2662 = vpop.permute.xlu0 %2661
      %2663 = vrot.lane.b32.xlu0 %v2630, 60
      %v2664 = vpop.permute.xlu0 %2663
      %2665 = vrot.lane.b32.xlu0 %v2631, 60
      %v2666 = vpop.permute.xlu0 %2665
      %2667 = vrot.lane.b32.xlu0 %v2632, 60
      %v2668 = vpop.permute.xlu0 %2667
      %vm2669 = vcmask 490496
      %v2670 = vsel %vm2669, %v2646, %v2648
      %v2671 = vsel %vm2669, %v2648, %v2650
      %v2672 = vsel %vm2669, %v2650, %v2652
      %v2673 = vsel %vm2669, %v2652, %v2654
      %v2674 = vsel %vm2669, %v2654, %v2656
      %v2675 = vsel %vm2669, %v2656, %v2658
      %v2676 = vsel %vm2669, %v2658, %v2660
      %v2677 = vsel %vm2669, %v2660, %v2662
      %v2678 = vsel %vm2669, %v2662, %v2664
      %v2679 = vsel %vm2669, %v2664, %v2666
      %v2680 = vsel %vm2669, %v2666, %v2668
      %v2692 = vadd.f32 %v2606, %v2670
      %v2693 = vadd.f32 %v2607, %v2671
      %v2694 = vadd.f32 %v2608, %v2672
      %v2695 = vadd.f32 %v2609, %v2673
      %v2696 = vadd.f32 %v2610, %v2674
      %v2697 = vadd.f32 %v2611, %v2675
      %v2698 = vadd.f32 %v2612, %v2676
      %v2699 = vadd.f32 %v2613, %v2677
      %v2700 = vadd.f32 %v2614, %v2678
      %v2701 = vadd.f32 %v2615, %v2679
      %v2702 = vadd.f32 %v2616, %v2680
      %2704 = vset.pattern.permute.xlu0 0
      %2705 = vperm.xlu0 %2704, %v584
      %v2706 = vpop.permute.xlu0 %2705
      %v2708 = vadd.f32 %v2692, %v2706
      %v2709 = vadd.f32 %v2693, %v2706
      %v2710 = vadd.f32 %v2694, %v2706
      %v2711 = vadd.f32 %v2695, %v2706
      %v2712 = vadd.f32 %v2696, %v2706
      %v2713 = vadd.f32 %v2697, %v2706
      %v2714 = vadd.f32 %v2698, %v2706
      %v2715 = vadd.f32 %v2699, %v2706
      %v2716 = vadd.f32 %v2700, %v2706
      %v2717 = vadd.f32 %v2701, %v2706
      %v2718 = vadd.f32 %v2702, %v2706
      %v2721 = vlaneseq
      %v2722 = vshrl.u32 %v2721, 7
      %v2723 = vsub.s32 0, %v2722
      %v2724 = vrot.slane %v586, %v2723
      %v2725 = vlaneseq
      %v2726 = vshrl.u32 %v2725, 7
      %v2727 = vsub.s32 1, %v2726
      %v2728 = vrot.slane %v586, %v2727
      %v2729 = vlaneseq
      %v2730 = vshrl.u32 %v2729, 7
      %v2731 = vsub.s32 2, %v2730
      %v2732 = vrot.slane %v586, %v2731
      %v2733 = vlaneseq
      %v2734 = vshrl.u32 %v2733, 7
      %v2735 = vsub.s32 3, %v2734
      %v2736 = vrot.slane %v586, %v2735
      %v2737 = vlaneseq
      %v2738 = vshrl.u32 %v2737, 7
      %v2739 = vsub.s32 4, %v2738
      %v2740 = vrot.slane %v586, %v2739
      %v2741 = vlaneseq
      %v2742 = vshrl.u32 %v2741, 7
      %v2743 = vsub.s32 5, %v2742
      %v2744 = vrot.slane %v586, %v2743
      %v2745 = vlaneseq
      %v2746 = vshrl.u32 %v2745, 7
      %v2747 = vsub.s32 6, %v2746
      %v2748 = vrot.slane %v586, %v2747
      %v2749 = vlaneseq
      %v2750 = vshrl.u32 %v2749, 7
      %v2751 = vsub.s32 7, %v2750
      %v2752 = vrot.slane %v586, %v2751
      %v2753 = vlaneseq
      %v2754 = vshrl.u32 %v2753, 7
      %v2755 = vsub.s32 0, %v2754
      %v2756 = vrot.slane %v587, %v2755
      %v2757 = vlaneseq
      %v2758 = vshrl.u32 %v2757, 7
      %v2759 = vsub.s32 1, %v2758
      %v2760 = vrot.slane %v587, %v2759
      %v2761 = vlaneseq
      %v2762 = vshrl.u32 %v2761, 7
      %v2763 = vsub.s32 2, %v2762
      %v2764 = vrot.slane %v587, %v2763
      %v2776 = vmul.f32 %v2708, %v2724
      %v2777 = vmul.f32 %v2709, %v2728
      %v2778 = vmul.f32 %v2710, %v2732
      %v2779 = vmul.f32 %v2711, %v2736
      %v2780 = vmul.f32 %v2712, %v2740
      %v2781 = vmul.f32 %v2713, %v2744
      %v2782 = vmul.f32 %v2714, %v2748
      %v2783 = vmul.f32 %v2715, %v2752
      %v2784 = vmul.f32 %v2716, %v2756
      %v2785 = vmul.f32 %v2717, %v2760
      %v2786 = vmul.f32 %v2718, %v2764
      %2787 = vst [vmem:[#allocation3] sm:$0xff] %v2776
      %2788 = vst [vmem:[#allocation3 + $0x8] sm:$0xff] %v2777
      %2789 = vst [vmem:[#allocation3 + $0x10] sm:$0xff] %v2778
      %2790 = vst [vmem:[#allocation3 + $0x18] sm:$0xff] %v2779
      %2791 = vst [vmem:[#allocation3 + $0x20] sm:$0xff] %v2780
      %2792 = vst [vmem:[#allocation3 + $0x28] sm:$0xff] %v2781
      %2793 = vst [vmem:[#allocation3 + $0x30] sm:$0xff] %v2782
      %2794 = vst [vmem:[#allocation3 + $0x38] sm:$0xff] %v2783
      %2795 = vst [vmem:[#allocation3 + $0x40] sm:$0xff] %v2784
      %2796 = vst [vmem:[#allocation3 + $0x48] sm:$0xff] %v2785
      %2797 = vst [vmem:[#allocation3 + $0x50] sm:$0xff] %v2786
      %v2798 = vld [vmem:[#allocation3] sm:$0xff]
      %v2799 = vld [vmem:[#allocation3 + $0x8] sm:$0xff]
      %v2800 = vld [vmem:[#allocation3 + $0x10] sm:$0xff]
      %2802 = vset.pattern.permute.xlu0 0
      %2803 = vperm.xlu0 %2802, %v583
      %v2804 = vpop.permute.xlu0 %2803
      %v2806 = vmul.f32 %v2798, %v2804
      %v2807 = vmul.f32 %v2799, %v2804
      %v2808 = vmul.f32 %v2800, %v2804
      %v2809 = vld [vmem:[#allocation3] sm:$0xff]
      %v2810 = vld [vmem:[#allocation3 + $0x8] sm:$0xff]
      %v2811 = vld [vmem:[#allocation3 + $0x10] sm:$0xff]
      %v2812 = vld [vmem:[#allocation3 + $0x18] sm:$0xff]
      %2813 = vset.pattern.permute.xlu0 1
      %2814 = vperm.xlu0 %2813, %v583
      %v2815 = vpop.permute.xlu0 %2814
      %v2817 = vmul.f32 %v2809, %v2815
      %v2818 = vmul.f32 %v2810, %v2815
      %v2819 = vmul.f32 %v2811, %v2815
      %v2820 = vmul.f32 %v2812, %v2815
      %2825 = vrot.lane.b32.xlu0 %v2817, 125
      %v2826 = vpop.permute.xlu0 %2825
      %2827 = vrot.lane.b32.xlu0 %v2818, 125
      %v2828 = vpop.permute.xlu0 %2827
      %2829 = vrot.lane.b32.xlu0 %v2819, 125
      %v2830 = vpop.permute.xlu0 %2829
      %2831 = vrot.lane.b32.xlu0 %v2820, 125
      %v2832 = vpop.permute.xlu0 %2831
      %v2833 = vsel %vm851, %v2826, %v2828
      %v2834 = vsel %vm851, %v2828, %v2830
      %v2835 = vsel %vm851, %v2830, %v2832
      %v2839 = vadd.f32 %v2806, %v2833
      %v2840 = vadd.f32 %v2807, %v2834
      %v2841 = vadd.f32 %v2808, %v2835
      %2842 = vset.pattern.permute.xlu0 2
      %2843 = vperm.xlu0 %2842, %v583
      %v2844 = vpop.permute.xlu0 %2843
      %v2846 = vmul.f32 %v2809, %v2844
      %v2847 = vmul.f32 %v2810, %v2844
      %v2848 = vmul.f32 %v2811, %v2844
      %v2849 = vmul.f32 %v2812, %v2844
      %2854 = vrot.lane.b32.xlu0 %v2846, 122
      %v2855 = vpop.permute.xlu0 %2854
      %2856 = vrot.lane.b32.xlu0 %v2847, 122
      %v2857 = vpop.permute.xlu0 %2856
      %2858 = vrot.lane.b32.xlu0 %v2848, 122
      %v2859 = vpop.permute.xlu0 %2858
      %2860 = vrot.lane.b32.xlu0 %v2849, 122
      %v2861 = vpop.permute.xlu0 %2860
      %vm2862 = vcmask 998400
      %v2863 = vsel %vm2862, %v2855, %v2857
      %v2864 = vsel %vm2862, %v2857, %v2859
      %v2865 = vsel %vm2862, %v2859, %v2861
      %v2869 = vadd.f32 %v2839, %v2863
      %v2870 = vadd.f32 %v2840, %v2864
      %v2871 = vadd.f32 %v2841, %v2865
      %2872 = vset.pattern.permute.xlu0 3
      %2873 = vperm.xlu0 %2872, %v583
      %v2874 = vpop.permute.xlu0 %2873
      %v2876 = vmul.f32 %v2809, %v2874
      %v2877 = vmul.f32 %v2810, %v2874
      %v2878 = vmul.f32 %v2811, %v2874
      %v2879 = vmul.f32 %v2812, %v2874
      %2884 = vrot.lane.b32.xlu0 %v2876, 119
      %v2885 = vpop.permute.xlu0 %2884
      %2886 = vrot.lane.b32.xlu0 %v2877, 119
      %v2887 = vpop.permute.xlu0 %2886
      %2888 = vrot.lane.b32.xlu0 %v2878, 119
      %v2889 = vpop.permute.xlu0 %2888
      %2890 = vrot.lane.b32.xlu0 %v2879, 119
      %v2891 = vpop.permute.xlu0 %2890
      %vm2892 = vcmask 973824
      %v2893 = vsel %vm2892, %v2885, %v2887
      %v2894 = vsel %vm2892, %v2887, %v2889
      %v2895 = vsel %vm2892, %v2889, %v2891
      %v2899 = vadd.f32 %v2869, %v2893
      %v2900 = vadd.f32 %v2870, %v2894
      %v2901 = vadd.f32 %v2871, %v2895
      %2902 = vset.pattern.permute.xlu0 4
      %2903 = vperm.xlu0 %2902, %v583
      %v2904 = vpop.permute.xlu0 %2903
      %v2906 = vmul.f32 %v2809, %v2904
      %v2907 = vmul.f32 %v2810, %v2904
      %v2908 = vmul.f32 %v2811, %v2904
      %v2909 = vmul.f32 %v2812, %v2904
      %2914 = vrot.lane.b32.xlu0 %v2906, 116
      %v2915 = vpop.permute.xlu0 %2914
      %2916 = vrot.lane.b32.xlu0 %v2907, 116
      %v2917 = vpop.permute.xlu0 %2916
      %2918 = vrot.lane.b32.xlu0 %v2908, 116
      %v2919 = vpop.permute.xlu0 %2918
      %2920 = vrot.lane.b32.xlu0 %v2909, 116
      %v2921 = vpop.permute.xlu0 %2920
      %vm2922 = vcmask 949248
      %v2923 = vsel %vm2922, %v2915, %v2917
      %v2924 = vsel %vm2922, %v2917, %v2919
      %v2925 = vsel %vm2922, %v2919, %v2921
      %v2929 = vadd.f32 %v2899, %v2923
      %v2930 = vadd.f32 %v2900, %v2924
      %v2931 = vadd.f32 %v2901, %v2925
      %2932 = vset.pattern.permute.xlu0 5
      %2933 = vperm.xlu0 %2932, %v583
      %v2934 = vpop.permute.xlu0 %2933
      %v2936 = vmul.f32 %v2809, %v2934
      %v2937 = vmul.f32 %v2810, %v2934
      %v2938 = vmul.f32 %v2811, %v2934
      %v2939 = vmul.f32 %v2812, %v2934
      %2944 = vrot.lane.b32.xlu0 %v2936, 113
      %v2945 = vpop.permute.xlu0 %2944
      %2946 = vrot.lane.b32.xlu0 %v2937, 113
      %v2947 = vpop.permute.xlu0 %2946
      %2948 = vrot.lane.b32.xlu0 %v2938, 113
      %v2949 = vpop.permute.xlu0 %2948
      %2950 = vrot.lane.b32.xlu0 %v2939, 113
      %v2951 = vpop.permute.xlu0 %2950
      %vm2952 = vcmask 924672
      %v2953 = vsel %vm2952, %v2945, %v2947
      %v2954 = vsel %vm2952, %v2947, %v2949
      %v2955 = vsel %vm2952, %v2949, %v2951
      %v2959 = vadd.f32 %v2929, %v2953
      %v2960 = vadd.f32 %v2930, %v2954
      %v2961 = vadd.f32 %v2931, %v2955
      %2962 = vset.pattern.permute.xlu0 6
      %2963 = vperm.xlu0 %2962, %v583
      %v2964 = vpop.permute.xlu0 %2963
      %v2966 = vmul.f32 %v2809, %v2964
      %v2967 = vmul.f32 %v2810, %v2964
      %v2968 = vmul.f32 %v2811, %v2964
      %v2969 = vmul.f32 %v2812, %v2964
      %2974 = vrot.lane.b32.xlu0 %v2966, 110
      %v2975 = vpop.permute.xlu0 %2974
      %2976 = vrot.lane.b32.xlu0 %v2967, 110
      %v2977 = vpop.permute.xlu0 %2976
      %2978 = vrot.lane.b32.xlu0 %v2968, 110
      %v2979 = vpop.permute.xlu0 %2978
      %2980 = vrot.lane.b32.xlu0 %v2969, 110
      %v2981 = vpop.permute.xlu0 %2980
      %v2982 = vsel %vm2067, %v2975, %v2977
      %v2983 = vsel %vm2067, %v2977, %v2979
      %v2984 = vsel %vm2067, %v2979, %v2981
      %v2988 = vadd.f32 %v2959, %v2982
      %v2989 = vadd.f32 %v2960, %v2983
      %v2990 = vadd.f32 %v2961, %v2984
      %v2991 = vld [vmem:[#allocation3 + $0x8] sm:$0xff]
      %v2992 = vld [vmem:[#allocation3 + $0x10] sm:$0xff]
      %v2993 = vld [vmem:[#allocation3 + $0x18] sm:$0xff]
      %v2994 = vld [vmem:[#allocation3 + $0x20] sm:$0xff]
      %2995 = vset.pattern.permute.xlu0 7
      %2996 = vperm.xlu0 %2995, %v583
      %v2997 = vpop.permute.xlu0 %2996
      %v2999 = vmul.f32 %v2991, %v2997
      %v3000 = vmul.f32 %v2992, %v2997
      %v3001 = vmul.f32 %v2993, %v2997
      %v3002 = vmul.f32 %v2994, %v2997
      %3007 = vrot.lane.b32.xlu0 %v2999, 112
      %v3008 = vpop.permute.xlu0 %3007
      %3009 = vrot.lane.b32.xlu0 %v3000, 112
      %v3010 = vpop.permute.xlu0 %3009
      %3011 = vrot.lane.b32.xlu0 %v3001, 112
      %v3012 = vpop.permute.xlu0 %3011
      %3013 = vrot.lane.b32.xlu0 %v3002, 112
      %v3014 = vpop.permute.xlu0 %3013
      %v3015 = vsel %vm1895, %v3008, %v3010
      %v3016 = vsel %vm1895, %v3010, %v3012
      %v3017 = vsel %vm1895, %v3012, %v3014
      %v3021 = vadd.f32 %v2988, %v3015
      %v3022 = vadd.f32 %v2989, %v3016
      %v3023 = vadd.f32 %v2990, %v3017
      %3024 = vset.pattern.permute.xlu0 8
      %3025 = vperm.xlu0 %3024, %v583
      %v3026 = vpop.permute.xlu0 %3025
      %v3028 = vmul.f32 %v2991, %v3026
      %v3029 = vmul.f32 %v2992, %v3026
      %v3030 = vmul.f32 %v2993, %v3026
      %v3031 = vmul.f32 %v2994, %v3026
      %3036 = vrot.lane.b32.xlu0 %v3028, 109
      %v3037 = vpop.permute.xlu0 %3036
      %3038 = vrot.lane.b32.xlu0 %v3029, 109
      %v3039 = vpop.permute.xlu0 %3038
      %3040 = vrot.lane.b32.xlu0 %v3030, 109
      %v3041 = vpop.permute.xlu0 %3040
      %3042 = vrot.lane.b32.xlu0 %v3031, 109
      %v3043 = vpop.permute.xlu0 %3042
      %v3044 = vsel %vm2153, %v3037, %v3039
      %v3045 = vsel %vm2153, %v3039, %v3041
      %v3046 = vsel %vm2153, %v3041, %v3043
      %v3050 = vadd.f32 %v3021, %v3044
      %v3051 = vadd.f32 %v3022, %v3045
      %v3052 = vadd.f32 %v3023, %v3046
      %3053 = vset.pattern.permute.xlu0 9
      %3054 = vperm.xlu0 %3053, %v583
      %v3055 = vpop.permute.xlu0 %3054
      %v3057 = vmul.f32 %v2991, %v3055
      %v3058 = vmul.f32 %v2992, %v3055
      %v3059 = vmul.f32 %v2993, %v3055
      %v3060 = vmul.f32 %v2994, %v3055
      %3065 = vrot.lane.b32.xlu0 %v3057, 106
      %v3066 = vpop.permute.xlu0 %3065
      %3067 = vrot.lane.b32.xlu0 %v3058, 106
      %v3068 = vpop.permute.xlu0 %3067
      %3069 = vrot.lane.b32.xlu0 %v3059, 106
      %v3070 = vpop.permute.xlu0 %3069
      %3071 = vrot.lane.b32.xlu0 %v3060, 106
      %v3072 = vpop.permute.xlu0 %3071
      %vm3073 = vcmask 867328
      %v3074 = vsel %vm3073, %v3066, %v3068
      %v3075 = vsel %vm3073, %v3068, %v3070
      %v3076 = vsel %vm3073, %v3070, %v3072
      %v3080 = vadd.f32 %v3050, %v3074
      %v3081 = vadd.f32 %v3051, %v3075
      %v3082 = vadd.f32 %v3052, %v3076
      %3083 = vset.pattern.permute.xlu0 10
      %3084 = vperm.xlu0 %3083, %v583
      %v3085 = vpop.permute.xlu0 %3084
      %v3087 = vmul.f32 %v2991, %v3085
      %v3088 = vmul.f32 %v2992, %v3085
      %v3089 = vmul.f32 %v2993, %v3085
      %v3090 = vmul.f32 %v2994, %v3085
      %3095 = vrot.lane.b32.xlu0 %v3087, 103
      %v3096 = vpop.permute.xlu0 %3095
      %3097 = vrot.lane.b32.xlu0 %v3088, 103
      %v3098 = vpop.permute.xlu0 %3097
      %3099 = vrot.lane.b32.xlu0 %v3089, 103
      %v3100 = vpop.permute.xlu0 %3099
      %3101 = vrot.lane.b32.xlu0 %v3090, 103
      %v3102 = vpop.permute.xlu0 %3101
      %vm3103 = vcmask 842752
      %v3104 = vsel %vm3103, %v3096, %v3098
      %v3105 = vsel %vm3103, %v3098, %v3100
      %v3106 = vsel %vm3103, %v3100, %v3102
      %v3110 = vadd.f32 %v3080, %v3104
      %v3111 = vadd.f32 %v3081, %v3105
      %v3112 = vadd.f32 %v3082, %v3106
      %3113 = vset.pattern.permute.xlu0 11
      %3114 = vperm.xlu0 %3113, %v583
      %v3115 = vpop.permute.xlu0 %3114
      %v3117 = vmul.f32 %v2991, %v3115
      %v3118 = vmul.f32 %v2992, %v3115
      %v3119 = vmul.f32 %v2993, %v3115
      %v3120 = vmul.f32 %v2994, %v3115
      %3125 = vrot.lane.b32.xlu0 %v3117, 100
      %v3126 = vpop.permute.xlu0 %3125
      %3127 = vrot.lane.b32.xlu0 %v3118, 100
      %v3128 = vpop.permute.xlu0 %3127
      %3129 = vrot.lane.b32.xlu0 %v3119, 100
      %v3130 = vpop.permute.xlu0 %3129
      %3131 = vrot.lane.b32.xlu0 %v3120, 100
      %v3132 = vpop.permute.xlu0 %3131
      %vm3133 = vcmask 818176
      %v3134 = vsel %vm3133, %v3126, %v3128
      %v3135 = vsel %vm3133, %v3128, %v3130
      %v3136 = vsel %vm3133, %v3130, %v3132
      %v3140 = vadd.f32 %v3110, %v3134
      %v3141 = vadd.f32 %v3111, %v3135
      %v3142 = vadd.f32 %v3112, %v3136
      %3143 = vset.pattern.permute.xlu0 12
      %3144 = vperm.xlu0 %3143, %v583
      %v3145 = vpop.permute.xlu0 %3144
      %v3147 = vmul.f32 %v2991, %v3145
      %v3148 = vmul.f32 %v2992, %v3145
      %v3149 = vmul.f32 %v2993, %v3145
      %v3150 = vmul.f32 %v2994, %v3145
      %3155 = vrot.lane.b32.xlu0 %v3147, 97
      %v3156 = vpop.permute.xlu0 %3155
      %3157 = vrot.lane.b32.xlu0 %v3148, 97
      %v3158 = vpop.permute.xlu0 %3157
      %3159 = vrot.lane.b32.xlu0 %v3149, 97
      %v3160 = vpop.permute.xlu0 %3159
      %3161 = vrot.lane.b32.xlu0 %v3150, 97
      %v3162 = vpop.permute.xlu0 %3161
      %vm3163 = vcmask 793600
      %v3164 = vsel %vm3163, %v3156, %v3158
      %v3165 = vsel %vm3163, %v3158, %v3160
      %v3166 = vsel %vm3163, %v3160, %v3162
      %v3170 = vadd.f32 %v3140, %v3164
      %v3171 = vadd.f32 %v3141, %v3165
      %v3172 = vadd.f32 %v3142, %v3166
      %3173 = vset.pattern.permute.xlu0 13
      %3174 = vperm.xlu0 %3173, %v583
      %v3175 = vpop.permute.xlu0 %3174
      %v3177 = vmul.f32 %v2991, %v3175
      %v3178 = vmul.f32 %v2992, %v3175
      %v3179 = vmul.f32 %v2993, %v3175
      %v3180 = vmul.f32 %v2994, %v3175
      %3185 = vrot.lane.b32.xlu0 %v3177, 94
      %v3186 = vpop.permute.xlu0 %3185
      %3187 = vrot.lane.b32.xlu0 %v3178, 94
      %v3188 = vpop.permute.xlu0 %3187
      %3189 = vrot.lane.b32.xlu0 %v3179, 94
      %v3190 = vpop.permute.xlu0 %3189
      %3191 = vrot.lane.b32.xlu0 %v3180, 94
      %v3192 = vpop.permute.xlu0 %3191
      %vm3193 = vcmask 769024
      %v3194 = vsel %vm3193, %v3186, %v3188
      %v3195 = vsel %vm3193, %v3188, %v3190
      %v3196 = vsel %vm3193, %v3190, %v3192
      %v3200 = vadd.f32 %v3170, %v3194
      %v3201 = vadd.f32 %v3171, %v3195
      %v3202 = vadd.f32 %v3172, %v3196
      %v3203 = vld [vmem:[#allocation3 + $0x10] sm:$0xff]
      %v3204 = vld [vmem:[#allocation3 + $0x18] sm:$0xff]
      %v3205 = vld [vmem:[#allocation3 + $0x20] sm:$0xff]
      %v3206 = vld [vmem:[#allocation3 + $0x28] sm:$0xff]
      %3207 = vset.pattern.permute.xlu0 14
      %3208 = vperm.xlu0 %3207, %v583
      %v3209 = vpop.permute.xlu0 %3208
      %v3211 = vmul.f32 %v3203, %v3209
      %v3212 = vmul.f32 %v3204, %v3209
      %v3213 = vmul.f32 %v3205, %v3209
      %v3214 = vmul.f32 %v3206, %v3209
      %3219 = vrot.lane.b32.xlu0 %v3211, 96
      %v3220 = vpop.permute.xlu0 %3219
      %3221 = vrot.lane.b32.xlu0 %v3212, 96
      %v3222 = vpop.permute.xlu0 %3221
      %3223 = vrot.lane.b32.xlu0 %v3213, 96
      %v3224 = vpop.permute.xlu0 %3223
      %3225 = vrot.lane.b32.xlu0 %v3214, 96
      %v3226 = vpop.permute.xlu0 %3225
      %vm3227 = vcmask 785408
      %v3228 = vsel %vm3227, %v3220, %v3222
      %v3229 = vsel %vm3227, %v3222, %v3224
      %v3230 = vsel %vm3227, %v3224, %v3226
      %v3234 = vadd.f32 %v3200, %v3228
      %v3235 = vadd.f32 %v3201, %v3229
      %v3236 = vadd.f32 %v3202, %v3230
      %3237 = vset.pattern.permute.xlu0 15
      %3238 = vperm.xlu0 %3237, %v583
      %v3239 = vpop.permute.xlu0 %3238
      %v3241 = vmul.f32 %v3203, %v3239
      %v3242 = vmul.f32 %v3204, %v3239
      %v3243 = vmul.f32 %v3205, %v3239
      %v3244 = vmul.f32 %v3206, %v3239
      %3249 = vrot.lane.b32.xlu0 %v3241, 93
      %v3250 = vpop.permute.xlu0 %3249
      %3251 = vrot.lane.b32.xlu0 %v3242, 93
      %v3252 = vpop.permute.xlu0 %3251
      %3253 = vrot.lane.b32.xlu0 %v3243, 93
      %v3254 = vpop.permute.xlu0 %3253
      %3255 = vrot.lane.b32.xlu0 %v3244, 93
      %v3256 = vpop.permute.xlu0 %3255
      %vm3257 = vcmask 760832
      %v3258 = vsel %vm3257, %v3250, %v3252
      %v3259 = vsel %vm3257, %v3252, %v3254
      %v3260 = vsel %vm3257, %v3254, %v3256
      %v3264 = vadd.f32 %v3234, %v3258
      %v3265 = vadd.f32 %v3235, %v3259
      %v3266 = vadd.f32 %v3236, %v3260
      %3267 = vset.pattern.permute.xlu0 16
      %3268 = vperm.xlu0 %3267, %v583
      %v3269 = vpop.permute.xlu0 %3268
      %v3271 = vmul.f32 %v3203, %v3269
      %v3272 = vmul.f32 %v3204, %v3269
      %v3273 = vmul.f32 %v3205, %v3269
      %v3274 = vmul.f32 %v3206, %v3269
      %3279 = vrot.lane.b32.xlu0 %v3271, 90
      %v3280 = vpop.permute.xlu0 %3279
      %3281 = vrot.lane.b32.xlu0 %v3272, 90
      %v3282 = vpop.permute.xlu0 %3281
      %3283 = vrot.lane.b32.xlu0 %v3273, 90
      %v3284 = vpop.permute.xlu0 %3283
      %3285 = vrot.lane.b32.xlu0 %v3274, 90
      %v3286 = vpop.permute.xlu0 %3285
      %vm3287 = vcmask 736256
      %v3288 = vsel %vm3287, %v3280, %v3282
      %v3289 = vsel %vm3287, %v3282, %v3284
      %v3290 = vsel %vm3287, %v3284, %v3286
      %v3294 = vadd.f32 %v3264, %v3288
      %v3295 = vadd.f32 %v3265, %v3289
      %v3296 = vadd.f32 %v3266, %v3290
      %3297 = vset.pattern.permute.xlu0 17
      %3298 = vperm.xlu0 %3297, %v583
      %v3299 = vpop.permute.xlu0 %3298
      %v3301 = vmul.f32 %v3203, %v3299
      %v3302 = vmul.f32 %v3204, %v3299
      %v3303 = vmul.f32 %v3205, %v3299
      %v3304 = vmul.f32 %v3206, %v3299
      %3309 = vrot.lane.b32.xlu0 %v3301, 87
      %v3310 = vpop.permute.xlu0 %3309
      %3311 = vrot.lane.b32.xlu0 %v3302, 87
      %v3312 = vpop.permute.xlu0 %3311
      %3313 = vrot.lane.b32.xlu0 %v3303, 87
      %v3314 = vpop.permute.xlu0 %3313
      %3315 = vrot.lane.b32.xlu0 %v3304, 87
      %v3316 = vpop.permute.xlu0 %3315
      %vm3317 = vcmask 711680
      %v3318 = vsel %vm3317, %v3310, %v3312
      %v3319 = vsel %vm3317, %v3312, %v3314
      %v3320 = vsel %vm3317, %v3314, %v3316
      %v3324 = vadd.f32 %v3294, %v3318
      %v3325 = vadd.f32 %v3295, %v3319
      %v3326 = vadd.f32 %v3296, %v3320
      %3327 = vset.pattern.permute.xlu0 18
      %3328 = vperm.xlu0 %3327, %v583
      %v3329 = vpop.permute.xlu0 %3328
      %v3331 = vmul.f32 %v3203, %v3329
      %v3332 = vmul.f32 %v3204, %v3329
      %v3333 = vmul.f32 %v3205, %v3329
      %v3334 = vmul.f32 %v3206, %v3329
      %3339 = vrot.lane.b32.xlu0 %v3331, 84
      %v3340 = vpop.permute.xlu0 %3339
      %3341 = vrot.lane.b32.xlu0 %v3332, 84
      %v3342 = vpop.permute.xlu0 %3341
      %3343 = vrot.lane.b32.xlu0 %v3333, 84
      %v3344 = vpop.permute.xlu0 %3343
      %3345 = vrot.lane.b32.xlu0 %v3334, 84
      %v3346 = vpop.permute.xlu0 %3345
      %vm3347 = vcmask 687104
      %v3348 = vsel %vm3347, %v3340, %v3342
      %v3349 = vsel %vm3347, %v3342, %v3344
      %v3350 = vsel %vm3347, %v3344, %v3346
      %v3354 = vadd.f32 %v3324, %v3348
      %v3355 = vadd.f32 %v3325, %v3349
      %v3356 = vadd.f32 %v3326, %v3350
      %3357 = vset.pattern.permute.xlu0 19
      %3358 = vperm.xlu0 %3357, %v583
      %v3359 = vpop.permute.xlu0 %3358
      %v3361 = vmul.f32 %v3203, %v3359
      %v3362 = vmul.f32 %v3204, %v3359
      %v3363 = vmul.f32 %v3205, %v3359
      %v3364 = vmul.f32 %v3206, %v3359
      %3369 = vrot.lane.b32.xlu0 %v3361, 81
      %v3370 = vpop.permute.xlu0 %3369
      %3371 = vrot.lane.b32.xlu0 %v3362, 81
      %v3372 = vpop.permute.xlu0 %3371
      %3373 = vrot.lane.b32.xlu0 %v3363, 81
      %v3374 = vpop.permute.xlu0 %3373
      %3375 = vrot.lane.b32.xlu0 %v3364, 81
      %v3376 = vpop.permute.xlu0 %3375
      %vm3377 = vcmask 662528
      %v3378 = vsel %vm3377, %v3370, %v3372
      %v3379 = vsel %vm3377, %v3372, %v3374
      %v3380 = vsel %vm3377, %v3374, %v3376
      %v3384 = vadd.f32 %v3354, %v3378
      %v3385 = vadd.f32 %v3355, %v3379
      %v3386 = vadd.f32 %v3356, %v3380
      %3387 = vset.pattern.permute.xlu0 20
      %3388 = vperm.xlu0 %3387, %v583
      %v3389 = vpop.permute.xlu0 %3388
      %v3391 = vmul.f32 %v3203, %v3389
      %v3392 = vmul.f32 %v3204, %v3389
      %v3393 = vmul.f32 %v3205, %v3389
      %v3394 = vmul.f32 %v3206, %v3389
      %3399 = vrot.lane.b32.xlu0 %v3391, 78
      %v3400 = vpop.permute.xlu0 %3399
      %3401 = vrot.lane.b32.xlu0 %v3392, 78
      %v3402 = vpop.permute.xlu0 %3401
      %3403 = vrot.lane.b32.xlu0 %v3393, 78
      %v3404 = vpop.permute.xlu0 %3403
      %3405 = vrot.lane.b32.xlu0 %v3394, 78
      %v3406 = vpop.permute.xlu0 %3405
      %v3407 = vsel %vm1195, %v3400, %v3402
      %v3408 = vsel %vm1195, %v3402, %v3404
      %v3409 = vsel %vm1195, %v3404, %v3406
      %v3413 = vadd.f32 %v3384, %v3407
      %v3414 = vadd.f32 %v3385, %v3408
      %v3415 = vadd.f32 %v3386, %v3409
      %v3416 = vld [vmem:[#allocation3 + $0x18] sm:$0xff]
      %v3417 = vld [vmem:[#allocation3 + $0x20] sm:$0xff]
      %v3418 = vld [vmem:[#allocation3 + $0x28] sm:$0xff]
      %v3419 = vld [vmem:[#allocation3 + $0x30] sm:$0xff]
      %3420 = vset.pattern.permute.xlu0 21
      %3421 = vperm.xlu0 %3420, %v583
      %v3422 = vpop.permute.xlu0 %3421
      %v3424 = vmul.f32 %v3416, %v3422
      %v3425 = vmul.f32 %v3417, %v3422
      %v3426 = vmul.f32 %v3418, %v3422
      %v3427 = vmul.f32 %v3419, %v3422
      %3432 = vrot.lane.b32.xlu0 %v3424, 80
      %v3433 = vpop.permute.xlu0 %3432
      %3434 = vrot.lane.b32.xlu0 %v3425, 80
      %v3435 = vpop.permute.xlu0 %3434
      %3436 = vrot.lane.b32.xlu0 %v3426, 80
      %v3437 = vpop.permute.xlu0 %3436
      %3438 = vrot.lane.b32.xlu0 %v3427, 80
      %v3439 = vpop.permute.xlu0 %3438
      %v3440 = vsel %vm1023, %v3433, %v3435
      %v3441 = vsel %vm1023, %v3435, %v3437
      %v3442 = vsel %vm1023, %v3437, %v3439
      %v3446 = vadd.f32 %v3413, %v3440
      %v3447 = vadd.f32 %v3414, %v3441
      %v3448 = vadd.f32 %v3415, %v3442
      %3449 = vset.pattern.permute.xlu0 22
      %3450 = vperm.xlu0 %3449, %v583
      %v3451 = vpop.permute.xlu0 %3450
      %v3453 = vmul.f32 %v3416, %v3451
      %v3454 = vmul.f32 %v3417, %v3451
      %v3455 = vmul.f32 %v3418, %v3451
      %v3456 = vmul.f32 %v3419, %v3451
      %3461 = vrot.lane.b32.xlu0 %v3453, 77
      %v3462 = vpop.permute.xlu0 %3461
      %3463 = vrot.lane.b32.xlu0 %v3454, 77
      %v3464 = vpop.permute.xlu0 %3463
      %3465 = vrot.lane.b32.xlu0 %v3455, 77
      %v3466 = vpop.permute.xlu0 %3465
      %3467 = vrot.lane.b32.xlu0 %v3456, 77
      %v3468 = vpop.permute.xlu0 %3467
      %v3469 = vsel %vm1281, %v3462, %v3464
      %v3470 = vsel %vm1281, %v3464, %v3466
      %v3471 = vsel %vm1281, %v3466, %v3468
      %v3475 = vadd.f32 %v3446, %v3469
      %v3476 = vadd.f32 %v3447, %v3470
      %v3477 = vadd.f32 %v3448, %v3471
      %3478 = vset.pattern.permute.xlu0 23
      %3479 = vperm.xlu0 %3478, %v583
      %v3480 = vpop.permute.xlu0 %3479
      %v3482 = vmul.f32 %v3416, %v3480
      %v3483 = vmul.f32 %v3417, %v3480
      %v3484 = vmul.f32 %v3418, %v3480
      %v3485 = vmul.f32 %v3419, %v3480
      %3490 = vrot.lane.b32.xlu0 %v3482, 74
      %v3491 = vpop.permute.xlu0 %3490
      %3492 = vrot.lane.b32.xlu0 %v3483, 74
      %v3493 = vpop.permute.xlu0 %3492
      %3494 = vrot.lane.b32.xlu0 %v3484, 74
      %v3495 = vpop.permute.xlu0 %3494
      %3496 = vrot.lane.b32.xlu0 %v3485, 74
      %v3497 = vpop.permute.xlu0 %3496
      %vm3498 = vcmask 605184
      %v3499 = vsel %vm3498, %v3491, %v3493
      %v3500 = vsel %vm3498, %v3493, %v3495
      %v3501 = vsel %vm3498, %v3495, %v3497
      %v3505 = vadd.f32 %v3475, %v3499
      %v3506 = vadd.f32 %v3476, %v3500
      %v3507 = vadd.f32 %v3477, %v3501
      %3508 = vset.pattern.permute.xlu0 24
      %3509 = vperm.xlu0 %3508, %v583
      %v3510 = vpop.permute.xlu0 %3509
      %v3512 = vmul.f32 %v3416, %v3510
      %v3513 = vmul.f32 %v3417, %v3510
      %v3514 = vmul.f32 %v3418, %v3510
      %v3515 = vmul.f32 %v3419, %v3510
      %3520 = vrot.lane.b32.xlu0 %v3512, 71
      %v3521 = vpop.permute.xlu0 %3520
      %3522 = vrot.lane.b32.xlu0 %v3513, 71
      %v3523 = vpop.permute.xlu0 %3522
      %3524 = vrot.lane.b32.xlu0 %v3514, 71
      %v3525 = vpop.permute.xlu0 %3524
      %3526 = vrot.lane.b32.xlu0 %v3515, 71
      %v3527 = vpop.permute.xlu0 %3526
      %vm3528 = vcmask 580608
      %v3529 = vsel %vm3528, %v3521, %v3523
      %v3530 = vsel %vm3528, %v3523, %v3525
      %v3531 = vsel %vm3528, %v3525, %v3527
      %v3535 = vadd.f32 %v3505, %v3529
      %v3536 = vadd.f32 %v3506, %v3530
      %v3537 = vadd.f32 %v3507, %v3531
      %3538 = vset.pattern.permute.xlu0 25
      %3539 = vperm.xlu0 %3538, %v583
      %v3540 = vpop.permute.xlu0 %3539
      %v3542 = vmul.f32 %v3416, %v3540
      %v3543 = vmul.f32 %v3417, %v3540
      %v3544 = vmul.f32 %v3418, %v3540
      %v3545 = vmul.f32 %v3419, %v3540
      %3550 = vrot.lane.b32.xlu0 %v3542, 68
      %v3551 = vpop.permute.xlu0 %3550
      %3552 = vrot.lane.b32.xlu0 %v3543, 68
      %v3553 = vpop.permute.xlu0 %3552
      %3554 = vrot.lane.b32.xlu0 %v3544, 68
      %v3555 = vpop.permute.xlu0 %3554
      %3556 = vrot.lane.b32.xlu0 %v3545, 68
      %v3557 = vpop.permute.xlu0 %3556
      %vm3558 = vcmask 556032
      %v3559 = vsel %vm3558, %v3551, %v3553
      %v3560 = vsel %vm3558, %v3553, %v3555
      %v3561 = vsel %vm3558, %v3555, %v3557
      %v3565 = vadd.f32 %v3535, %v3559
      %v3566 = vadd.f32 %v3536, %v3560
      %v3567 = vadd.f32 %v3537, %v3561
      %3568 = vset.pattern.permute.xlu0 26
      %3569 = vperm.xlu0 %3568, %v583
      %v3570 = vpop.permute.xlu0 %3569
      %v3572 = vmul.f32 %v3416, %v3570
      %v3573 = vmul.f32 %v3417, %v3570
      %v3574 = vmul.f32 %v3418, %v3570
      %v3575 = vmul.f32 %v3419, %v3570
      %3580 = vrot.lane.b32.xlu0 %v3572, 65
      %v3581 = vpop.permute.xlu0 %3580
      %3582 = vrot.lane.b32.xlu0 %v3573, 65
      %v3583 = vpop.permute.xlu0 %3582
      %3584 = vrot.lane.b32.xlu0 %v3574, 65
      %v3585 = vpop.permute.xlu0 %3584
      %3586 = vrot.lane.b32.xlu0 %v3575, 65
      %v3587 = vpop.permute.xlu0 %3586
      %vm3588 = vcmask 531456
      %v3589 = vsel %vm3588, %v3581, %v3583
      %v3590 = vsel %vm3588, %v3583, %v3585
      %v3591 = vsel %vm3588, %v3585, %v3587
      %v3595 = vadd.f32 %v3565, %v3589
      %v3596 = vadd.f32 %v3566, %v3590
      %v3597 = vadd.f32 %v3567, %v3591
      %3598 = vset.pattern.permute.xlu0 27
      %3599 = vperm.xlu0 %3598, %v583
      %v3600 = vpop.permute.xlu0 %3599
      %v3602 = vmul.f32 %v3416, %v3600
      %v3603 = vmul.f32 %v3417, %v3600
      %v3604 = vmul.f32 %v3418, %v3600
      %v3605 = vmul.f32 %v3419, %v3600
      %3610 = vrot.lane.b32.xlu0 %v3602, 62
      %v3611 = vpop.permute.xlu0 %3610
      %3612 = vrot.lane.b32.xlu0 %v3603, 62
      %v3613 = vpop.permute.xlu0 %3612
      %3614 = vrot.lane.b32.xlu0 %v3604, 62
      %v3615 = vpop.permute.xlu0 %3614
      %3616 = vrot.lane.b32.xlu0 %v3605, 62
      %v3617 = vpop.permute.xlu0 %3616
      %v3618 = vsel %vm2497, %v3611, %v3613
      %v3619 = vsel %vm2497, %v3613, %v3615
      %v3620 = vsel %vm2497, %v3615, %v3617
      %v3624 = vadd.f32 %v3595, %v3618
      %v3625 = vadd.f32 %v3596, %v3619
      %v3626 = vadd.f32 %v3597, %v3620
      %v3627 = vld [vmem:[#allocation3 + $0x20] sm:$0xff]
      %v3628 = vld [vmem:[#allocation3 + $0x28] sm:$0xff]
      %v3629 = vld [vmem:[#allocation3 + $0x30] sm:$0xff]
      %v3630 = vld [vmem:[#allocation3 + $0x38] sm:$0xff]
      %3631 = vset.pattern.permute.xlu0 28
      %3632 = vperm.xlu0 %3631, %v583
      %v3633 = vpop.permute.xlu0 %3632
      %v3635 = vmul.f32 %v3627, %v3633
      %v3636 = vmul.f32 %v3628, %v3633
      %v3637 = vmul.f32 %v3629, %v3633
      %v3638 = vmul.f32 %v3630, %v3633
      %3643 = vrot.lane.b32.xlu0 %v3635, 64
      %v3644 = vpop.permute.xlu0 %3643
      %3645 = vrot.lane.b32.xlu0 %v3636, 64
      %v3646 = vpop.permute.xlu0 %3645
      %3647 = vrot.lane.b32.xlu0 %v3637, 64
      %v3648 = vpop.permute.xlu0 %3647
      %3649 = vrot.lane.b32.xlu0 %v3638, 64
      %v3650 = vpop.permute.xlu0 %3649
      %v3651 = vsel %vm2325, %v3644, %v3646
      %v3652 = vsel %vm2325, %v3646, %v3648
      %v3653 = vsel %vm2325, %v3648, %v3650
      %v3657 = vadd.f32 %v3624, %v3651
      %v3658 = vadd.f32 %v3625, %v3652
      %v3659 = vadd.f32 %v3626, %v3653
      %3660 = vset.pattern.permute.xlu0 29
      %3661 = vperm.xlu0 %3660, %v583
      %v3662 = vpop.permute.xlu0 %3661
      %v3664 = vmul.f32 %v3627, %v3662
      %v3665 = vmul.f32 %v3628, %v3662
      %v3666 = vmul.f32 %v3629, %v3662
      %v3667 = vmul.f32 %v3630, %v3662
      %3672 = vrot.lane.b32.xlu0 %v3664, 61
      %v3673 = vpop.permute.xlu0 %3672
      %3674 = vrot.lane.b32.xlu0 %v3665, 61
      %v3675 = vpop.permute.xlu0 %3674
      %3676 = vrot.lane.b32.xlu0 %v3666, 61
      %v3677 = vpop.permute.xlu0 %3676
      %3678 = vrot.lane.b32.xlu0 %v3667, 61
      %v3679 = vpop.permute.xlu0 %3678
      %v3680 = vsel %vm2583, %v3673, %v3675
      %v3681 = vsel %vm2583, %v3675, %v3677
      %v3682 = vsel %vm2583, %v3677, %v3679
      %v3686 = vadd.f32 %v3657, %v3680
      %v3687 = vadd.f32 %v3658, %v3681
      %v3688 = vadd.f32 %v3659, %v3682
      %3689 = vset.pattern.permute.xlu0 30
      %3690 = vperm.xlu0 %3689, %v583
      %v3691 = vpop.permute.xlu0 %3690
      %v3693 = vmul.f32 %v3627, %v3691
      %v3694 = vmul.f32 %v3628, %v3691
      %v3695 = vmul.f32 %v3629, %v3691
      %v3696 = vmul.f32 %v3630, %v3691
      %3701 = vrot.lane.b32.xlu0 %v3693, 58
      %v3702 = vpop.permute.xlu0 %3701
      %3703 = vrot.lane.b32.xlu0 %v3694, 58
      %v3704 = vpop.permute.xlu0 %3703
      %3705 = vrot.lane.b32.xlu0 %v3695, 58
      %v3706 = vpop.permute.xlu0 %3705
      %3707 = vrot.lane.b32.xlu0 %v3696, 58
      %v3708 = vpop.permute.xlu0 %3707
      %vm3709 = vcmask 474112
      %v3710 = vsel %vm3709, %v3702, %v3704
      %v3711 = vsel %vm3709, %v3704, %v3706
      %v3712 = vsel %vm3709, %v3706, %v3708
      %v3716 = vadd.f32 %v3686, %v3710
      %v3717 = vadd.f32 %v3687, %v3711
      %v3718 = vadd.f32 %v3688, %v3712
      %3719 = vset.pattern.permute.xlu0 31
      %3720 = vperm.xlu0 %3719, %v583
      %v3721 = vpop.permute.xlu0 %3720
      %v3723 = vmul.f32 %v3627, %v3721
      %v3724 = vmul.f32 %v3628, %v3721
      %v3725 = vmul.f32 %v3629, %v3721
      %v3726 = vmul.f32 %v3630, %v3721
      %3731 = vrot.lane.b32.xlu0 %v3723, 55
      %v3732 = vpop.permute.xlu0 %3731
      %3733 = vrot.lane.b32.xlu0 %v3724, 55
      %v3734 = vpop.permute.xlu0 %3733
      %3735 = vrot.lane.b32.xlu0 %v3725, 55
      %v3736 = vpop.permute.xlu0 %3735
      %3737 = vrot.lane.b32.xlu0 %v3726, 55
      %v3738 = vpop.permute.xlu0 %3737
      %vm3739 = vcmask 449536
      %v3740 = vsel %vm3739, %v3732, %v3734
      %v3741 = vsel %vm3739, %v3734, %v3736
      %v3742 = vsel %vm3739, %v3736, %v3738
      %v3746 = vadd.f32 %v3716, %v3740
      %v3747 = vadd.f32 %v3717, %v3741
      %v3748 = vadd.f32 %v3718, %v3742
      %3749 = vset.pattern.permute.xlu0 32
      %3750 = vperm.xlu0 %3749, %v583
      %v3751 = vpop.permute.xlu0 %3750
      %v3753 = vmul.f32 %v3627, %v3751
      %v3754 = vmul.f32 %v3628, %v3751
      %v3755 = vmul.f32 %v3629, %v3751
      %v3756 = vmul.f32 %v3630, %v3751
      %3761 = vrot.lane.b32.xlu0 %v3753, 52
      %v3762 = vpop.permute.xlu0 %3761
      %3763 = vrot.lane.b32.xlu0 %v3754, 52
      %v3764 = vpop.permute.xlu0 %3763
      %3765 = vrot.lane.b32.xlu0 %v3755, 52
      %v3766 = vpop.permute.xlu0 %3765
      %3767 = vrot.lane.b32.xlu0 %v3756, 52
      %v3768 = vpop.permute.xlu0 %3767
      %vm3769 = vcmask 424960
      %v3770 = vsel %vm3769, %v3762, %v3764
      %v3771 = vsel %vm3769, %v3764, %v3766
      %v3772 = vsel %vm3769, %v3766, %v3768
      %v3776 = vadd.f32 %v3746, %v3770
      %v3777 = vadd.f32 %v3747, %v3771
      %v3778 = vadd.f32 %v3748, %v3772
      %3779 = vset.pattern.permute.xlu0 33
      %3780 = vperm.xlu0 %3779, %v583
      %v3781 = vpop.permute.xlu0 %3780
      %v3783 = vmul.f32 %v3627, %v3781
      %v3784 = vmul.f32 %v3628, %v3781
      %v3785 = vmul.f32 %v3629, %v3781
      %v3786 = vmul.f32 %v3630, %v3781
      %3791 = vrot.lane.b32.xlu0 %v3783, 49
      %v3792 = vpop.permute.xlu0 %3791
      %3793 = vrot.lane.b32.xlu0 %v3784, 49
      %v3794 = vpop.permute.xlu0 %3793
      %3795 = vrot.lane.b32.xlu0 %v3785, 49
      %v3796 = vpop.permute.xlu0 %3795
      %3797 = vrot.lane.b32.xlu0 %v3786, 49
      %v3798 = vpop.permute.xlu0 %3797
      %vm3799 = vcmask 400384
      %v3800 = vsel %vm3799, %v3792, %v3794
      %v3801 = vsel %vm3799, %v3794, %v3796
      %v3802 = vsel %vm3799, %v3796, %v3798
      %v3806 = vadd.f32 %v3776, %v3800
      %v3807 = vadd.f32 %v3777, %v3801
      %v3808 = vadd.f32 %v3778, %v3802
      %3809 = vset.pattern.permute.xlu0 34
      %3810 = vperm.xlu0 %3809, %v583
      %v3811 = vpop.permute.xlu0 %3810
      %v3813 = vmul.f32 %v3627, %v3811
      %v3814 = vmul.f32 %v3628, %v3811
      %v3815 = vmul.f32 %v3629, %v3811
      %v3816 = vmul.f32 %v3630, %v3811
      %3821 = vrot.lane.b32.xlu0 %v3813, 46
      %v3822 = vpop.permute.xlu0 %3821
      %3823 = vrot.lane.b32.xlu0 %v3814, 46
      %v3824 = vpop.permute.xlu0 %3823
      %3825 = vrot.lane.b32.xlu0 %v3815, 46
      %v3826 = vpop.permute.xlu0 %3825
      %3827 = vrot.lane.b32.xlu0 %v3816, 46
      %v3828 = vpop.permute.xlu0 %3827
      %vm3829 = vcmask 375808
      %v3830 = vsel %vm3829, %v3822, %v3824
      %v3831 = vsel %vm3829, %v3824, %v3826
      %v3832 = vsel %vm3829, %v3826, %v3828
      %v3836 = vadd.f32 %v3806, %v3830
      %v3837 = vadd.f32 %v3807, %v3831
      %v3838 = vadd.f32 %v3808, %v3832
      %v3839 = vld [vmem:[#allocation3 + $0x28] sm:$0xff]
      %v3840 = vld [vmem:[#allocation3 + $0x30] sm:$0xff]
      %v3841 = vld [vmem:[#allocation3 + $0x38] sm:$0xff]
      %v3842 = vld [vmem:[#allocation3 + $0x40] sm:$0xff]
      %3843 = vset.pattern.permute.xlu0 35
      %3844 = vperm.xlu0 %3843, %v583
      %v3845 = vpop.permute.xlu0 %3844
      %v3847 = vmul.f32 %v3839, %v3845
      %v3848 = vmul.f32 %v3840, %v3845
      %v3849 = vmul.f32 %v3841, %v3845
      %v3850 = vmul.f32 %v3842, %v3845
      %3855 = vrot.lane.b32.xlu0 %v3847, 48
      %v3856 = vpop.permute.xlu0 %3855
      %3857 = vrot.lane.b32.xlu0 %v3848, 48
      %v3858 = vpop.permute.xlu0 %3857
      %3859 = vrot.lane.b32.xlu0 %v3849, 48
      %v3860 = vpop.permute.xlu0 %3859
      %3861 = vrot.lane.b32.xlu0 %v3850, 48
      %v3862 = vpop.permute.xlu0 %3861
      %vm3863 = vcmask 392192
      %v3864 = vsel %vm3863, %v3856, %v3858
      %v3865 = vsel %vm3863, %v3858, %v3860
      %v3866 = vsel %vm3863, %v3860, %v3862
      %v3870 = vadd.f32 %v3836, %v3864
      %v3871 = vadd.f32 %v3837, %v3865
      %v3872 = vadd.f32 %v3838, %v3866
      %3873 = vset.pattern.permute.xlu0 36
      %3874 = vperm.xlu0 %3873, %v583
      %v3875 = vpop.permute.xlu0 %3874
      %v3877 = vmul.f32 %v3839, %v3875
      %v3878 = vmul.f32 %v3840, %v3875
      %v3879 = vmul.f32 %v3841, %v3875
      %v3880 = vmul.f32 %v3842, %v3875
      %3885 = vrot.lane.b32.xlu0 %v3877, 45
      %v3886 = vpop.permute.xlu0 %3885
      %3887 = vrot.lane.b32.xlu0 %v3878, 45
      %v3888 = vpop.permute.xlu0 %3887
      %3889 = vrot.lane.b32.xlu0 %v3879, 45
      %v3890 = vpop.permute.xlu0 %3889
      %3891 = vrot.lane.b32.xlu0 %v3880, 45
      %v3892 = vpop.permute.xlu0 %3891
      %vm3893 = vcmask 367616
      %v3894 = vsel %vm3893, %v3886, %v3888
      %v3895 = vsel %vm3893, %v3888, %v3890
      %v3896 = vsel %vm3893, %v3890, %v3892
      %v3900 = vadd.f32 %v3870, %v3894
      %v3901 = vadd.f32 %v3871, %v3895
      %v3902 = vadd.f32 %v3872, %v3896
      %3903 = vset.pattern.permute.xlu0 37
      %3904 = vperm.xlu0 %3903, %v583
      %v3905 = vpop.permute.xlu0 %3904
      %v3907 = vmul.f32 %v3839, %v3905
      %v3908 = vmul.f32 %v3840, %v3905
      %v3909 = vmul.f32 %v3841, %v3905
      %v3910 = vmul.f32 %v3842, %v3905
      %3915 = vrot.lane.b32.xlu0 %v3907, 42
      %v3916 = vpop.permute.xlu0 %3915
      %3917 = vrot.lane.b32.xlu0 %v3908, 42
      %v3918 = vpop.permute.xlu0 %3917
      %3919 = vrot.lane.b32.xlu0 %v3909, 42
      %v3920 = vpop.permute.xlu0 %3919
      %3921 = vrot.lane.b32.xlu0 %v3910, 42
      %v3922 = vpop.permute.xlu0 %3921
      %vm3923 = vcmask 343040
      %v3924 = vsel %vm3923, %v3916, %v3918
      %v3925 = vsel %vm3923, %v3918, %v3920
      %v3926 = vsel %vm3923, %v3920, %v3922
      %v3930 = vadd.f32 %v3900, %v3924
      %v3931 = vadd.f32 %v3901, %v3925
      %v3932 = vadd.f32 %v3902, %v3926
      %3933 = vset.pattern.permute.xlu0 38
      %3934 = vperm.xlu0 %3933, %v583
      %v3935 = vpop.permute.xlu0 %3934
      %v3937 = vmul.f32 %v3839, %v3935
      %v3938 = vmul.f32 %v3840, %v3935
      %v3939 = vmul.f32 %v3841, %v3935
      %v3940 = vmul.f32 %v3842, %v3935
      %3945 = vrot.lane.b32.xlu0 %v3937, 39
      %v3946 = vpop.permute.xlu0 %3945
      %3947 = vrot.lane.b32.xlu0 %v3938, 39
      %v3948 = vpop.permute.xlu0 %3947
      %3949 = vrot.lane.b32.xlu0 %v3939, 39
      %v3950 = vpop.permute.xlu0 %3949
      %3951 = vrot.lane.b32.xlu0 %v3940, 39
      %v3952 = vpop.permute.xlu0 %3951
      %vm3953 = vcmask 318464
      %v3954 = vsel %vm3953, %v3946, %v3948
      %v3955 = vsel %vm3953, %v3948, %v3950
      %v3956 = vsel %vm3953, %v3950, %v3952
      %v3960 = vadd.f32 %v3930, %v3954
      %v3961 = vadd.f32 %v3931, %v3955
      %v3962 = vadd.f32 %v3932, %v3956
      %3963 = vset.pattern.permute.xlu0 39
      %3964 = vperm.xlu0 %3963, %v583
      %v3965 = vpop.permute.xlu0 %3964
      %v3967 = vmul.f32 %v3839, %v3965
      %v3968 = vmul.f32 %v3840, %v3965
      %v3969 = vmul.f32 %v3841, %v3965
      %v3970 = vmul.f32 %v3842, %v3965
      %3975 = vrot.lane.b32.xlu0 %v3967, 36
      %v3976 = vpop.permute.xlu0 %3975
      %3977 = vrot.lane.b32.xlu0 %v3968, 36
      %v3978 = vpop.permute.xlu0 %3977
      %3979 = vrot.lane.b32.xlu0 %v3969, 36
      %v3980 = vpop.permute.xlu0 %3979
      %3981 = vrot.lane.b32.xlu0 %v3970, 36
      %v3982 = vpop.permute.xlu0 %3981
      %vm3983 = vcmask 293888
      %v3984 = vsel %vm3983, %v3976, %v3978
      %v3985 = vsel %vm3983, %v3978, %v3980
      %v3986 = vsel %vm3983, %v3980, %v3982
      %v3990 = vadd.f32 %v3960, %v3984
      %v3991 = vadd.f32 %v3961, %v3985
      %v3992 = vadd.f32 %v3962, %v3986
      %3993 = vset.pattern.permute.xlu0 40
      %3994 = vperm.xlu0 %3993, %v583
      %v3995 = vpop.permute.xlu0 %3994
      %v3997 = vmul.f32 %v3839, %v3995
      %v3998 = vmul.f32 %v3840, %v3995
      %v3999 = vmul.f32 %v3841, %v3995
      %v4000 = vmul.f32 %v3842, %v3995
      %4005 = vrot.lane.b32.xlu0 %v3997, 33
      %v4006 = vpop.permute.xlu0 %4005
      %4007 = vrot.lane.b32.xlu0 %v3998, 33
      %v4008 = vpop.permute.xlu0 %4007
      %4009 = vrot.lane.b32.xlu0 %v3999, 33
      %v4010 = vpop.permute.xlu0 %4009
      %4011 = vrot.lane.b32.xlu0 %v4000, 33
      %v4012 = vpop.permute.xlu0 %4011
      %vm4013 = vcmask 269312
      %v4014 = vsel %vm4013, %v4006, %v4008
      %v4015 = vsel %vm4013, %v4008, %v4010
      %v4016 = vsel %vm4013, %v4010, %v4012
      %v4020 = vadd.f32 %v3990, %v4014
      %v4021 = vadd.f32 %v3991, %v4015
      %v4022 = vadd.f32 %v3992, %v4016
      %4023 = vset.pattern.permute.xlu0 41
      %4024 = vperm.xlu0 %4023, %v583
      %v4025 = vpop.permute.xlu0 %4024
      %v4027 = vmul.f32 %v3839, %v4025
      %v4028 = vmul.f32 %v3840, %v4025
      %v4029 = vmul.f32 %v3841, %v4025
      %v4030 = vmul.f32 %v3842, %v4025
      %4035 = vrot.lane.b32.xlu0 %v4027, 30
      %v4036 = vpop.permute.xlu0 %4035
      %4037 = vrot.lane.b32.xlu0 %v4028, 30
      %v4038 = vpop.permute.xlu0 %4037
      %4039 = vrot.lane.b32.xlu0 %v4029, 30
      %v4040 = vpop.permute.xlu0 %4039
      %4041 = vrot.lane.b32.xlu0 %v4030, 30
      %v4042 = vpop.permute.xlu0 %4041
      %v4043 = vsel %vm1625, %v4036, %v4038
      %v4044 = vsel %vm1625, %v4038, %v4040
      %v4045 = vsel %vm1625, %v4040, %v4042
      %v4049 = vadd.f32 %v4020, %v4043
      %v4050 = vadd.f32 %v4021, %v4044
      %v4051 = vadd.f32 %v4022, %v4045
      %v4052 = vld [vmem:[#allocation3 + $0x30] sm:$0xff]
      %v4053 = vld [vmem:[#allocation3 + $0x38] sm:$0xff]
      %v4054 = vld [vmem:[#allocation3 + $0x40] sm:$0xff]
      %v4055 = vld [vmem:[#allocation3 + $0x48] sm:$0xff]
      %4056 = vset.pattern.permute.xlu0 42
      %4057 = vperm.xlu0 %4056, %v583
      %v4058 = vpop.permute.xlu0 %4057
      %v4060 = vmul.f32 %v4052, %v4058
      %v4061 = vmul.f32 %v4053, %v4058
      %v4062 = vmul.f32 %v4054, %v4058
      %v4063 = vmul.f32 %v4055, %v4058
      %4068 = vrot.lane.b32.xlu0 %v4060, 32
      %v4069 = vpop.permute.xlu0 %4068
      %4070 = vrot.lane.b32.xlu0 %v4061, 32
      %v4071 = vpop.permute.xlu0 %4070
      %4072 = vrot.lane.b32.xlu0 %v4062, 32
      %v4073 = vpop.permute.xlu0 %4072
      %4074 = vrot.lane.b32.xlu0 %v4063, 32
      %v4075 = vpop.permute.xlu0 %4074
      %v4076 = vsel %vm1453, %v4069, %v4071
      %v4077 = vsel %vm1453, %v4071, %v4073
      %v4078 = vsel %vm1453, %v4073, %v4075
      %v4082 = vadd.f32 %v4049, %v4076
      %v4083 = vadd.f32 %v4050, %v4077
      %v4084 = vadd.f32 %v4051, %v4078
      %4085 = vset.pattern.permute.xlu0 43
      %4086 = vperm.xlu0 %4085, %v583
      %v4087 = vpop.permute.xlu0 %4086
      %v4089 = vmul.f32 %v4052, %v4087
      %v4090 = vmul.f32 %v4053, %v4087
      %v4091 = vmul.f32 %v4054, %v4087
      %v4092 = vmul.f32 %v4055, %v4087
      %4097 = vrot.lane.b32.xlu0 %v4089, 29
      %v4098 = vpop.permute.xlu0 %4097
      %4099 = vrot.lane.b32.xlu0 %v4090, 29
      %v4100 = vpop.permute.xlu0 %4099
      %4101 = vrot.lane.b32.xlu0 %v4091, 29
      %v4102 = vpop.permute.xlu0 %4101
      %4103 = vrot.lane.b32.xlu0 %v4092, 29
      %v4104 = vpop.permute.xlu0 %4103
      %v4105 = vsel %vm1711, %v4098, %v4100
      %v4106 = vsel %vm1711, %v4100, %v4102
      %v4107 = vsel %vm1711, %v4102, %v4104
      %v4111 = vadd.f32 %v4082, %v4105
      %v4112 = vadd.f32 %v4083, %v4106
      %v4113 = vadd.f32 %v4084, %v4107
      %4114 = vset.pattern.permute.xlu0 44
      %4115 = vperm.xlu0 %4114, %v583
      %v4116 = vpop.permute.xlu0 %4115
      %v4118 = vmul.f32 %v4052, %v4116
      %v4119 = vmul.f32 %v4053, %v4116
      %v4120 = vmul.f32 %v4054, %v4116
      %v4121 = vmul.f32 %v4055, %v4116
      %4126 = vrot.lane.b32.xlu0 %v4118, 26
      %v4127 = vpop.permute.xlu0 %4126
      %4128 = vrot.lane.b32.xlu0 %v4119, 26
      %v4129 = vpop.permute.xlu0 %4128
      %4130 = vrot.lane.b32.xlu0 %v4120, 26
      %v4131 = vpop.permute.xlu0 %4130
      %4132 = vrot.lane.b32.xlu0 %v4121, 26
      %v4133 = vpop.permute.xlu0 %4132
      %vm4134 = vcmask 211968
      %v4135 = vsel %vm4134, %v4127, %v4129
      %v4136 = vsel %vm4134, %v4129, %v4131
      %v4137 = vsel %vm4134, %v4131, %v4133
      %v4141 = vadd.f32 %v4111, %v4135
      %v4142 = vadd.f32 %v4112, %v4136
      %v4143 = vadd.f32 %v4113, %v4137
      %4144 = vset.pattern.permute.xlu0 45
      %4145 = vperm.xlu0 %4144, %v583
      %v4146 = vpop.permute.xlu0 %4145
      %v4148 = vmul.f32 %v4052, %v4146
      %v4149 = vmul.f32 %v4053, %v4146
      %v4150 = vmul.f32 %v4054, %v4146
      %v4151 = vmul.f32 %v4055, %v4146
      %4156 = vrot.lane.b32.xlu0 %v4148, 23
      %v4157 = vpop.permute.xlu0 %4156
      %4158 = vrot.lane.b32.xlu0 %v4149, 23
      %v4159 = vpop.permute.xlu0 %4158
      %4160 = vrot.lane.b32.xlu0 %v4150, 23
      %v4161 = vpop.permute.xlu0 %4160
      %4162 = vrot.lane.b32.xlu0 %v4151, 23
      %v4163 = vpop.permute.xlu0 %4162
      %vm4164 = vcmask 187392
      %v4165 = vsel %vm4164, %v4157, %v4159
      %v4166 = vsel %vm4164, %v4159, %v4161
      %v4167 = vsel %vm4164, %v4161, %v4163
      %v4171 = vadd.f32 %v4141, %v4165
      %v4172 = vadd.f32 %v4142, %v4166
      %v4173 = vadd.f32 %v4143, %v4167
      %4174 = vset.pattern.permute.xlu0 46
      %4175 = vperm.xlu0 %4174, %v583
      %v4176 = vpop.permute.xlu0 %4175
      %v4178 = vmul.f32 %v4052, %v4176
      %v4179 = vmul.f32 %v4053, %v4176
      %v4180 = vmul.f32 %v4054, %v4176
      %v4181 = vmul.f32 %v4055, %v4176
      %4186 = vrot.lane.b32.xlu0 %v4178, 20
      %v4187 = vpop.permute.xlu0 %4186
      %4188 = vrot.lane.b32.xlu0 %v4179, 20
      %v4189 = vpop.permute.xlu0 %4188
      %4190 = vrot.lane.b32.xlu0 %v4180, 20
      %v4191 = vpop.permute.xlu0 %4190
      %4192 = vrot.lane.b32.xlu0 %v4181, 20
      %v4193 = vpop.permute.xlu0 %4192
      %vm4194 = vcmask 162816
      %v4195 = vsel %vm4194, %v4187, %v4189
      %v4196 = vsel %vm4194, %v4189, %v4191
      %v4197 = vsel %vm4194, %v4191, %v4193
      %v4201 = vadd.f32 %v4171, %v4195
      %v4202 = vadd.f32 %v4172, %v4196
      %v4203 = vadd.f32 %v4173, %v4197
      %4204 = vset.pattern.permute.xlu0 47
      %4205 = vperm.xlu0 %4204, %v583
      %v4206 = vpop.permute.xlu0 %4205
      %v4208 = vmul.f32 %v4052, %v4206
      %v4209 = vmul.f32 %v4053, %v4206
      %v4210 = vmul.f32 %v4054, %v4206
      %v4211 = vmul.f32 %v4055, %v4206
      %4216 = vrot.lane.b32.xlu0 %v4208, 17
      %v4217 = vpop.permute.xlu0 %4216
      %4218 = vrot.lane.b32.xlu0 %v4209, 17
      %v4219 = vpop.permute.xlu0 %4218
      %4220 = vrot.lane.b32.xlu0 %v4210, 17
      %v4221 = vpop.permute.xlu0 %4220
      %4222 = vrot.lane.b32.xlu0 %v4211, 17
      %v4223 = vpop.permute.xlu0 %4222
      %vm4224 = vcmask 138240
      %v4225 = vsel %vm4224, %v4217, %v4219
      %v4226 = vsel %vm4224, %v4219, %v4221
      %v4227 = vsel %vm4224, %v4221, %v4223
      %v4231 = vadd.f32 %v4201, %v4225
      %v4232 = vadd.f32 %v4202, %v4226
      %v4233 = vadd.f32 %v4203, %v4227
      %4234 = vset.pattern.permute.xlu0 48
      %4235 = vperm.xlu0 %4234, %v583
      %v4236 = vpop.permute.xlu0 %4235
      %v4238 = vmul.f32 %v4052, %v4236
      %v4239 = vmul.f32 %v4053, %v4236
      %v4240 = vmul.f32 %v4054, %v4236
      %v4241 = vmul.f32 %v4055, %v4236
      %4246 = vrot.lane.b32.xlu0 %v4238, 14
      %v4247 = vpop.permute.xlu0 %4246
      %4248 = vrot.lane.b32.xlu0 %v4239, 14
      %v4249 = vpop.permute.xlu0 %4248
      %4250 = vrot.lane.b32.xlu0 %v4240, 14
      %v4251 = vpop.permute.xlu0 %4250
      %4252 = vrot.lane.b32.xlu0 %v4241, 14
      %v4253 = vpop.permute.xlu0 %4252
      %vm4254 = vcmask 113664
      %v4255 = vsel %vm4254, %v4247, %v4249
      %v4256 = vsel %vm4254, %v4249, %v4251
      %v4257 = vsel %vm4254, %v4251, %v4253
      %v4261 = vadd.f32 %v4231, %v4255
      %v4262 = vadd.f32 %v4232, %v4256
      %v4263 = vadd.f32 %v4233, %v4257
      %4265 = vset.pattern.permute.xlu0 0
      %4266 = vperm.xlu0 %4265, %v585
      %v4267 = vpop.permute.xlu0 %4266
      %v4269 = vadd.f32 %v4261, %v4267
      %v4270 = vadd.f32 %v4262, %v4267
      %v4271 = vadd.f32 %v4263, %v4267
      %v4272 = vld [vmem:[%s6] sm:$0x3]
      %v4273 = vpack.c.bf16 %v3416, %v3416
      %v4274 = vpack.c.bf16 %v3417, %v3417
      %v4275 = vpack.c.bf16 %v3418, %v3418
      %v4276 = vpack.c.bf16 %v3419, %v3419
      %v4277 = vld [vmem:[%s7] sm:$0xf]
      %4279 = vset.pattern.permute.xlu0 0
      %4280 = vperm.xlu0 %4279, %v4277
      %v4281 = vpop.permute.xlu0 %4280
      %4287 = vrot.lane.b32.xlu0 %v4273, 71
      %v4288 = vpop.permute.xlu0 %4287
      %4289 = vrot.lane.b32.xlu0 %v4274, 71
      %v4290 = vpop.permute.xlu0 %4289
      %4291 = vrot.lane.b32.xlu0 %v4275, 71
      %v4292 = vpop.permute.xlu0 %4291
      %4293 = vrot.lane.b32.xlu0 %v4276, 71
      %v4294 = vpop.permute.xlu0 %4293
      %vm4295 = vcmask 580608
      %v4296 = vsel %vm4295, %v4288, %v4290
      %v4297 = vsel %vm4295, %v4290, %v4292
      %v4298 = vsel %vm4295, %v4292, %v4294
      %vm4299 = vcmask 64512
      %v4301 = vsel %vm4299, %v4272, 0
      %vm4303 = vcmask 1043456
      %v4305 = vsel %vm4303, %v4296, 0
      %v4308 = vsel %vm4303, %v4297, 0
      %v4311 = vsel %vm4303, %v4298, 0
      %4313 = vmatprep.subr.bf16.mxu0 %v4308
      %4314 = vmatpush1.bf16.msra.mxu0 %v4305
      %4315 = vmatprep.subr.bf16.mxu0 0
      %4316 = vmatpush1.bf16.msra.mxu0 0
      %4317 = vmatprep.subr.bf16.mxu0 0
      %4318 = vmatpush1.bf16.msra.mxu0 0
      %4319 = vmatprep.subr.bf16.mxu0 0
      %4320 = vmatpush1.bf16.msra.mxu0 0
      %4321 = vmatprep.subr.bf16.mxu0 0
      %4322 = vmatpush1.bf16.msra.mxu0 0
      %4323 = vmatprep.subr.bf16.mxu0 0
      %4324 = vmatpush1.bf16.msra.mxu0 0
      %4325 = vmatprep.subr.bf16.mxu0 0
      %4326 = vmatpush1.bf16.msra.mxu0 0
      %4327 = vmatprep.subr.bf16.mxu0 0
      %4328 = vmatpush1.bf16.msra.mxu0 0
      %4329 = vmatprep.subr.bf16.mxu0 0
      %4330 = vmatpush1.bf16.msra.mxu0 0
      %4331 = vmatprep.subr.bf16.mxu0 0
      %4332 = vmatpush1.bf16.msra.mxu0 0
      %4333 = vmatprep.subr.bf16.mxu0 0
      %4334 = vmatpush1.bf16.msra.mxu0 0
      %4335 = vmatprep.subr.bf16.mxu0 0
      %4336 = vmatpush1.bf16.msra.mxu0 0
      %4337 = vmatprep.subr.bf16.mxu0 0
      %4338 = vmatpush1.bf16.msra.mxu0 0
      %4339 = vmatprep.subr.bf16.mxu0 0
      %4340 = vmatpush1.bf16.msra.mxu0 0
      %4341 = vmatprep.subr.bf16.mxu0 0
      %4342 = vmatpush1.bf16.msra.mxu0 0
      %4343 = vmatprep.subr.bf16.mxu0 0
      %4344 = vmatpush1.bf16.msra.mxu0 0
      %4345 = vmatprep.mubr.bf16.mxu0 0
      %4346 = vmatmul.mubr.bf16.gmra.mrb[0].mxu0 %v4301
      %v4347 = vpop.f32.mrb[0].mxu0
      %v4348 = vadd.f32 %v4281, %v4347
      %v4349 = vpop.f32.mrb[0].mxu0
      %v4350 = vadd.f32 %v4281, %v4349
      %v4351 = vpop.f32.mrb[0].mxu0
      %v4352 = vpop.f32.mrb[0].mxu0
      %4353 = vdwg.mxu0
      %4354 = vmatprep.subr.bf16.mxu0 0
      %4355 = vmatpush1.bf16.msra.mxu0 %v4311
      %4356 = vmatprep.subr.bf16.mxu0 0
      %4357 = vmatpush1.bf16.msra.mxu0 0
      %4358 = vmatprep.subr.bf16.mxu0 0
      %4359 = vmatpush1.bf16.msra.mxu0 0
      %4360 = vmatprep.subr.bf16.mxu0 0
      %4361 = vmatpush1.bf16.msra.mxu0 0
      %4362 = vmatprep.subr.bf16.mxu0 0
      %4363 = vmatpush1.bf16.msra.mxu0 0
      %4364 = vmatprep.subr.bf16.mxu0 0
      %4365 = vmatpush1.bf16.msra.mxu0 0
      %4366 = vmatprep.subr.bf16.mxu0 0
      %4367 = vmatpush1.bf16.msra.mxu0 0
      %4368 = vmatprep.subr.bf16.mxu0 0
      %4369 = vmatpush1.bf16.msra.mxu0 0
      %4370 = vmatprep.subr.bf16.mxu0 0
      %4371 = vmatpush1.bf16.msra.mxu0 0
      %4372 = vmatprep.subr.bf16.mxu0 0
      %4373 = vmatpush1.bf16.msra.mxu0 0
      %4374 = vmatprep.subr.bf16.mxu0 0
      %4375 = vmatpush1.bf16.msra.mxu0 0
      %4376 = vmatprep.subr.bf16.mxu0 0
      %4377 = vmatpush1.bf16.msra.mxu0 0
      %4378 = vmatprep.subr.bf16.mxu0 0
      %4379 = vmatpush1.bf16.msra.mxu0 0
      %4380 = vmatprep.subr.bf16.mxu0 0
      %4381 = vmatpush1.bf16.msra.mxu0 0
      %4382 = vmatprep.subr.bf16.mxu0 0
      %4383 = vmatpush1.bf16.msra.mxu0 0
      %4384 = vmatprep.subr.bf16.mxu0 0
      %4385 = vmatpush1.bf16.msra.mxu0 0
      %4386 = vmatprep.mubr.bf16.mxu0 0
      %4387 = vmatmul.mubr.bf16.gmra.mrb[0].mxu0 %v4301
      %v4388 = vpop.f32.mrb[0].mxu0
      %v4389 = vadd.f32 %v4281, %v4388
      %v4390 = vpop.f32.mrb[0].mxu0
      %v4391 = vpop.f32.mrb[0].mxu0
      %v4392 = vpop.f32.mrb[0].mxu0
      %4393 = vdwg.mxu0
      %v4394 = vld [vmem:[%s8] sm:$0x3]
      %v4395 = vpack.c.bf16 %v4269, %v4269
      %v4396 = vpack.c.bf16 %v4270, %v4270
      %v4397 = vpack.c.bf16 %v4271, %v4271
      %v4398 = vld [vmem:[%s9] sm:$0xf]
      %4400 = vset.pattern.permute.xlu0 0
      %4401 = vperm.xlu0 %4400, %v4398
      %v4402 = vpop.permute.xlu0 %4401
      %v4405 = vsel %vm4299, %v4394, 0
      %v4408 = vsel %vm4303, %v4395, 0
      %v4411 = vsel %vm4303, %v4396, 0
      %v4414 = vsel %vm4303, %v4397, 0
      %4416 = vmatprep.subr.bf16.mxu0 %v4411
      %4417 = vmatpush1.bf16.msra.mxu0 %v4408
      %4418 = vmatprep.subr.bf16.mxu0 0
      %4419 = vmatpush1.bf16.msra.mxu0 0
      %4420 = vmatprep.subr.bf16.mxu0 0
      %4421 = vmatpush1.bf16.msra.mxu0 0
      %4422 = vmatprep.subr.bf16.mxu0 0
      %4423 = vmatpush1.bf16.msra.mxu0 0
      %4424 = vmatprep.subr.bf16.mxu0 0
      %4425 = vmatpush1.bf16.msra.mxu0 0
      %4426 = vmatprep.subr.bf16.mxu0 0
      %4427 = vmatpush1.bf16.msra.mxu0 0
      %4428 = vmatprep.subr.bf16.mxu0 0
      %4429 = vmatpush1.bf16.msra.mxu0 0
      %4430 = vmatprep.subr.bf16.mxu0 0
      %4431 = vmatpush1.bf16.msra.mxu0 0
      %4432 = vmatprep.subr.bf16.mxu0 0
      %4433 = vmatpush1.bf16.msra.mxu0 0
      %4434 = vmatprep.subr.bf16.mxu0 0
      %4435 = vmatpush1.bf16.msra.mxu0 0
      %4436 = vmatprep.subr.bf16.mxu0 0
      %4437 = vmatpush1.bf16.msra.mxu0 0
      %4438 = vmatprep.subr.bf16.mxu0 0
      %4439 = vmatpush1.bf16.msra.mxu0 0
      %4440 = vmatprep.subr.bf16.mxu0 0
      %4441 = vmatpush1.bf16.msra.mxu0 0
      %4442 = vmatprep.subr.bf16.mxu0 0
      %4443 = vmatpush1.bf16.msra.mxu0 0
      %4444 = vmatprep.subr.bf16.mxu0 0
      %4445 = vmatpush1.bf16.msra.mxu0 0
      %4446 = vmatprep.subr.bf16.mxu0 0
      %4447 = vmatpush1.bf16.msra.mxu0 0
      %4448 = vmatprep.mubr.bf16.mxu0 0
      %4449 = vmatmul.mubr.bf16.gmra.mrb[0].mxu0 %v4405
      %v4450 = vpop.f32.mrb[0].mxu0
      %v4451 = vadd.f32 %v4402, %v4450
      %v4452 = vpop.f32.mrb[0].mxu0
      %v4453 = vadd.f32 %v4402, %v4452
      %v4454 = vpop.f32.mrb[0].mxu0
      %v4455 = vpop.f32.mrb[0].mxu0
      %4456 = vdwg.mxu0
      %4457 = vmatprep.subr.bf16.mxu0 0
      %4458 = vmatpush1.bf16.msra.mxu0 %v4414
      %4459 = vmatprep.subr.bf16.mxu0 0
      %4460 = vmatpush1.bf16.msra.mxu0 0
      %4461 = vmatprep.subr.bf16.mxu0 0
      %4462 = vmatpush1.bf16.msra.mxu0 0
      %4463 = vmatprep.subr.bf16.mxu0 0
      %4464 = vmatpush1.bf16.msra.mxu0 0
      %4465 = vmatprep.subr.bf16.mxu0 0
      %4466 = vmatpush1.bf16.msra.mxu0 0
      %4467 = vmatprep.subr.bf16.mxu0 0
      %4468 = vmatpush1.bf16.msra.mxu0 0
      %4469 = vmatprep.subr.bf16.mxu0 0
      %4470 = vmatpush1.bf16.msra.mxu0 0
      %4471 = vmatprep.subr.bf16.mxu0 0
      %4472 = vmatpush1.bf16.msra.mxu0 0
      %4473 = vmatprep.subr.bf16.mxu0 0
      %4474 = vmatpush1.bf16.msra.mxu0 0
      %4475 = vmatprep.subr.bf16.mxu0 0
      %4476 = vmatpush1.bf16.msra.mxu0 0
      %4477 = vmatprep.subr.bf16.mxu0 0
      %4478 = vmatpush1.bf16.msra.mxu0 0
      %4479 = vmatprep.subr.bf16.mxu0 0
      %4480 = vmatpush1.bf16.msra.mxu0 0
      %4481 = vmatprep.subr.bf16.mxu0 0
      %4482 = vmatpush1.bf16.msra.mxu0 0
      %4483 = vmatprep.subr.bf16.mxu0 0
      %4484 = vmatpush1.bf16.msra.mxu0 0
      %4485 = vmatprep.subr.bf16.mxu0 0
      %4486 = vmatpush1.bf16.msra.mxu0 0
      %4487 = vmatprep.subr.bf16.mxu0 0
      %4488 = vmatpush1.bf16.msra.mxu0 0
      %4489 = vmatprep.mubr.bf16.mxu0 0
      %4490 = vmatmul.mubr.bf16.gmra.mrb[0].mxu0 %v4405
      %v4491 = vpop.f32.mrb[0].mxu0
      %v4492 = vadd.f32 %v4402, %v4491
      %v4493 = vpop.f32.mrb[0].mxu0
      %v4494 = vpop.f32.mrb[0].mxu0
      %v4495 = vpop.f32.mrb[0].mxu0
      %4496 = vdwg.mxu0
      %v4499 = vcombine.low %v4348, %v4350
      %4501 = vst [vmem:[%s393] sm:$0xff] %v4499
      %4502 = vst [vmem:[%s393 + $0x8] sm:$0xf] %v4389
      %v4505 = vcombine.low %v4451, %v4453
      %4507 = vst [vmem:[%s403] sm:$0xff] %v4505
      %4508 = vst [vmem:[%s403 + $0x8] sm:$0xf] %v4492
      %s4509 = smul.u32 3, %s28
      %p4510 = scmp.lt.s32.totalorder %s27, 1
      %s4511 = scalar_select %p4510, %s27, 1
      %p4512 = scmp.lt.s32.totalorder %s4509, 5
      %s4513 = scalar_select %p4512, %s4509, 5
      %s4514 = smul.addr %s4511, 6
      %s4515 = sadd.s32 %s4513, %s4514
      %s4516 = smul.addr %s4515, 4
      %s4517 = scalar_lea.vmem %s10, %s4516
      %s4518 = smul.u32 3, %s28
      %p4519 = scmp.lt.s32.totalorder %s27, 1
      %s4520 = scalar_select %p4519, %s27, 1
      %p4521 = scmp.lt.s32.totalorder %s4518, 5
      %s4522 = scalar_select %p4521, %s4518, 5
      %s4523 = smul.addr %s4520, 6
      %s4524 = sadd.s32 %s4522, %s4523
      %s4525 = smul.addr %s4524, 4
      %s4526 = scalar_lea.vmem %s11, %s4525
      // Predicated region
      $region133: #{_lambda_.1} parent=55 // pred_check
        %p4527 = pneg %p249
      $region134: #{_lambda_.1} parent=55 // pred_check_branch
        %4529 = sbr.rel (%p4527) target = $region136
      $region135: #{_lambda_.1} parent=55 // pred_region
        %s4530 = smul.u32 3, %s28
      $region136: #{_lambda_.1} parent=55 // pred_fallthru
        _
      // Predicated region
      $region137: #{_lambda_.1} parent=55 // pred_check
        %p4531 = pneg %p277
      $region138: #{_lambda_.1} parent=55 // pred_check_branch
        %4533 = sbr.rel (%p4531) target = $region140
      $region139: #{_lambda_.1} parent=55 // pred_region
        %s4534 = smul.u32 3, %s28
      $region140: #{_lambda_.1} parent=55 // pred_fallthru
        _
    $region56: #{_lambda_.1} parent=5 // pred_fallthru
      _
    %p4535 = scmp.le.s32.totalorder 2, %s18
    // Predicated region
    $region141: #{_lambda_.1} parent=5 // pred_check
      %p4536 = pneg %p4535
    $region142: #{_lambda_.1} parent=5 // pred_check_branch
      %4538 = sbr.rel (%p4536) target = $region144
    $region143: #{_lambda_.1} parent=5 // pred_region
      %s4539 = ssub.s32 %s18, 2
      // Predicated region
      $region145: #{_lambda_.1} parent=143 // pred_check
        %p4540 = pneg %p255
      $region146: #{_lambda_.1} parent=143 // pred_check_branch
        %4542 = sbr.rel (%p4540) target = $region148
      $region147: #{_lambda_.1} parent=143 // pred_region
        %s4543 = smul.u32 3, %s30
        %p4544 = scmp.lt.s32.totalorder %s29, 1
        %s4545 = scalar_select %p4544, %s29, 1
        %p4546 = scmp.lt.s32.totalorder %s4543, 5
        %s4547 = scalar_select %p4546, %s4543, 5
        %s4548 = smul.addr %s4545, 6
        %s4549 = sadd.s32 %s4547, %s4548
        %s4550 = smul.addr %s4549, 4
        %s4551 = scalar_lea.vmem %s10, %s4550
      $region148: #{_lambda_.1} parent=143 // pred_fallthru
        _
      // Predicated region
      $region149: #{_lambda_.1} parent=143 // pred_check
        %p4552 = pneg %p283
      $region150: #{_lambda_.1} parent=143 // pred_check_branch
        %4554 = sbr.rel (%p4552) target = $region152
      $region151: #{_lambda_.1} parent=143 // pred_region
        %s4555 = smul.u32 3, %s30
        %p4556 = scmp.lt.s32.totalorder %s29, 1
        %s4557 = scalar_select %p4556, %s29, 1
        %p4558 = scmp.lt.s32.totalorder %s4555, 5
        %s4559 = scalar_select %p4558, %s4555, 5
        %s4560 = smul.addr %s4557, 6
        %s4561 = sadd.s32 %s4559, %s4560
        %s4562 = smul.addr %s4561, 4
        %s4563 = scalar_lea.vmem %s11, %s4562
      $region152: #{_lambda_.1} parent=143 // pred_fallthru
        _
    $region144: #{_lambda_.1} parent=5 // pred_fallthru
      _
  $region6: #{_lambda_.1} parent=0 // loop_footer
    %s22 = sadd.s32 1, %s18
  $region7: #{_lambda_.1} parent=0 // loop_footer_branch
    %17 = sbr.rel target = $region3
  $region8: #{_lambda_.1} parent=0 // loop_exit
    _
  %4564 = vsyncmov [#allocation4]
  %s4565 = vpop.sfrf %4564
  %p4566 = scmp.eq.s32.totalorder %s4565, 0
  %p4567 = pneg %p4566
  %4569 = shalt.err (%p4567)
  %s4570 = scalar_lea.sflag [#allocation4], 1
  %4571 = vsyncmov %s4570
  %s4572 = vpop.sfrf %4571
  %p4573 = scmp.eq.s32.totalorder %s4572, 0
  %p4574 = pneg %p4573
  %4576 = shalt.err (%p4574)

</llo_original>
